<compile_context>
chip_gen: v7x
topology: tpu7x:2x2x1
jax: 0.10.0
libtpu: 0.0.40
codegen_flags: <defaults>
</compile_context>

<pallas_src>
import jax
import jax.numpy as jnp
from jax import lax
from jax.experimental import pallas as pl
from jax.experimental.pallas import tpu as pltpu
import numpy as np

HIDDEN = 32      # hidden_size
FC1_OUT = 64     # fc1 output features
VOCAB = 128      # nn.Embedding(128, hidden_size)
LANES = 128      # slab lane width

# Row layout of the packed parameter slab (all offsets multiples of 8 sublanes).
R_PROJ = 0                       # rows   0:128  proj_table (cols 0:96)
R_WHH = R_PROJ + VOCAB           # rows 128:160  W_hh^T     (cols 0:96)
R_BHN = R_WHH + HIDDEN           # rows 160:168  b_hn in row 160 (cols 0:32)
R_W1 = R_BHN + 8                 # rows 168:200  fc1 W^T    (cols 0:64)
R_B1 = R_W1 + HIDDEN             # rows 200:208  fc1 b in row 200 (cols 0:64)
SLAB_ROWS = R_B1 + 8             # 208


def gru_fc1_kernel(ids_ref, slab_ref, out_ref):
    """Fused (embedding -> input projection) gather + full GRU recurrence + fc1.

    ids_ref : (S*B, 1) int32  time-major token ids (row t*B + b = batch b at time t)
    slab_ref: (208, 128) f32  packed parameters (layout: R_* constants above)
    out_ref : (B, 64)   f32
    """
    B = out_ref.shape[0]
    SB = ids_ref.shape[0]
    S = SB // B
    H = HIDDEN
    highest = lax.Precision.HIGHEST

    # ---- fused embedding gather + hoisted input projection -------------------------
    # proj_table rows already hold  embed[id] @ W_ih^T + b_ih + [b_hr, b_hz, 0],
    # so a one-hot matmul against it IS the whole time-parallel input projection.
    ids = ids_ref[...]                                                  # (S*B, 1)
    onehot = (lax.broadcasted_iota(jnp.int32, (SB, VOCAB), 1) == ids
              ).astype(jnp.float32)                                     # (S*B, 128)
    proj = slab_ref[R_PROJ:R_PROJ + VOCAB, :]                           # (128, 128)
    gi_all = jnp.dot(onehot, proj, preferred_element_type=jnp.float32,
                     precision=highest)                                 # (S*B, 128); cols 96+ zero

    whh = slab_ref[R_WHH:R_WHH + H, :]                                  # (32, 128); cols 96+ zero
    # b_hn broadcast hoisted once (re-emitting it per unrolled step is not CSE'd).
    bhh_n = jnp.broadcast_to(slab_ref[R_BHN:R_BHN + 1, 0:H], (B, H))    # (B, 32)

    # ---- t = 0: h0 == 0 so the recurrent matmul is identically zero ---------------
    gi = gi_all[0:B, :]
    rz = jax.nn.sigmoid(gi[:, 0:2 * H])                # merged r/z: one EUP push
    r, z = rz[:, 0:H], rz[:, H:2 * H]
    n = jnp.tanh(gi[:, 2 * H:3 * H] + r * bhh_n)
    h = (1.0 - z) * n

    # ---- statically unrolled serial recurrence (S known at trace time) ------------
    # TODO(synk): gate slices at lane offsets 32/64 may emit XLU rotates; re-layout the
    # gate columns only if a bundle dump ever shows them binding (they should be free).
    for t in range(1, S):
        gi = gi_all[t * B:(t + 1) * B, :]              # static sublane-aligned slice
        gh = jnp.dot(h, whh, preferred_element_type=jnp.float32,
                     precision=highest)                # (B, 128)
        rz = jax.nn.sigmoid(gi[:, 0:2 * H] + gh[:, 0:2 * H])
        r, z = rz[:, 0:H], rz[:, H:2 * H]
        n = jnp.tanh(gi[:, 2 * H:3 * H] + r * (gh[:, 2 * H:3 * H] + bhh_n))
        h = (1.0 - z) * n + z * h

    # ---- fc1 fused onto the final hidden state -------------------------------------
    w1 = slab_ref[R_W1:R_W1 + H, 0:FC1_OUT]                             # (32, 64)
    b1 = slab_ref[R_B1:R_B1 + 1, 0:FC1_OUT]                             # (1, 64)
    out_ref[...] = (jnp.dot(h, w1, preferred_element_type=jnp.float32,
                            precision=highest) + b1).astype(out_ref.dtype)


@jax.jit
def model_forward(x_ids, params):
    """x_ids: (batch, seq) int32 token ids in [0, 128)."""
    B, S = x_ids.shape
    # Only remaining wrapper-side glue: the (8,8) id transpose (256 B). The embedding
    # gather / projection now happen inside the kernel.
    ids_tm = x_ids.T.reshape(S * B, 1).astype(jnp.int32)   # time-major ids

    vmem = lambda: pl.BlockSpec(memory_space=pltpu.MemorySpace.VMEM)
    out = pl.pallas_call(
        gru_fc1_kernel,
        out_shape=jax.ShapeDtypeStruct((B, FC1_OUT), jnp.float32),
        in_specs=[vmem(), vmem()],
        out_specs=vmem(),
    )(ids_tm, params["slab"])
    return out


def reference_forward(x_ids, params):
    """Pure-JAX reference of the same forward pass (for correctness check)."""
    H = HIDDEN
    highest = lax.Precision.HIGHEST
    emb = params["embed"][x_ids.T]               # (seq, batch, hidden) exact gather
    B = x_ids.shape[0]

    def step(h, x_t):
        gi = jnp.dot(x_t, params["wih_t"], precision=highest) + params["bih"]
        gh = jnp.dot(h, params["whh_t"], precision=highest) + params["bhh"]
        r = jax.nn.sigmoid(gi[:, :H] + gh[:, :H])
        z = jax.nn.sigmoid(gi[:, H:2 * H] + gh[:, H:2 * H])
        n = jnp.tanh(gi[:, 2 * H:] + r * gh[:, 2 * H:])
        h_new = (1.0 - z) * n + z * h
        return h_new, None

    h0 = jnp.zeros((B, H), jnp.float32)
    h_last, _ = lax.scan(step, h0, emb)
    return jnp.dot(h_last, params["w1_t"], precision=highest) + params["b1"]


def init_params(key):
    """Deterministic parameter init (PyTorch-like uniform(-1/sqrt(H), 1/sqrt(H)))."""
    H = HIDDEN
    ks = jax.random.split(key, 7)
    bound = 1.0 / np.sqrt(H)
    u = lambda k, shape, b: jax.random.uniform(k, shape, jnp.float32, -b, b)

    embed = jax.random.normal(ks[0], (VOCAB, H), jnp.float32)
    # GRU weights stored pre-transposed: (in_features, 3*hidden), gate order r, z, n.
    wih_t = u(ks[1], (H, 3 * H), bound)
    whh_t = u(ks[2], (H, 3 * H), bound)
    bih = u(ks[3], (1, 3 * H), bound)
    bhh = u(ks[4], (1, 3 * H), bound)
    # fc1: Linear(hidden, 64), stored transposed (hidden, 64).
    w1_t = u(ks[5], (H, FC1_OUT), bound)
    b1 = u(ks[6], (1, FC1_OUT), bound)

    params = {"embed": embed, "wih_t": wih_t, "whh_t": whh_t,
              "bih": bih, "bhh": bhh, "w1_t": w1_t, "b1": b1}

    # ---- derived, kernel-ready parameters (weights are static; compute once) -------
    # r/z gates take b_ih + b_hh up front; the n gate's b_hh stays inside r*(...)
    # (exact PyTorch GRU semantics, only fp-add order differs at ulp level).
    bgi = bih + jnp.concatenate(
        [bhh[:, :2 * H], jnp.zeros((1, H), jnp.float32)], axis=1)       # (1, 96)
    # Embedding + input projection + merged bias folded into one lookup table.
    proj_table = jnp.dot(embed, wih_t, precision=lax.Precision.HIGHEST) + bgi  # (128, 96)

    def pad_block(a, rows):
        out = jnp.zeros((rows, LANES), jnp.float32)
        return out.at[:a.shape[0], :a.shape[1]].set(a)

    slab = jnp.concatenate([
        pad_block(proj_table, VOCAB),        # rows   0:128
        pad_block(whh_t, H),                 # rows 128:160
        pad_block(bhh[:, 2 * H:], 8),        # rows 160:168 (row 160 = b_hn)
        pad_block(w1_t, H),                  # rows 168:200
        pad_block(b1, 8),                    # rows 200:208 (row 200 = fc1 bias)
    ], axis=0)
    assert slab.shape == (SLAB_ROWS, LANES)
    params["slab"] = slab
    return params


if __name__ == "__main__":
    key = jax.random.PRNGKey(0)
    kp, kx = jax.random.split(key)
    params = init_params(kp)

    batch, seq = 8, 8
    x_ids = jax.random.randint(kx, (batch, seq), 0, VOCAB, dtype=jnp.int32)

    out = jax.block_until_ready(model_forward(x_ids, params))
    ref = jax.block_until_ready(reference_forward(x_ids, params))
    np.testing.assert_allclose(np.asarray(out), np.asarray(ref), rtol=1e-5, atol=1e-5)

    print("KERNEL_OK")
</pallas_src>

<mosaic_0001>
module attributes {stable_mosaic.version = 11 : i64} {
  func.func @gru_fc1_kernel(%arg0: memref<64x1xi32, #tpu.memory_space<vmem>>, %arg1: memref<208x128xf32, #tpu.memory_space<vmem>>, %arg2: memref<8x64xf32, #tpu.memory_space<vmem>>) attributes {dimension_semantics = [], scalar_prefetch = 0 : i64, scratch_operands = 0 : i64, tpu.core_type = #tpu.core_type<tc>} {
    %c0 = arith.constant 0 : index
    %c0_0 = arith.constant 0 : index
    %0 = vector.load %arg0[%c0, %c0_0] : memref<64x1xi32, #tpu.memory_space<vmem>>, vector<64x1xi32>
    %1 = tpu.iota {dimensions = array<i32: 1>} : vector<64x128xi32>
    %2 = vector.broadcast %0 : vector<64x1xi32> to vector<64x128xi32>
    %3 = arith.cmpi eq, %1, %2 : vector<64x128xi32>
    %4 = arith.extui %3 : vector<64x128xi1> to vector<64x128xi32>
    %5 = arith.sitofp %4 : vector<64x128xi32> to vector<64x128xf32>
    %c0_1 = arith.constant 0 : index
    %c0_2 = arith.constant 0 : index
    %6 = vector.load %arg1[%c0_1, %c0_2] : memref<208x128xf32, #tpu.memory_space<vmem>>, vector<128x128xf32>
    %cst = arith.constant dense<0.000000e+00> : vector<64x128xf32>
    %7 = tpu.matmul %5, %6, %cst {dimension_numbers = #tpu.dot_dimension_numbers<[1], [0], [0], [1], [0, 0, 1, 1], [], []>, precision = #tpu.contract_precision<fp32>} : vector<64x128xf32>, vector<128x128xf32>, vector<64x128xf32> -> vector<64x128xf32>
    %c128 = arith.constant 128 : index
    %c0_3 = arith.constant 0 : index
    %8 = vector.load %arg1[%c128, %c0_3] : memref<208x128xf32, #tpu.memory_space<vmem>>, vector<32x128xf32>
    %c160 = arith.constant 160 : index
    %c0_4 = arith.constant 0 : index
    %9 = vector.load %arg1[%c160, %c0_4] : memref<208x128xf32, #tpu.memory_space<vmem>>, vector<1x32xf32>
    %10 = vector.shape_cast %9 : vector<1x32xf32> to vector<1x32xf32>
    %11 = vector.broadcast %10 : vector<1x32xf32> to vector<8x32xf32>
    %12 = vector.extract_strided_slice %7 {offsets = [0, 0], sizes = [8, 128], strides = [1, 1]} : vector<64x128xf32> to vector<8x128xf32>
    %13 = vector.extract_strided_slice %12 {offsets = [0, 0], sizes = [8, 64], strides = [1, 1]} : vector<8x128xf32> to vector<8x64xf32>
    %14 = arith.negf %13 : vector<8x64xf32>
    %15 = math.exp %14 : vector<8x64xf32>
    %cst_5 = arith.constant 1.000000e+00 : f32
    %16 = vector.broadcast %cst_5 : f32 to vector<8x64xf32>
    %17 = arith.addf %16, %15 : vector<8x64xf32>
    %18 = arith.divf %16, %17 : vector<8x64xf32>
    %19 = vector.extract_strided_slice %18 {offsets = [0, 0], sizes = [8, 32], strides = [1, 1]} : vector<8x64xf32> to vector<8x32xf32>
    %20 = vector.extract_strided_slice %18 {offsets = [0, 32], sizes = [8, 32], strides = [1, 1]} : vector<8x64xf32> to vector<8x32xf32>
    %21 = vector.extract_strided_slice %12 {offsets = [0, 64], sizes = [8, 32], strides = [1, 1]} : vector<8x128xf32> to vector<8x32xf32>
    %22 = arith.mulf %19, %11 : vector<8x32xf32>
    %23 = arith.addf %21, %22 : vector<8x32xf32>
    %24 = math.tanh %23 : vector<8x32xf32>
    %cst_6 = arith.constant 1.000000e+00 : f32
    %25 = vector.broadcast %cst_6 : f32 to vector<8x32xf32>
    %26 = arith.subf %25, %20 : vector<8x32xf32>
    %27 = arith.mulf %26, %24 : vector<8x32xf32>
    %28 = vector.extract_strided_slice %7 {offsets = [8, 0], sizes = [8, 128], strides = [1, 1]} : vector<64x128xf32> to vector<8x128xf32>
    %cst_7 = arith.constant dense<0.000000e+00> : vector<8x128xf32>
    %29 = tpu.matmul %27, %8, %cst_7 {dimension_numbers = #tpu.dot_dimension_numbers<[1], [0], [0], [1], [0, 0, 1, 1], [], []>, precision = #tpu.contract_precision<fp32>} : vector<8x32xf32>, vector<32x128xf32>, vector<8x128xf32> -> vector<8x128xf32>
    %30 = vector.extract_strided_slice %28 {offsets = [0, 0], sizes = [8, 64], strides = [1, 1]} : vector<8x128xf32> to vector<8x64xf32>
    %31 = vector.extract_strided_slice %29 {offsets = [0, 0], sizes = [8, 64], strides = [1, 1]} : vector<8x128xf32> to vector<8x64xf32>
    %32 = arith.addf %30, %31 : vector<8x64xf32>
    %33 = arith.negf %32 : vector<8x64xf32>
    %34 = math.exp %33 : vector<8x64xf32>
    %cst_8 = arith.constant 1.000000e+00 : f32
    %35 = vector.broadcast %cst_8 : f32 to vector<8x64xf32>
    %36 = arith.addf %35, %34 : vector<8x64xf32>
    %37 = arith.divf %35, %36 : vector<8x64xf32>
    %38 = vector.extract_strided_slice %37 {offsets = [0, 0], sizes = [8, 32], strides = [1, 1]} : vector<8x64xf32> to vector<8x32xf32>
    %39 = vector.extract_strided_slice %37 {offsets = [0, 32], sizes = [8, 32], strides = [1, 1]} : vector<8x64xf32> to vector<8x32xf32>
    %40 = vector.extract_strided_slice %28 {offsets = [0, 64], sizes = [8, 32], strides = [1, 1]} : vector<8x128xf32> to vector<8x32xf32>
    %41 = vector.extract_strided_slice %29 {offsets = [0, 64], sizes = [8, 32], strides = [1, 1]} : vector<8x128xf32> to vector<8x32xf32>
    %42 = arith.addf %41, %11 : vector<8x32xf32>
    %43 = arith.mulf %38, %42 : vector<8x32xf32>
    %44 = arith.addf %40, %43 : vector<8x32xf32>
    %45 = math.tanh %44 : vector<8x32xf32>
    %cst_9 = arith.constant 1.000000e+00 : f32
    %46 = vector.broadcast %cst_9 : f32 to vector<8x32xf32>
    %47 = arith.subf %46, %39 : vector<8x32xf32>
    %48 = arith.mulf %47, %45 : vector<8x32xf32>
    %49 = arith.mulf %39, %27 : vector<8x32xf32>
    %50 = arith.addf %48, %49 : vector<8x32xf32>
    %51 = vector.extract_strided_slice %7 {offsets = [16, 0], sizes = [8, 128], strides = [1, 1]} : vector<64x128xf32> to vector<8x128xf32>
    %cst_10 = arith.constant dense<0.000000e+00> : vector<8x128xf32>
    %52 = tpu.matmul %50, %8, %cst_10 {dimension_numbers = #tpu.dot_dimension_numbers<[1], [0], [0], [1], [0, 0, 1, 1], [], []>, precision = #tpu.contract_precision<fp32>} : vector<8x32xf32>, vector<32x128xf32>, vector<8x128xf32> -> vector<8x128xf32>
    %53 = vector.extract_strided_slice %51 {offsets = [0, 0], sizes = [8, 64], strides = [1, 1]} : vector<8x128xf32> to vector<8x64xf32>
    %54 = vector.extract_strided_slice %52 {offsets = [0, 0], sizes = [8, 64], strides = [1, 1]} : vector<8x128xf32> to vector<8x64xf32>
    %55 = arith.addf %53, %54 : vector<8x64xf32>
    %56 = arith.negf %55 : vector<8x64xf32>
    %57 = math.exp %56 : vector<8x64xf32>
    %cst_11 = arith.constant 1.000000e+00 : f32
    %58 = vector.broadcast %cst_11 : f32 to vector<8x64xf32>
    %59 = arith.addf %58, %57 : vector<8x64xf32>
    %60 = arith.divf %58, %59 : vector<8x64xf32>
    %61 = vector.extract_strided_slice %60 {offsets = [0, 0], sizes = [8, 32], strides = [1, 1]} : vector<8x64xf32> to vector<8x32xf32>
    %62 = vector.extract_strided_slice %60 {offsets = [0, 32], sizes = [8, 32], strides = [1, 1]} : vector<8x64xf32> to vector<8x32xf32>
    %63 = vector.extract_strided_slice %51 {offsets = [0, 64], sizes = [8, 32], strides = [1, 1]} : vector<8x128xf32> to vector<8x32xf32>
    %64 = vector.extract_strided_slice %52 {offsets = [0, 64], sizes = [8, 32], strides = [1, 1]} : vector<8x128xf32> to vector<8x32xf32>
    %65 = arith.addf %64, %11 : vector<8x32xf32>
    %66 = arith.mulf %61, %65 : vector<8x32xf32>
    %67 = arith.addf %63, %66 : vector<8x32xf32>
    %68 = math.tanh %67 : vector<8x32xf32>
    %cst_12 = arith.constant 1.000000e+00 : f32
    %69 = vector.broadcast %cst_12 : f32 to vector<8x32xf32>
    %70 = arith.subf %69, %62 : vector<8x32xf32>
    %71 = arith.mulf %70, %68 : vector<8x32xf32>
    %72 = arith.mulf %62, %50 : vector<8x32xf32>
    %73 = arith.addf %71, %72 : vector<8x32xf32>
    %74 = vector.extract_strided_slice %7 {offsets = [24, 0], sizes = [8, 128], strides = [1, 1]} : vector<64x128xf32> to vector<8x128xf32>
    %cst_13 = arith.constant dense<0.000000e+00> : vector<8x128xf32>
    %75 = tpu.matmul %73, %8, %cst_13 {dimension_numbers = #tpu.dot_dimension_numbers<[1], [0], [0], [1], [0, 0, 1, 1], [], []>, precision = #tpu.contract_precision<fp32>} : vector<8x32xf32>, vector<32x128xf32>, vector<8x128xf32> -> vector<8x128xf32>
    %76 = vector.extract_strided_slice %74 {offsets = [0, 0], sizes = [8, 64], strides = [1, 1]} : vector<8x128xf32> to vector<8x64xf32>
    %77 = vector.extract_strided_slice %75 {offsets = [0, 0], sizes = [8, 64], strides = [1, 1]} : vector<8x128xf32> to vector<8x64xf32>
    %78 = arith.addf %76, %77 : vector<8x64xf32>
    %79 = arith.negf %78 : vector<8x64xf32>
    %80 = math.exp %79 : vector<8x64xf32>
    %cst_14 = arith.constant 1.000000e+00 : f32
    %81 = vector.broadcast %cst_14 : f32 to vector<8x64xf32>
    %82 = arith.addf %81, %80 : vector<8x64xf32>
    %83 = arith.divf %81, %82 : vector<8x64xf32>
    %84 = vector.extract_strided_slice %83 {offsets = [0, 0], sizes = [8, 32], strides = [1, 1]} : vector<8x64xf32> to vector<8x32xf32>
    %85 = vector.extract_strided_slice %83 {offsets = [0, 32], sizes = [8, 32], strides = [1, 1]} : vector<8x64xf32> to vector<8x32xf32>
    %86 = vector.extract_strided_slice %74 {offsets = [0, 64], sizes = [8, 32], strides = [1, 1]} : vector<8x128xf32> to vector<8x32xf32>
    %87 = vector.extract_strided_slice %75 {offsets = [0, 64], sizes = [8, 32], strides = [1, 1]} : vector<8x128xf32> to vector<8x32xf32>
    %88 = arith.addf %87, %11 : vector<8x32xf32>
    %89 = arith.mulf %84, %88 : vector<8x32xf32>
    %90 = arith.addf %86, %89 : vector<8x32xf32>
    %91 = math.tanh %90 : vector<8x32xf32>
    %cst_15 = arith.constant 1.000000e+00 : f32
    %92 = vector.broadcast %cst_15 : f32 to vector<8x32xf32>
    %93 = arith.subf %92, %85 : vector<8x32xf32>
    %94 = arith.mulf %93, %91 : vector<8x32xf32>
    %95 = arith.mulf %85, %73 : vector<8x32xf32>
    %96 = arith.addf %94, %95 : vector<8x32xf32>
    %97 = vector.extract_strided_slice %7 {offsets = [32, 0], sizes = [8, 128], strides = [1, 1]} : vector<64x128xf32> to vector<8x128xf32>
    %cst_16 = arith.constant dense<0.000000e+00> : vector<8x128xf32>
    %98 = tpu.matmul %96, %8, %cst_16 {dimension_numbers = #tpu.dot_dimension_numbers<[1], [0], [0], [1], [0, 0, 1, 1], [], []>, precision = #tpu.contract_precision<fp32>} : vector<8x32xf32>, vector<32x128xf32>, vector<8x128xf32> -> vector<8x128xf32>
    %99 = vector.extract_strided_slice %97 {offsets = [0, 0], sizes = [8, 64], strides = [1, 1]} : vector<8x128xf32> to vector<8x64xf32>
    %100 = vector.extract_strided_slice %98 {offsets = [0, 0], sizes = [8, 64], strides = [1, 1]} : vector<8x128xf32> to vector<8x64xf32>
    %101 = arith.addf %99, %100 : vector<8x64xf32>
    %102 = arith.negf %101 : vector<8x64xf32>
    %103 = math.exp %102 : vector<8x64xf32>
    %cst_17 = arith.constant 1.000000e+00 : f32
    %104 = vector.broadcast %cst_17 : f32 to vector<8x64xf32>
    %105 = arith.addf %104, %103 : vector<8x64xf32>
    %106 = arith.divf %104, %105 : vector<8x64xf32>
    %107 = vector.extract_strided_slice %106 {offsets = [0, 0], sizes = [8, 32], strides = [1, 1]} : vector<8x64xf32> to vector<8x32xf32>
    %108 = vector.extract_strided_slice %106 {offsets = [0, 32], sizes = [8, 32], strides = [1, 1]} : vector<8x64xf32> to vector<8x32xf32>
    %109 = vector.extract_strided_slice %97 {offsets = [0, 64], sizes = [8, 32], strides = [1, 1]} : vector<8x128xf32> to vector<8x32xf32>
    %110 = vector.extract_strided_slice %98 {offsets = [0, 64], sizes = [8, 32], strides = [1, 1]} : vector<8x128xf32> to vector<8x32xf32>
    %111 = arith.addf %110, %11 : vector<8x32xf32>
    %112 = arith.mulf %107, %111 : vector<8x32xf32>
    %113 = arith.addf %109, %112 : vector<8x32xf32>
    %114 = math.tanh %113 : vector<8x32xf32>
    %cst_18 = arith.constant 1.000000e+00 : f32
    %115 = vector.broadcast %cst_18 : f32 to vector<8x32xf32>
    %116 = arith.subf %115, %108 : vector<8x32xf32>
    %117 = arith.mulf %116, %114 : vector<8x32xf32>
    %118 = arith.mulf %108, %96 : vector<8x32xf32>
    %119 = arith.addf %117, %118 : vector<8x32xf32>
    %120 = vector.extract_strided_slice %7 {offsets = [40, 0], sizes = [8, 128], strides = [1, 1]} : vector<64x128xf32> to vector<8x128xf32>
    %cst_19 = arith.constant dense<0.000000e+00> : vector<8x128xf32>
    %121 = tpu.matmul %119, %8, %cst_19 {dimension_numbers = #tpu.dot_dimension_numbers<[1], [0], [0], [1], [0, 0, 1, 1], [], []>, precision = #tpu.contract_precision<fp32>} : vector<8x32xf32>, vector<32x128xf32>, vector<8x128xf32> -> vector<8x128xf32>
    %122 = vector.extract_strided_slice %120 {offsets = [0, 0], sizes = [8, 64], strides = [1, 1]} : vector<8x128xf32> to vector<8x64xf32>
    %123 = vector.extract_strided_slice %121 {offsets = [0, 0], sizes = [8, 64], strides = [1, 1]} : vector<8x128xf32> to vector<8x64xf32>
    %124 = arith.addf %122, %123 : vector<8x64xf32>
    %125 = arith.negf %124 : vector<8x64xf32>
    %126 = math.exp %125 : vector<8x64xf32>
    %cst_20 = arith.constant 1.000000e+00 : f32
    %127 = vector.broadcast %cst_20 : f32 to vector<8x64xf32>
    %128 = arith.addf %127, %126 : vector<8x64xf32>
    %129 = arith.divf %127, %128 : vector<8x64xf32>
    %130 = vector.extract_strided_slice %129 {offsets = [0, 0], sizes = [8, 32], strides = [1, 1]} : vector<8x64xf32> to vector<8x32xf32>
    %131 = vector.extract_strided_slice %129 {offsets = [0, 32], sizes = [8, 32], strides = [1, 1]} : vector<8x64xf32> to vector<8x32xf32>
    %132 = vector.extract_strided_slice %120 {offsets = [0, 64], sizes = [8, 32], strides = [1, 1]} : vector<8x128xf32> to vector<8x32xf32>
    %133 = vector.extract_strided_slice %121 {offsets = [0, 64], sizes = [8, 32], strides = [1, 1]} : vector<8x128xf32> to vector<8x32xf32>
    %134 = arith.addf %133, %11 : vector<8x32xf32>
    %135 = arith.mulf %130, %134 : vector<8x32xf32>
    %136 = arith.addf %132, %135 : vector<8x32xf32>
    %137 = math.tanh %136 : vector<8x32xf32>
    %cst_21 = arith.constant 1.000000e+00 : f32
    %138 = vector.broadcast %cst_21 : f32 to vector<8x32xf32>
    %139 = arith.subf %138, %131 : vector<8x32xf32>
    %140 = arith.mulf %139, %137 : vector<8x32xf32>
    %141 = arith.mulf %131, %119 : vector<8x32xf32>
    %142 = arith.addf %140, %141 : vector<8x32xf32>
    %143 = vector.extract_strided_slice %7 {offsets = [48, 0], sizes = [8, 128], strides = [1, 1]} : vector<64x128xf32> to vector<8x128xf32>
    %cst_22 = arith.constant dense<0.000000e+00> : vector<8x128xf32>
    %144 = tpu.matmul %142, %8, %cst_22 {dimension_numbers = #tpu.dot_dimension_numbers<[1], [0], [0], [1], [0, 0, 1, 1], [], []>, precision = #tpu.contract_precision<fp32>} : vector<8x32xf32>, vector<32x128xf32>, vector<8x128xf32> -> vector<8x128xf32>
    %145 = vector.extract_strided_slice %143 {offsets = [0, 0], sizes = [8, 64], strides = [1, 1]} : vector<8x128xf32> to vector<8x64xf32>
    %146 = vector.extract_strided_slice %144 {offsets = [0, 0], sizes = [8, 64], strides = [1, 1]} : vector<8x128xf32> to vector<8x64xf32>
    %147 = arith.addf %145, %146 : vector<8x64xf32>
    %148 = arith.negf %147 : vector<8x64xf32>
    %149 = math.exp %148 : vector<8x64xf32>
    %cst_23 = arith.constant 1.000000e+00 : f32
    %150 = vector.broadcast %cst_23 : f32 to vector<8x64xf32>
    %151 = arith.addf %150, %149 : vector<8x64xf32>
    %152 = arith.divf %150, %151 : vector<8x64xf32>
    %153 = vector.extract_strided_slice %152 {offsets = [0, 0], sizes = [8, 32], strides = [1, 1]} : vector<8x64xf32> to vector<8x32xf32>
    %154 = vector.extract_strided_slice %152 {offsets = [0, 32], sizes = [8, 32], strides = [1, 1]} : vector<8x64xf32> to vector<8x32xf32>
    %155 = vector.extract_strided_slice %143 {offsets = [0, 64], sizes = [8, 32], strides = [1, 1]} : vector<8x128xf32> to vector<8x32xf32>
    %156 = vector.extract_strided_slice %144 {offsets = [0, 64], sizes = [8, 32], strides = [1, 1]} : vector<8x128xf32> to vector<8x32xf32>
    %157 = arith.addf %156, %11 : vector<8x32xf32>
    %158 = arith.mulf %153, %157 : vector<8x32xf32>
    %159 = arith.addf %155, %158 : vector<8x32xf32>
    %160 = math.tanh %159 : vector<8x32xf32>
    %cst_24 = arith.constant 1.000000e+00 : f32
    %161 = vector.broadcast %cst_24 : f32 to vector<8x32xf32>
    %162 = arith.subf %161, %154 : vector<8x32xf32>
    %163 = arith.mulf %162, %160 : vector<8x32xf32>
    %164 = arith.mulf %154, %142 : vector<8x32xf32>
    %165 = arith.addf %163, %164 : vector<8x32xf32>
    %166 = vector.extract_strided_slice %7 {offsets = [56, 0], sizes = [8, 128], strides = [1, 1]} : vector<64x128xf32> to vector<8x128xf32>
    %cst_25 = arith.constant dense<0.000000e+00> : vector<8x128xf32>
    %167 = tpu.matmul %165, %8, %cst_25 {dimension_numbers = #tpu.dot_dimension_numbers<[1], [0], [0], [1], [0, 0, 1, 1], [], []>, precision = #tpu.contract_precision<fp32>} : vector<8x32xf32>, vector<32x128xf32>, vector<8x128xf32> -> vector<8x128xf32>
    %168 = vector.extract_strided_slice %166 {offsets = [0, 0], sizes = [8, 64], strides = [1, 1]} : vector<8x128xf32> to vector<8x64xf32>
    %169 = vector.extract_strided_slice %167 {offsets = [0, 0], sizes = [8, 64], strides = [1, 1]} : vector<8x128xf32> to vector<8x64xf32>
    %170 = arith.addf %168, %169 : vector<8x64xf32>
    %171 = arith.negf %170 : vector<8x64xf32>
    %172 = math.exp %171 : vector<8x64xf32>
    %cst_26 = arith.constant 1.000000e+00 : f32
    %173 = vector.broadcast %cst_26 : f32 to vector<8x64xf32>
    %174 = arith.addf %173, %172 : vector<8x64xf32>
    %175 = arith.divf %173, %174 : vector<8x64xf32>
    %176 = vector.extract_strided_slice %175 {offsets = [0, 0], sizes = [8, 32], strides = [1, 1]} : vector<8x64xf32> to vector<8x32xf32>
    %177 = vector.extract_strided_slice %175 {offsets = [0, 32], sizes = [8, 32], strides = [1, 1]} : vector<8x64xf32> to vector<8x32xf32>
    %178 = vector.extract_strided_slice %166 {offsets = [0, 64], sizes = [8, 32], strides = [1, 1]} : vector<8x128xf32> to vector<8x32xf32>
    %179 = vector.extract_strided_slice %167 {offsets = [0, 64], sizes = [8, 32], strides = [1, 1]} : vector<8x128xf32> to vector<8x32xf32>
    %180 = arith.addf %179, %11 : vector<8x32xf32>
    %181 = arith.mulf %176, %180 : vector<8x32xf32>
    %182 = arith.addf %178, %181 : vector<8x32xf32>
    %183 = math.tanh %182 : vector<8x32xf32>
    %cst_27 = arith.constant 1.000000e+00 : f32
    %184 = vector.broadcast %cst_27 : f32 to vector<8x32xf32>
    %185 = arith.subf %184, %177 : vector<8x32xf32>
    %186 = arith.mulf %185, %183 : vector<8x32xf32>
    %187 = arith.mulf %177, %165 : vector<8x32xf32>
    %188 = arith.addf %186, %187 : vector<8x32xf32>
    %c168 = arith.constant 168 : index
    %c0_28 = arith.constant 0 : index
    %189 = vector.load %arg1[%c168, %c0_28] : memref<208x128xf32, #tpu.memory_space<vmem>>, vector<32x64xf32>
    %c200 = arith.constant 200 : index
    %c0_29 = arith.constant 0 : index
    %190 = vector.load %arg1[%c200, %c0_29] : memref<208x128xf32, #tpu.memory_space<vmem>>, vector<1x64xf32>
    %cst_30 = arith.constant dense<0.000000e+00> : vector<8x64xf32>
    %191 = tpu.matmul %188, %189, %cst_30 {dimension_numbers = #tpu.dot_dimension_numbers<[1], [0], [0], [1], [0, 0, 1, 1], [], []>, precision = #tpu.contract_precision<fp32>} : vector<8x32xf32>, vector<32x64xf32>, vector<8x64xf32> -> vector<8x64xf32>
    %192 = vector.broadcast %190 : vector<1x64xf32> to vector<8x64xf32>
    %193 = arith.addf %191, %192 : vector<8x64xf32>
    %c0_31 = arith.constant 0 : index
    %c0_32 = arith.constant 0 : index
    %194 = vector.load %arg2[%c0_31, %c0_32] : memref<8x64xf32, #tpu.memory_space<vmem>>, vector<8x64xf32>
    tpu.vector_store %arg2[%c0_31, %c0_32], %193 {strides = array<i32>} : memref<8x64xf32, #tpu.memory_space<vmem>>, vector<8x64xf32>,
    return
  }
}

</mosaic_0001>

<llo_original>
// kernel: model_forward.1
$region0: #{model_forward.1}
  #allocation0 [shape = 'u32[]', space=smem, size = 0x4, offset = 0x4, fixed_abs, tag = 'smem constant byte address 0x4 - core index']
  #allocation1 [shape = 'u32[144,128]{1,0:T(1,128)}', space=vmem, size = 0x12000, scoped, tag = 'internal scratch']
  %s0 = inlined_call_operand.vmem [shape: s32[64,1], index: 0, kind: input, shape index: {}]
  %s1 = inlined_call_operand.hbm [shape: f32[208,128], index: 1, kind: input, shape index: {}]
  %s2 = inlined_call_operand.hbm [shape: f32[8,64], index: 2, kind: output, shape index: {}]
  %s3 = sld [smem:[#allocation0]]
  $region22: #{model_forward.1} parent=0
    _
  %s5 = ssub.s32 1, %s3
  %s6 = scalar_select 0, %s5, %s3
  $region1: #{model_forward.1} parent=0
    #allocation2 [shape = 'u8[106496]{0}', space=vmem, size = 0x1a000, scoped, tag = 'input window, operand 1, single buffered']
    #allocation3 [shape = 's32[1]{0}', space=sflag, size = 0x4, scoped, tag = 'scoped memory for model_forward.1']
    #allocation4 [shape = 's32[1]{0}', space=sflag, size = 0x4, scoped, tag = 'scoped memory for model_forward.1']
    #allocation5 [shape = 'u8[4096]{0}', space=vmem, size = 0x1000, scoped, tag = 'output window, operand 0, single buffered']
    %7 = vsyncpa [#allocation3], 0
    %8 = vsyncpa [#allocation4], 0
    // Predicated region
    $region2: #{model_forward.1} parent=1 // pred_check
      _
    $region3: #{model_forward.1} parent=1 // pred_check_branch
      %10 = sbr.rel (0) target = $region5
    $region4: #{model_forward.1} parent=1 // pred_region
      _
    $region5: #{model_forward.1} parent=1 // pred_fallthru
      _
    // Predicated region
    $region6: #{model_forward.1} parent=1 // pred_check
      _
    $region7: #{model_forward.1} parent=1 // pred_check_branch
      %12 = sbr.rel (0) target = $region9
    $region8: #{model_forward.1} parent=1 // pred_region
      %s14 = ssub.s32 3328, 3328
      %15 = vsyncadd [#allocation3], %s14
      %s16 = sshll.u32 [#allocation2], 4
      %s17 = int_to_ptr.vmem [resolvable:$true] %s16
      %22 = dma.hbm_to_vmem [thread:$0]  %s1, 3328, %s17, [#allocation3], 128, 128, 8
    $region9: #{model_forward.1} parent=1 // pred_fallthru
      _
    // Predicated region
    $region10: #{model_forward.1} parent=1 // pred_check
      _
    $region11: #{model_forward.1} parent=1 // pred_check_branch
      %24 = sbr.rel (0) target = $region13
    $region12: #{model_forward.1} parent=1 // pred_region
      %25 = dma.done [#allocation3], 3328
    $region13: #{model_forward.1} parent=1 // pred_fallthru
      _
    %v26 = vld [vmem:[%s0] sm:$0xff]
    %v27 = vld [vmem:[%s0 + $0x8] sm:$0xff]
    %v28 = vld [vmem:[%s0 + $0x10] sm:$0xff]
    %v29 = vld [vmem:[%s0 + $0x18] sm:$0xff]
    %v30 = vld [vmem:[%s0 + $0x20] sm:$0xff]
    %v31 = vld [vmem:[%s0 + $0x28] sm:$0xff]
    %v32 = vld [vmem:[%s0 + $0x30] sm:$0xff]
    %v33 = vld [vmem:[%s0 + $0x38] sm:$0xff]
    %v34 = vlaneseq
    %v35 = vand.u32 %v34, 127
    %36 = vset.pattern.permute.xlu0 0
    %37 = vperm.xlu0 %36, %v26
    %v38 = vpop.permute.xlu0 %37
    %39 = vset.pattern.permute.xlu0 0
    %40 = vperm.xlu0 %39, %v27
    %v41 = vpop.permute.xlu0 %40
    %42 = vset.pattern.permute.xlu0 0
    %43 = vperm.xlu0 %42, %v28
    %v44 = vpop.permute.xlu0 %43
    %45 = vset.pattern.permute.xlu0 0
    %46 = vperm.xlu0 %45, %v29
    %v47 = vpop.permute.xlu0 %46
    %48 = vset.pattern.permute.xlu0 0
    %49 = vperm.xlu0 %48, %v30
    %v50 = vpop.permute.xlu0 %49
    %51 = vset.pattern.permute.xlu0 0
    %52 = vperm.xlu0 %51, %v31
    %v53 = vpop.permute.xlu0 %52
    %54 = vset.pattern.permute.xlu0 0
    %55 = vperm.xlu0 %54, %v32
    %v56 = vpop.permute.xlu0 %55
    %57 = vset.pattern.permute.xlu0 0
    %58 = vperm.xlu0 %57, %v33
    %v59 = vpop.permute.xlu0 %58
    %vm60 = vcmp.eq.s32.totalorder %v35, %v38
    %vm61 = vcmp.eq.s32.totalorder %v35, %v41
    %vm62 = vcmp.eq.s32.totalorder %v35, %v44
    %vm63 = vcmp.eq.s32.totalorder %v35, %v47
    %vm64 = vcmp.eq.s32.totalorder %v35, %v50
    %vm65 = vcmp.eq.s32.totalorder %v35, %v53
    %vm66 = vcmp.eq.s32.totalorder %v35, %v56
    %vm67 = vcmp.eq.s32.totalorder %v35, %v59
    %v68 = vsel %vm60, 1, 0
    %v69 = vsel %vm61, 1, 0
    %v70 = vsel %vm62, 1, 0
    %v71 = vsel %vm63, 1, 0
    %v72 = vsel %vm64, 1, 0
    %v73 = vsel %vm65, 1, 0
    %v74 = vsel %vm66, 1, 0
    %v75 = vsel %vm67, 1, 0
    %v76 = vcvt.s32.f32 %v68
    %v77 = vcvt.s32.f32 %v69
    %v78 = vcvt.s32.f32 %v70
    %v79 = vcvt.s32.f32 %v71
    %v80 = vcvt.s32.f32 %v72
    %v81 = vcvt.s32.f32 %v73
    %v82 = vcvt.s32.f32 %v74
    %v83 = vcvt.s32.f32 %v75
    %v84 = vld [vmem:[#allocation2] sm:$0xff]
    %v85 = vld [vmem:[#allocation2 + $0x8] sm:$0xff]
    %v86 = vld [vmem:[#allocation2 + $0x10] sm:$0xff]
    %v87 = vld [vmem:[#allocation2 + $0x18] sm:$0xff]
    %v88 = vld [vmem:[#allocation2 + $0x20] sm:$0xff]
    %v89 = vld [vmem:[#allocation2 + $0x28] sm:$0xff]
    %v90 = vld [vmem:[#allocation2 + $0x30] sm:$0xff]
    %v91 = vld [vmem:[#allocation2 + $0x38] sm:$0xff]
    %v92 = vld [vmem:[#allocation2 + $0x40] sm:$0xff]
    %v93 = vld [vmem:[#allocation2 + $0x48] sm:$0xff]
    %v94 = vld [vmem:[#allocation2 + $0x50] sm:$0xff]
    %v95 = vld [vmem:[#allocation2 + $0x58] sm:$0xff]
    %v96 = vld [vmem:[#allocation2 + $0x60] sm:$0xff]
    %v97 = vld [vmem:[#allocation2 + $0x68] sm:$0xff]
    %v98 = vld [vmem:[#allocation2 + $0x70] sm:$0xff]
    %v99 = vld [vmem:[#allocation2 + $0x78] sm:$0xff]
    %100 = vmatprep.subr.mxu0 0.0
    %v101 = vand.u32 %v84, 4294901760
    %102 = vmatpush1.msra.mxu0 %v101
    %103 = vmatprep.subr.mxu0 0.0
    %v104 = vand.u32 %v85, 4294901760
    %105 = vmatpush1.msra.mxu0 %v104
    %106 = vmatprep.subr.mxu0 0.0
    %v107 = vand.u32 %v86, 4294901760
    %108 = vmatpush1.msra.mxu0 %v107
    %109 = vmatprep.subr.mxu0 0.0
    %v110 = vand.u32 %v87, 4294901760
    %111 = vmatpush1.msra.mxu0 %v110
    %112 = vmatprep.subr.mxu0 0.0
    %v113 = vand.u32 %v88, 4294901760
    %114 = vmatpush1.msra.mxu0 %v113
    %115 = vmatprep.subr.mxu0 0.0
    %v116 = vand.u32 %v89, 4294901760
    %117 = vmatpush1.msra.mxu0 %v116
    %118 = vmatprep.subr.mxu0 0.0
    %v119 = vand.u32 %v90, 4294901760
    %120 = vmatpush1.msra.mxu0 %v119
    %121 = vmatprep.subr.mxu0 0.0
    %v122 = vand.u32 %v91, 4294901760
    %123 = vmatpush1.msra.mxu0 %v122
    %124 = vmatprep.subr.mxu0 0.0
    %v125 = vand.u32 %v92, 4294901760
    %126 = vmatpush1.msra.mxu0 %v125
    %127 = vmatprep.subr.mxu0 0.0
    %v128 = vand.u32 %v93, 4294901760
    %129 = vmatpush1.msra.mxu0 %v128
    %130 = vmatprep.subr.mxu0 0.0
    %v131 = vand.u32 %v94, 4294901760
    %132 = vmatpush1.msra.mxu0 %v131
    %133 = vmatprep.subr.mxu0 0.0
    %v134 = vand.u32 %v95, 4294901760
    %135 = vmatpush1.msra.mxu0 %v134
    %136 = vmatprep.subr.mxu0 0.0
    %v137 = vand.u32 %v96, 4294901760
    %138 = vmatpush1.msra.mxu0 %v137
    %139 = vmatprep.subr.mxu0 0.0
    %v140 = vand.u32 %v97, 4294901760
    %141 = vmatpush1.msra.mxu0 %v140
    %142 = vmatprep.subr.mxu0 0.0
    %v143 = vand.u32 %v98, 4294901760
    %144 = vmatpush1.msra.mxu0 %v143
    %145 = vmatprep.subr.mxu0 0.0
    %v146 = vand.u32 %v99, 4294901760
    %147 = vmatpush1.msra.mxu0 %v146
    %148 = vmatprep.subr.mxu0 0.0
    %149 = vmatpush1.msra.mxu0 0.0
    %150 = vmatprep.subr.mxu0 0.0
    %151 = vmatpush1.msra.mxu0 0.0
    %152 = vmatprep.subr.mxu0 0.0
    %153 = vmatpush1.msra.mxu0 0.0
    %154 = vmatprep.subr.mxu0 0.0
    %155 = vmatpush1.msra.mxu0 0.0
    %156 = vmatprep.subr.mxu0 0.0
    %157 = vmatpush1.msra.mxu0 0.0
    %158 = vmatprep.subr.mxu0 0.0
    %159 = vmatpush1.msra.mxu0 0.0
    %160 = vmatprep.subr.mxu0 0.0
    %161 = vmatpush1.msra.mxu0 0.0
    %162 = vmatprep.subr.mxu0 0.0
    %163 = vmatpush1.msra.mxu0 0.0
    %164 = vmatprep.subr.mxu0 0.0
    %165 = vmatpush1.msra.mxu0 0.0
    %166 = vmatprep.subr.mxu0 0.0
    %167 = vmatpush1.msra.mxu0 0.0
    %168 = vmatprep.subr.mxu0 0.0
    %169 = vmatpush1.msra.mxu0 0.0
    %170 = vmatprep.subr.mxu0 0.0
    %171 = vmatpush1.msra.mxu0 0.0
    %172 = vmatprep.subr.mxu0 0.0
    %173 = vmatpush1.msra.mxu0 0.0
    %174 = vmatprep.subr.mxu0 0.0
    %175 = vmatpush1.msra.mxu0 0.0
    %176 = vmatprep.subr.mxu0 0.0
    %177 = vmatpush1.msra.mxu0 0.0
    %178 = vmatprep.subr.mxu0 0.0
    %179 = vmatpush1.msra.mxu0 0.0
    %180 = vmatprep.mubr.f32.mxu0 0.0
    %v181 = vand.u32 %v76, 4294901760
    %v182 = vsub.f32 %v76, %v181
    %v183 = vand.u32 %v182, 4294901760
    %v184 = vsub.f32 %v182, %v183
    %v185 = vand.u32 %v184, 4294901760
    %186 = vmatmul.mubr.f32.gmra.mrb[0].mxu0 %v185
    %v187 = vpop.f32.mrb[0].mxu0
    %v188 = vadd.f32 0.0, %v187
    %v189 = vpop.f32.mrb[0].mxu0
    %190 = vmatprep.mubr.f32.mxu0 0.0
    %v191 = vand.u32 %v77, 4294901760
    %v192 = vsub.f32 %v77, %v191
    %v193 = vand.u32 %v192, 4294901760
    %v194 = vsub.f32 %v192, %v193
    %v195 = vand.u32 %v194, 4294901760
    %196 = vmatmul.mubr.f32.gmra.mrb[0].mxu0 %v195
    %v197 = vpop.f32.mrb[0].mxu0
    %v198 = vadd.f32 0.0, %v197
    %v199 = vpop.f32.mrb[0].mxu0
    %200 = vmatprep.mubr.f32.mxu0 0.0
    %v201 = vand.u32 %v78, 4294901760
    %v202 = vsub.f32 %v78, %v201
    %v203 = vand.u32 %v202, 4294901760
    %v204 = vsub.f32 %v202, %v203
    %v205 = vand.u32 %v204, 4294901760
    %206 = vmatmul.mubr.f32.gmra.mrb[0].mxu0 %v205
    %v207 = vpop.f32.mrb[0].mxu0
    %v208 = vadd.f32 0.0, %v207
    %v209 = vpop.f32.mrb[0].mxu0
    %210 = vmatprep.mubr.f32.mxu0 0.0
    %v211 = vand.u32 %v79, 4294901760
    %v212 = vsub.f32 %v79, %v211
    %v213 = vand.u32 %v212, 4294901760
    %v214 = vsub.f32 %v212, %v213
    %v215 = vand.u32 %v214, 4294901760
    %216 = vmatmul.mubr.f32.gmra.mrb[0].mxu0 %v215
    %v217 = vpop.f32.mrb[0].mxu0
    %v218 = vadd.f32 0.0, %v217
    %v219 = vpop.f32.mrb[0].mxu0
    %220 = vmatprep.mubr.f32.mxu0 0.0
    %v221 = vand.u32 %v80, 4294901760
    %v222 = vsub.f32 %v80, %v221
    %v223 = vand.u32 %v222, 4294901760
    %v224 = vsub.f32 %v222, %v223
    %v225 = vand.u32 %v224, 4294901760
    %226 = vmatmul.mubr.f32.gmra.mrb[0].mxu0 %v225
    %v227 = vpop.f32.mrb[0].mxu0
    %v228 = vadd.f32 0.0, %v227
    %v229 = vpop.f32.mrb[0].mxu0
    %230 = vmatprep.mubr.f32.mxu0 0.0
    %v231 = vand.u32 %v81, 4294901760
    %v232 = vsub.f32 %v81, %v231
    %v233 = vand.u32 %v232, 4294901760
    %v234 = vsub.f32 %v232, %v233
    %v235 = vand.u32 %v234, 4294901760
    %236 = vmatmul.mubr.f32.gmra.mrb[0].mxu0 %v235
    %v237 = vpop.f32.mrb[0].mxu0
    %v238 = vadd.f32 0.0, %v237
    %v239 = vpop.f32.mrb[0].mxu0
    %240 = vmatprep.mubr.f32.mxu0 0.0
    %v241 = vand.u32 %v82, 4294901760
    %v242 = vsub.f32 %v82, %v241
    %v243 = vand.u32 %v242, 4294901760
    %v244 = vsub.f32 %v242, %v243
    %v245 = vand.u32 %v244, 4294901760
    %246 = vmatmul.mubr.f32.gmra.mrb[0].mxu0 %v245
    %v247 = vpop.f32.mrb[0].mxu0
    %v248 = vadd.f32 0.0, %v247
    %v249 = vpop.f32.mrb[0].mxu0
    %250 = vmatprep.mubr.f32.mxu0 0.0
    %v251 = vand.u32 %v83, 4294901760
    %v252 = vsub.f32 %v83, %v251
    %v253 = vand.u32 %v252, 4294901760
    %v254 = vsub.f32 %v252, %v253
    %v255 = vand.u32 %v254, 4294901760
    %256 = vmatmul.mubr.f32.gmra.mrb[0].mxu0 %v255
    %v257 = vpop.f32.mrb[0].mxu0
    %v258 = vadd.f32 0.0, %v257
    %v259 = vpop.f32.mrb[0].mxu0
    %260 = vdwg.mxu0
    %261 = vmatprep.subr.mxu0 0.0
    %v262 = vand.u32 %v84, 4294901760
    %v263 = vsub.f32 %v84, %v262
    %v264 = vand.u32 %v263, 4294901760
    %v265 = vsub.f32 %v263, %v264
    %v266 = vand.u32 %v265, 4294901760
    %267 = vmatpush1.msra.mxu0 %v266
    %268 = vmatprep.subr.mxu0 0.0
    %v269 = vand.u32 %v85, 4294901760
    %v270 = vsub.f32 %v85, %v269
    %v271 = vand.u32 %v270, 4294901760
    %v272 = vsub.f32 %v270, %v271
    %v273 = vand.u32 %v272, 4294901760
    %274 = vmatpush1.msra.mxu0 %v273
    %275 = vmatprep.subr.mxu0 0.0
    %v276 = vand.u32 %v86, 4294901760
    %v277 = vsub.f32 %v86, %v276
    %v278 = vand.u32 %v277, 4294901760
    %v279 = vsub.f32 %v277, %v278
    %v280 = vand.u32 %v279, 4294901760
    %281 = vmatpush1.msra.mxu0 %v280
    %282 = vmatprep.subr.mxu0 0.0
    %v283 = vand.u32 %v87, 4294901760
    %v284 = vsub.f32 %v87, %v283
    %v285 = vand.u32 %v284, 4294901760
    %v286 = vsub.f32 %v284, %v285
    %v287 = vand.u32 %v286, 4294901760
    %288 = vmatpush1.msra.mxu0 %v287
    %289 = vmatprep.subr.mxu0 0.0
    %v290 = vand.u32 %v88, 4294901760
    %v291 = vsub.f32 %v88, %v290
    %v292 = vand.u32 %v291, 4294901760
    %v293 = vsub.f32 %v291, %v292
    %v294 = vand.u32 %v293, 4294901760
    %295 = vmatpush1.msra.mxu0 %v294
    %296 = vmatprep.subr.mxu0 0.0
    %v297 = vand.u32 %v89, 4294901760
    %v298 = vsub.f32 %v89, %v297
    %v299 = vand.u32 %v298, 4294901760
    %v300 = vsub.f32 %v298, %v299
    %v301 = vand.u32 %v300, 4294901760
    %302 = vmatpush1.msra.mxu0 %v301
    %303 = vmatprep.subr.mxu0 0.0
    %v304 = vand.u32 %v90, 4294901760
    %v305 = vsub.f32 %v90, %v304
    %v306 = vand.u32 %v305, 4294901760
    %v307 = vsub.f32 %v305, %v306
    %v308 = vand.u32 %v307, 4294901760
    %309 = vmatpush1.msra.mxu0 %v308
    %310 = vmatprep.subr.mxu0 0.0
    %v311 = vand.u32 %v91, 4294901760
    %v312 = vsub.f32 %v91, %v311
    %v313 = vand.u32 %v312, 4294901760
    %v314 = vsub.f32 %v312, %v313
    %v315 = vand.u32 %v314, 4294901760
    %316 = vmatpush1.msra.mxu0 %v315
    %317 = vmatprep.subr.mxu0 0.0
    %v318 = vand.u32 %v92, 4294901760
    %v319 = vsub.f32 %v92, %v318
    %v320 = vand.u32 %v319, 4294901760
    %v321 = vsub.f32 %v319, %v320
    %v322 = vand.u32 %v321, 4294901760
    %323 = vmatpush1.msra.mxu0 %v322
    %324 = vmatprep.subr.mxu0 0.0
    %v325 = vand.u32 %v93, 4294901760
    %v326 = vsub.f32 %v93, %v325
    %v327 = vand.u32 %v326, 4294901760
    %v328 = vsub.f32 %v326, %v327
    %v329 = vand.u32 %v328, 4294901760
    %330 = vmatpush1.msra.mxu0 %v329
    %331 = vmatprep.subr.mxu0 0.0
    %v332 = vand.u32 %v94, 4294901760
    %v333 = vsub.f32 %v94, %v332
    %v334 = vand.u32 %v333, 4294901760
    %v335 = vsub.f32 %v333, %v334
    %v336 = vand.u32 %v335, 4294901760
    %337 = vmatpush1.msra.mxu0 %v336
    %338 = vmatprep.subr.mxu0 0.0
    %v339 = vand.u32 %v95, 4294901760
    %v340 = vsub.f32 %v95, %v339
    %v341 = vand.u32 %v340, 4294901760
    %v342 = vsub.f32 %v340, %v341
    %v343 = vand.u32 %v342, 4294901760
    %344 = vmatpush1.msra.mxu0 %v343
    %345 = vmatprep.subr.mxu0 0.0
    %v346 = vand.u32 %v96, 4294901760
    %v347 = vsub.f32 %v96, %v346
    %v348 = vand.u32 %v347, 4294901760
    %v349 = vsub.f32 %v347, %v348
    %v350 = vand.u32 %v349, 4294901760
    %351 = vmatpush1.msra.mxu0 %v350
    %352 = vmatprep.subr.mxu0 0.0
    %v353 = vand.u32 %v97, 4294901760
    %v354 = vsub.f32 %v97, %v353
    %v355 = vand.u32 %v354, 4294901760
    %v356 = vsub.f32 %v354, %v355
    %v357 = vand.u32 %v356, 4294901760
    %358 = vmatpush1.msra.mxu0 %v357
    %359 = vmatprep.subr.mxu0 0.0
    %v360 = vand.u32 %v98, 4294901760
    %v361 = vsub.f32 %v98, %v360
    %v362 = vand.u32 %v361, 4294901760
    %v363 = vsub.f32 %v361, %v362
    %v364 = vand.u32 %v363, 4294901760
    %365 = vmatpush1.msra.mxu0 %v364
    %366 = vmatprep.subr.mxu0 0.0
    %v367 = vand.u32 %v99, 4294901760
    %v368 = vsub.f32 %v99, %v367
    %v369 = vand.u32 %v368, 4294901760
    %v370 = vsub.f32 %v368, %v369
    %v371 = vand.u32 %v370, 4294901760
    %372 = vmatpush1.msra.mxu0 %v371
    %373 = vmatprep.subr.mxu0 0.0
    %374 = vmatpush1.msra.mxu0 0.0
    %375 = vmatprep.subr.mxu0 0.0
    %376 = vmatpush1.msra.mxu0 0.0
    %377 = vmatprep.subr.mxu0 0.0
    %378 = vmatpush1.msra.mxu0 0.0
    %379 = vmatprep.subr.mxu0 0.0
    %380 = vmatpush1.msra.mxu0 0.0
    %381 = vmatprep.subr.mxu0 0.0
    %382 = vmatpush1.msra.mxu0 0.0
    %383 = vmatprep.subr.mxu0 0.0
    %384 = vmatpush1.msra.mxu0 0.0
    %385 = vmatprep.subr.mxu0 0.0
    %386 = vmatpush1.msra.mxu0 0.0
    %387 = vmatprep.subr.mxu0 0.0
    %388 = vmatpush1.msra.mxu0 0.0
    %389 = vmatprep.subr.mxu0 0.0
    %390 = vmatpush1.msra.mxu0 0.0
    %391 = vmatprep.subr.mxu0 0.0
    %392 = vmatpush1.msra.mxu0 0.0
    %393 = vmatprep.subr.mxu0 0.0
    %394 = vmatpush1.msra.mxu0 0.0
    %395 = vmatprep.subr.mxu0 0.0
    %396 = vmatpush1.msra.mxu0 0.0
    %397 = vmatprep.subr.mxu0 0.0
    %398 = vmatpush1.msra.mxu0 0.0
    %399 = vmatprep.subr.mxu0 0.0
    %400 = vmatpush1.msra.mxu0 0.0
    %401 = vmatprep.subr.mxu0 0.0
    %402 = vmatpush1.msra.mxu0 0.0
    %403 = vmatprep.subr.mxu0 0.0
    %404 = vmatpush1.msra.mxu0 0.0
    %405 = vmatprep.mubr.f32.mxu0 0.0
    %v406 = vand.u32 %v76, 4294901760
    %407 = vmatmul.mubr.f32.gmra.mrb[0].mxu0 %v406
    %v408 = vpop.f32.mrb[0].mxu0
    %v409 = vadd.f32 %v188, %v408
    %v410 = vpop.f32.mrb[0].mxu0
    %411 = vmatprep.mubr.f32.mxu0 0.0
    %v412 = vand.u32 %v77, 4294901760
    %413 = vmatmul.mubr.f32.gmra.mrb[0].mxu0 %v412
    %v414 = vpop.f32.mrb[0].mxu0
    %v415 = vadd.f32 %v198, %v414
    %v416 = vpop.f32.mrb[0].mxu0
    %417 = vmatprep.mubr.f32.mxu0 0.0
    %v418 = vand.u32 %v78, 4294901760
    %419 = vmatmul.mubr.f32.gmra.mrb[0].mxu0 %v418
    %v420 = vpop.f32.mrb[0].mxu0
    %v421 = vadd.f32 %v208, %v420
    %v422 = vpop.f32.mrb[0].mxu0
    %423 = vmatprep.mubr.f32.mxu0 0.0
    %v424 = vand.u32 %v79, 4294901760
    %425 = vmatmul.mubr.f32.gmra.mrb[0].mxu0 %v424
    %v426 = vpop.f32.mrb[0].mxu0
    %v427 = vadd.f32 %v218, %v426
    %v428 = vpop.f32.mrb[0].mxu0
    %429 = vmatprep.mubr.f32.mxu0 0.0
    %v430 = vand.u32 %v80, 4294901760
    %431 = vmatmul.mubr.f32.gmra.mrb[0].mxu0 %v430
    %v432 = vpop.f32.mrb[0].mxu0
    %v433 = vadd.f32 %v228, %v432
    %v434 = vpop.f32.mrb[0].mxu0
    %435 = vmatprep.mubr.f32.mxu0 0.0
    %v436 = vand.u32 %v81, 4294901760
    %437 = vmatmul.mubr.f32.gmra.mrb[0].mxu0 %v436
    %v438 = vpop.f32.mrb[0].mxu0
    %v439 = vadd.f32 %v238, %v438
    %v440 = vpop.f32.mrb[0].mxu0
    %441 = vmatprep.mubr.f32.mxu0 0.0
    %v442 = vand.u32 %v82, 4294901760
    %443 = vmatmul.mubr.f32.gmra.mrb[0].mxu0 %v442
    %v444 = vpop.f32.mrb[0].mxu0
    %v445 = vadd.f32 %v248, %v444
    %v446 = vpop.f32.mrb[0].mxu0
    %447 = vmatprep.mubr.f32.mxu0 0.0
    %v448 = vand.u32 %v83, 4294901760
    %449 = vmatmul.mubr.f32.gmra.mrb[0].mxu0 %v448
    %v450 = vpop.f32.mrb[0].mxu0
    %v451 = vadd.f32 %v258, %v450
    %v452 = vpop.f32.mrb[0].mxu0
    %453 = vdwg.mxu0
    %454 = vmatprep.subr.mxu0 0.0
    %v455 = vand.u32 %v84, 4294901760
    %v456 = vsub.f32 %v84, %v455
    %457 = vmatpush1.msra.mxu0 %v456
    %458 = vmatprep.subr.mxu0 0.0
    %v459 = vand.u32 %v85, 4294901760
    %v460 = vsub.f32 %v85, %v459
    %461 = vmatpush1.msra.mxu0 %v460
    %462 = vmatprep.subr.mxu0 0.0
    %v463 = vand.u32 %v86, 4294901760
    %v464 = vsub.f32 %v86, %v463
    %465 = vmatpush1.msra.mxu0 %v464
    %466 = vmatprep.subr.mxu0 0.0
    %v467 = vand.u32 %v87, 4294901760
    %v468 = vsub.f32 %v87, %v467
    %469 = vmatpush1.msra.mxu0 %v468
    %470 = vmatprep.subr.mxu0 0.0
    %v471 = vand.u32 %v88, 4294901760
    %v472 = vsub.f32 %v88, %v471
    %473 = vmatpush1.msra.mxu0 %v472
    %474 = vmatprep.subr.mxu0 0.0
    %v475 = vand.u32 %v89, 4294901760
    %v476 = vsub.f32 %v89, %v475
    %477 = vmatpush1.msra.mxu0 %v476
    %478 = vmatprep.subr.mxu0 0.0
    %v479 = vand.u32 %v90, 4294901760
    %v480 = vsub.f32 %v90, %v479
    %481 = vmatpush1.msra.mxu0 %v480
    %482 = vmatprep.subr.mxu0 0.0
    %v483 = vand.u32 %v91, 4294901760
    %v484 = vsub.f32 %v91, %v483
    %485 = vmatpush1.msra.mxu0 %v484
    %486 = vmatprep.subr.mxu0 0.0
    %v487 = vand.u32 %v92, 4294901760
    %v488 = vsub.f32 %v92, %v487
    %489 = vmatpush1.msra.mxu0 %v488
    %490 = vmatprep.subr.mxu0 0.0
    %v491 = vand.u32 %v93, 4294901760
    %v492 = vsub.f32 %v93, %v491
    %493 = vmatpush1.msra.mxu0 %v492
    %494 = vmatprep.subr.mxu0 0.0
    %v495 = vand.u32 %v94, 4294901760
    %v496 = vsub.f32 %v94, %v495
    %497 = vmatpush1.msra.mxu0 %v496
    %498 = vmatprep.subr.mxu0 0.0
    %v499 = vand.u32 %v95, 4294901760
    %v500 = vsub.f32 %v95, %v499
    %501 = vmatpush1.msra.mxu0 %v500
    %502 = vmatprep.subr.mxu0 0.0
    %v503 = vand.u32 %v96, 4294901760
    %v504 = vsub.f32 %v96, %v503
    %505 = vmatpush1.msra.mxu0 %v504
    %506 = vmatprep.subr.mxu0 0.0
    %v507 = vand.u32 %v97, 4294901760
    %v508 = vsub.f32 %v97, %v507
    %509 = vmatpush1.msra.mxu0 %v508
    %510 = vmatprep.subr.mxu0 0.0
    %v511 = vand.u32 %v98, 4294901760
    %v512 = vsub.f32 %v98, %v511
    %513 = vmatpush1.msra.mxu0 %v512
    %514 = vmatprep.subr.mxu0 0.0
    %v515 = vand.u32 %v99, 4294901760
    %v516 = vsub.f32 %v99, %v515
    %517 = vmatpush1.msra.mxu0 %v516
    %518 = vmatprep.subr.mxu0 0.0
    %519 = vmatpush1.msra.mxu0 0.0
    %520 = vmatprep.subr.mxu0 0.0
    %521 = vmatpush1.msra.mxu0 0.0
    %522 = vmatprep.subr.mxu0 0.0
    %523 = vmatpush1.msra.mxu0 0.0
    %524 = vmatprep.subr.mxu0 0.0
    %525 = vmatpush1.msra.mxu0 0.0
    %526 = vmatprep.subr.mxu0 0.0
    %527 = vmatpush1.msra.mxu0 0.0
    %528 = vmatprep.subr.mxu0 0.0
    %529 = vmatpush1.msra.mxu0 0.0
    %530 = vmatprep.subr.mxu0 0.0
    %531 = vmatpush1.msra.mxu0 0.0
    %532 = vmatprep.subr.mxu0 0.0
    %533 = vmatpush1.msra.mxu0 0.0
    %534 = vmatprep.subr.mxu0 0.0
    %535 = vmatpush1.msra.mxu0 0.0
    %536 = vmatprep.subr.mxu0 0.0
    %537 = vmatpush1.msra.mxu0 0.0
    %538 = vmatprep.subr.mxu0 0.0
    %539 = vmatpush1.msra.mxu0 0.0
    %540 = vmatprep.subr.mxu0 0.0
    %541 = vmatpush1.msra.mxu0 0.0
    %542 = vmatprep.subr.mxu0 0.0
    %543 = vmatpush1.msra.mxu0 0.0
    %544 = vmatprep.subr.mxu0 0.0
    %545 = vmatpush1.msra.mxu0 0.0
    %546 = vmatprep.subr.mxu0 0.0
    %547 = vmatpush1.msra.mxu0 0.0
    %548 = vmatprep.subr.mxu0 0.0
    %549 = vmatpush1.msra.mxu0 0.0
    %550 = vmatprep.mubr.f32.mxu0 0.0
    %v551 = vand.u32 %v76, 4294901760
    %v552 = vsub.f32 %v76, %v551
    %553 = vmatmul.mubr.f32.gmra.mrb[0].mxu0 %v552
    %v554 = vpop.f32.mrb[0].mxu0
    %v555 = vadd.f32 %v409, %v554
    %v556 = vpop.f32.mrb[0].mxu0
    %557 = vmatprep.mubr.f32.mxu0 0.0
    %v558 = vand.u32 %v77, 4294901760
    %v559 = vsub.f32 %v77, %v558
    %560 = vmatmul.mubr.f32.gmra.mrb[0].mxu0 %v559
    %v561 = vpop.f32.mrb[0].mxu0
    %v562 = vadd.f32 %v415, %v561
    %v563 = vpop.f32.mrb[0].mxu0
    %564 = vmatprep.mubr.f32.mxu0 0.0
    %v565 = vand.u32 %v78, 4294901760
    %v566 = vsub.f32 %v78, %v565
    %567 = vmatmul.mubr.f32.gmra.mrb[0].mxu0 %v566
    %v568 = vpop.f32.mrb[0].mxu0
    %v569 = vadd.f32 %v421, %v568
    %v570 = vpop.f32.mrb[0].mxu0
    %571 = vmatprep.mubr.f32.mxu0 0.0
    %v572 = vand.u32 %v79, 4294901760
    %v573 = vsub.f32 %v79, %v572
    %574 = vmatmul.mubr.f32.gmra.mrb[0].mxu0 %v573
    %v575 = vpop.f32.mrb[0].mxu0
    %v576 = vadd.f32 %v427, %v575
    %v577 = vpop.f32.mrb[0].mxu0
    %578 = vmatprep.mubr.f32.mxu0 0.0
    %v579 = vand.u32 %v80, 4294901760
    %v580 = vsub.f32 %v80, %v579
    %581 = vmatmul.mubr.f32.gmra.mrb[0].mxu0 %v580
    %v582 = vpop.f32.mrb[0].mxu0
    %v583 = vadd.f32 %v433, %v582
    %v584 = vpop.f32.mrb[0].mxu0
    %585 = vmatprep.mubr.f32.mxu0 0.0
    %v586 = vand.u32 %v81, 4294901760
    %v587 = vsub.f32 %v81, %v586
    %588 = vmatmul.mubr.f32.gmra.mrb[0].mxu0 %v587
    %v589 = vpop.f32.mrb[0].mxu0
    %v590 = vadd.f32 %v439, %v589
    %v591 = vpop.f32.mrb[0].mxu0
    %592 = vmatprep.mubr.f32.mxu0 0.0
    %v593 = vand.u32 %v82, 4294901760
    %v594 = vsub.f32 %v82, %v593
    %595 = vmatmul.mubr.f32.gmra.mrb[0].mxu0 %v594
    %v596 = vpop.f32.mrb[0].mxu0
    %v597 = vadd.f32 %v445, %v596
    %v598 = vpop.f32.mrb[0].mxu0
    %599 = vmatprep.mubr.f32.mxu0 0.0
    %v600 = vand.u32 %v83, 4294901760
    %v601 = vsub.f32 %v83, %v600
    %602 = vmatmul.mubr.f32.gmra.mrb[0].mxu0 %v601
    %v603 = vpop.f32.mrb[0].mxu0
    %v604 = vadd.f32 %v451, %v603
    %v605 = vpop.f32.mrb[0].mxu0
    %606 = vdwg.mxu0
    %607 = vmatprep.subr.mxu0 0.0
    %v608 = vand.u32 %v84, 4294901760
    %609 = vmatpush1.msra.mxu0 %v608
    %610 = vmatprep.subr.mxu0 0.0
    %v611 = vand.u32 %v85, 4294901760
    %612 = vmatpush1.msra.mxu0 %v611
    %613 = vmatprep.subr.mxu0 0.0
    %v614 = vand.u32 %v86, 4294901760
    %615 = vmatpush1.msra.mxu0 %v614
    %616 = vmatprep.subr.mxu0 0.0
    %v617 = vand.u32 %v87, 4294901760
    %618 = vmatpush1.msra.mxu0 %v617
    %619 = vmatprep.subr.mxu0 0.0
    %v620 = vand.u32 %v88, 4294901760
    %621 = vmatpush1.msra.mxu0 %v620
    %622 = vmatprep.subr.mxu0 0.0
    %v623 = vand.u32 %v89, 4294901760
    %624 = vmatpush1.msra.mxu0 %v623
    %625 = vmatprep.subr.mxu0 0.0
    %v626 = vand.u32 %v90, 4294901760
    %627 = vmatpush1.msra.mxu0 %v626
    %628 = vmatprep.subr.mxu0 0.0
    %v629 = vand.u32 %v91, 4294901760
    %630 = vmatpush1.msra.mxu0 %v629
    %631 = vmatprep.subr.mxu0 0.0
    %v632 = vand.u32 %v92, 4294901760
    %633 = vmatpush1.msra.mxu0 %v632
    %634 = vmatprep.subr.mxu0 0.0
    %v635 = vand.u32 %v93, 4294901760
    %636 = vmatpush1.msra.mxu0 %v635
    %637 = vmatprep.subr.mxu0 0.0
    %v638 = vand.u32 %v94, 4294901760
    %639 = vmatpush1.msra.mxu0 %v638
    %640 = vmatprep.subr.mxu0 0.0
    %v641 = vand.u32 %v95, 4294901760
    %642 = vmatpush1.msra.mxu0 %v641
    %643 = vmatprep.subr.mxu0 0.0
    %v644 = vand.u32 %v96, 4294901760
    %645 = vmatpush1.msra.mxu0 %v644
    %646 = vmatprep.subr.mxu0 0.0
    %v647 = vand.u32 %v97, 4294901760
    %648 = vmatpush1.msra.mxu0 %v647
    %649 = vmatprep.subr.mxu0 0.0
    %v650 = vand.u32 %v98, 4294901760
    %651 = vmatpush1.msra.mxu0 %v650
    %652 = vmatprep.subr.mxu0 0.0
    %v653 = vand.u32 %v99, 4294901760
    %654 = vmatpush1.msra.mxu0 %v653
    %655 = vmatprep.subr.mxu0 0.0
    %656 = vmatpush1.msra.mxu0 0.0
    %657 = vmatprep.subr.mxu0 0.0
    %658 = vmatpush1.msra.mxu0 0.0
    %659 = vmatprep.subr.mxu0 0.0
    %660 = vmatpush1.msra.mxu0 0.0
    %661 = vmatprep.subr.mxu0 0.0
    %662 = vmatpush1.msra.mxu0 0.0
    %663 = vmatprep.subr.mxu0 0.0
    %664 = vmatpush1.msra.mxu0 0.0
    %665 = vmatprep.subr.mxu0 0.0
    %666 = vmatpush1.msra.mxu0 0.0
    %667 = vmatprep.subr.mxu0 0.0
    %668 = vmatpush1.msra.mxu0 0.0
    %669 = vmatprep.subr.mxu0 0.0
    %670 = vmatpush1.msra.mxu0 0.0
    %671 = vmatprep.subr.mxu0 0.0
    %672 = vmatpush1.msra.mxu0 0.0
    %673 = vmatprep.subr.mxu0 0.0
    %674 = vmatpush1.msra.mxu0 0.0
    %675 = vmatprep.subr.mxu0 0.0
    %676 = vmatpush1.msra.mxu0 0.0
    %677 = vmatprep.subr.mxu0 0.0
    %678 = vmatpush1.msra.mxu0 0.0
    %679 = vmatprep.subr.mxu0 0.0
    %680 = vmatpush1.msra.mxu0 0.0
    %681 = vmatprep.subr.mxu0 0.0
    %682 = vmatpush1.msra.mxu0 0.0
    %683 = vmatprep.subr.mxu0 0.0
    %684 = vmatpush1.msra.mxu0 0.0
    %685 = vmatprep.subr.mxu0 0.0
    %686 = vmatpush1.msra.mxu0 0.0
    %687 = vmatprep.mubr.f32.mxu0 0.0
    %v688 = vand.u32 %v76, 4294901760
    %v689 = vsub.f32 %v76, %v688
    %v690 = vand.u32 %v689, 4294901760
    %691 = vmatmul.mubr.f32.gmra.mrb[0].mxu0 %v690
    %v692 = vpop.f32.mrb[0].mxu0
    %v693 = vadd.f32 %v555, %v692
    %v694 = vpop.f32.mrb[0].mxu0
    %695 = vmatprep.mubr.f32.mxu0 0.0
    %v696 = vand.u32 %v77, 4294901760
    %v697 = vsub.f32 %v77, %v696
    %v698 = vand.u32 %v697, 4294901760
    %699 = vmatmul.mubr.f32.gmra.mrb[0].mxu0 %v698
    %v700 = vpop.f32.mrb[0].mxu0
    %v701 = vadd.f32 %v562, %v700
    %v702 = vpop.f32.mrb[0].mxu0
    %703 = vmatprep.mubr.f32.mxu0 0.0
    %v704 = vand.u32 %v78, 4294901760
    %v705 = vsub.f32 %v78, %v704
    %v706 = vand.u32 %v705, 4294901760
    %707 = vmatmul.mubr.f32.gmra.mrb[0].mxu0 %v706
    %v708 = vpop.f32.mrb[0].mxu0
    %v709 = vadd.f32 %v569, %v708
    %v710 = vpop.f32.mrb[0].mxu0
    %711 = vmatprep.mubr.f32.mxu0 0.0
    %v712 = vand.u32 %v79, 4294901760
    %v713 = vsub.f32 %v79, %v712
    %v714 = vand.u32 %v713, 4294901760
    %715 = vmatmul.mubr.f32.gmra.mrb[0].mxu0 %v714
    %v716 = vpop.f32.mrb[0].mxu0
    %v717 = vadd.f32 %v576, %v716
    %v718 = vpop.f32.mrb[0].mxu0
    %719 = vmatprep.mubr.f32.mxu0 0.0
    %v720 = vand.u32 %v80, 4294901760
    %v721 = vsub.f32 %v80, %v720
    %v722 = vand.u32 %v721, 4294901760
    %723 = vmatmul.mubr.f32.gmra.mrb[0].mxu0 %v722
    %v724 = vpop.f32.mrb[0].mxu0
    %v725 = vadd.f32 %v583, %v724
    %v726 = vpop.f32.mrb[0].mxu0
    %727 = vmatprep.mubr.f32.mxu0 0.0
    %v728 = vand.u32 %v81, 4294901760
    %v729 = vsub.f32 %v81, %v728
    %v730 = vand.u32 %v729, 4294901760
    %731 = vmatmul.mubr.f32.gmra.mrb[0].mxu0 %v730
    %v732 = vpop.f32.mrb[0].mxu0
    %v733 = vadd.f32 %v590, %v732
    %v734 = vpop.f32.mrb[0].mxu0
    %735 = vmatprep.mubr.f32.mxu0 0.0
    %v736 = vand.u32 %v82, 4294901760
    %v737 = vsub.f32 %v82, %v736
    %v738 = vand.u32 %v737, 4294901760
    %739 = vmatmul.mubr.f32.gmra.mrb[0].mxu0 %v738
    %v740 = vpop.f32.mrb[0].mxu0
    %v741 = vadd.f32 %v597, %v740
    %v742 = vpop.f32.mrb[0].mxu0
    %743 = vmatprep.mubr.f32.mxu0 0.0
    %v744 = vand.u32 %v83, 4294901760
    %v745 = vsub.f32 %v83, %v744
    %v746 = vand.u32 %v745, 4294901760
    %747 = vmatmul.mubr.f32.gmra.mrb[0].mxu0 %v746
    %v748 = vpop.f32.mrb[0].mxu0
    %v749 = vadd.f32 %v604, %v748
    %v750 = vpop.f32.mrb[0].mxu0
    %751 = vdwg.mxu0
    %752 = vmatprep.subr.mxu0 0.0
    %v753 = vand.u32 %v84, 4294901760
    %v754 = vsub.f32 %v84, %v753
    %v755 = vand.u32 %v754, 4294901760
    %756 = vmatpush1.msra.mxu0 %v755
    %757 = vmatprep.subr.mxu0 0.0
    %v758 = vand.u32 %v85, 4294901760
    %v759 = vsub.f32 %v85, %v758
    %v760 = vand.u32 %v759, 4294901760
    %761 = vmatpush1.msra.mxu0 %v760
    %762 = vmatprep.subr.mxu0 0.0
    %v763 = vand.u32 %v86, 4294901760
    %v764 = vsub.f32 %v86, %v763
    %v765 = vand.u32 %v764, 4294901760
    %766 = vmatpush1.msra.mxu0 %v765
    %767 = vmatprep.subr.mxu0 0.0
    %v768 = vand.u32 %v87, 4294901760
    %v769 = vsub.f32 %v87, %v768
    %v770 = vand.u32 %v769, 4294901760
    %771 = vmatpush1.msra.mxu0 %v770
    %772 = vmatprep.subr.mxu0 0.0
    %v773 = vand.u32 %v88, 4294901760
    %v774 = vsub.f32 %v88, %v773
    %v775 = vand.u32 %v774, 4294901760
    %776 = vmatpush1.msra.mxu0 %v775
    %777 = vmatprep.subr.mxu0 0.0
    %v778 = vand.u32 %v89, 4294901760
    %v779 = vsub.f32 %v89, %v778
    %v780 = vand.u32 %v779, 4294901760
    %781 = vmatpush1.msra.mxu0 %v780
    %782 = vmatprep.subr.mxu0 0.0
    %v783 = vand.u32 %v90, 4294901760
    %v784 = vsub.f32 %v90, %v783
    %v785 = vand.u32 %v784, 4294901760
    %786 = vmatpush1.msra.mxu0 %v785
    %787 = vmatprep.subr.mxu0 0.0
    %v788 = vand.u32 %v91, 4294901760
    %v789 = vsub.f32 %v91, %v788
    %v790 = vand.u32 %v789, 4294901760
    %791 = vmatpush1.msra.mxu0 %v790
    %792 = vmatprep.subr.mxu0 0.0
    %v793 = vand.u32 %v92, 4294901760
    %v794 = vsub.f32 %v92, %v793
    %v795 = vand.u32 %v794, 4294901760
    %796 = vmatpush1.msra.mxu0 %v795
    %797 = vmatprep.subr.mxu0 0.0
    %v798 = vand.u32 %v93, 4294901760
    %v799 = vsub.f32 %v93, %v798
    %v800 = vand.u32 %v799, 4294901760
    %801 = vmatpush1.msra.mxu0 %v800
    %802 = vmatprep.subr.mxu0 0.0
    %v803 = vand.u32 %v94, 4294901760
    %v804 = vsub.f32 %v94, %v803
    %v805 = vand.u32 %v804, 4294901760
    %806 = vmatpush1.msra.mxu0 %v805
    %807 = vmatprep.subr.mxu0 0.0
    %v808 = vand.u32 %v95, 4294901760
    %v809 = vsub.f32 %v95, %v808
    %v810 = vand.u32 %v809, 4294901760
    %811 = vmatpush1.msra.mxu0 %v810
    %812 = vmatprep.subr.mxu0 0.0
    %v813 = vand.u32 %v96, 4294901760
    %v814 = vsub.f32 %v96, %v813
    %v815 = vand.u32 %v814, 4294901760
    %816 = vmatpush1.msra.mxu0 %v815
    %817 = vmatprep.subr.mxu0 0.0
    %v818 = vand.u32 %v97, 4294901760
    %v819 = vsub.f32 %v97, %v818
    %v820 = vand.u32 %v819, 4294901760
    %821 = vmatpush1.msra.mxu0 %v820
    %822 = vmatprep.subr.mxu0 0.0
    %v823 = vand.u32 %v98, 4294901760
    %v824 = vsub.f32 %v98, %v823
    %v825 = vand.u32 %v824, 4294901760
    %826 = vmatpush1.msra.mxu0 %v825
    %827 = vmatprep.subr.mxu0 0.0
    %v828 = vand.u32 %v99, 4294901760
    %v829 = vsub.f32 %v99, %v828
    %v830 = vand.u32 %v829, 4294901760
    %831 = vmatpush1.msra.mxu0 %v830
    %832 = vmatprep.subr.mxu0 0.0
    %833 = vmatpush1.msra.mxu0 0.0
    %834 = vmatprep.subr.mxu0 0.0
    %835 = vmatpush1.msra.mxu0 0.0
    %836 = vmatprep.subr.mxu0 0.0
    %837 = vmatpush1.msra.mxu0 0.0
    %838 = vmatprep.subr.mxu0 0.0
    %839 = vmatpush1.msra.mxu0 0.0
    %840 = vmatprep.subr.mxu0 0.0
    %841 = vmatpush1.msra.mxu0 0.0
    %842 = vmatprep.subr.mxu0 0.0
    %843 = vmatpush1.msra.mxu0 0.0
    %844 = vmatprep.subr.mxu0 0.0
    %845 = vmatpush1.msra.mxu0 0.0
    %846 = vmatprep.subr.mxu0 0.0
    %847 = vmatpush1.msra.mxu0 0.0
    %848 = vmatprep.subr.mxu0 0.0
    %849 = vmatpush1.msra.mxu0 0.0
    %850 = vmatprep.subr.mxu0 0.0
    %851 = vmatpush1.msra.mxu0 0.0
    %852 = vmatprep.subr.mxu0 0.0
    %853 = vmatpush1.msra.mxu0 0.0
    %854 = vmatprep.subr.mxu0 0.0
    %855 = vmatpush1.msra.mxu0 0.0
    %856 = vmatprep.subr.mxu0 0.0
    %857 = vmatpush1.msra.mxu0 0.0
    %858 = vmatprep.subr.mxu0 0.0
    %859 = vmatpush1.msra.mxu0 0.0
    %860 = vmatprep.subr.mxu0 0.0
    %861 = vmatpush1.msra.mxu0 0.0
    %862 = vmatprep.subr.mxu0 0.0
    %863 = vmatpush1.msra.mxu0 0.0
    %864 = vmatprep.mubr.f32.mxu0 0.0
    %v865 = vand.u32 %v76, 4294901760
    %866 = vmatmul.mubr.f32.gmra.mrb[0].mxu0 %v865
    %v867 = vpop.f32.mrb[0].mxu0
    %v868 = vadd.f32 %v693, %v867
    %v869 = vpop.f32.mrb[0].mxu0
    %870 = vmatprep.mubr.f32.mxu0 0.0
    %v871 = vand.u32 %v77, 4294901760
    %872 = vmatmul.mubr.f32.gmra.mrb[0].mxu0 %v871
    %v873 = vpop.f32.mrb[0].mxu0
    %v874 = vadd.f32 %v701, %v873
    %v875 = vpop.f32.mrb[0].mxu0
    %876 = vmatprep.mubr.f32.mxu0 0.0
    %v877 = vand.u32 %v78, 4294901760
    %878 = vmatmul.mubr.f32.gmra.mrb[0].mxu0 %v877
    %v879 = vpop.f32.mrb[0].mxu0
    %v880 = vadd.f32 %v709, %v879
    %v881 = vpop.f32.mrb[0].mxu0
    %882 = vmatprep.mubr.f32.mxu0 0.0
    %v883 = vand.u32 %v79, 4294901760
    %884 = vmatmul.mubr.f32.gmra.mrb[0].mxu0 %v883
    %v885 = vpop.f32.mrb[0].mxu0
    %v886 = vadd.f32 %v717, %v885
    %v887 = vpop.f32.mrb[0].mxu0
    %888 = vmatprep.mubr.f32.mxu0 0.0
    %v889 = vand.u32 %v80, 4294901760
    %890 = vmatmul.mubr.f32.gmra.mrb[0].mxu0 %v889
    %v891 = vpop.f32.mrb[0].mxu0
    %v892 = vadd.f32 %v725, %v891
    %v893 = vpop.f32.mrb[0].mxu0
    %894 = vmatprep.mubr.f32.mxu0 0.0
    %v895 = vand.u32 %v81, 4294901760
    %896 = vmatmul.mubr.f32.gmra.mrb[0].mxu0 %v895
    %v897 = vpop.f32.mrb[0].mxu0
    %v898 = vadd.f32 %v733, %v897
    %v899 = vpop.f32.mrb[0].mxu0
    %900 = vmatprep.mubr.f32.mxu0 0.0
    %v901 = vand.u32 %v82, 4294901760
    %902 = vmatmul.mubr.f32.gmra.mrb[0].mxu0 %v901
    %v903 = vpop.f32.mrb[0].mxu0
    %v904 = vadd.f32 %v741, %v903
    %v905 = vpop.f32.mrb[0].mxu0
    %906 = vmatprep.mubr.f32.mxu0 0.0
    %v907 = vand.u32 %v83, 4294901760
    %908 = vmatmul.mubr.f32.gmra.mrb[0].mxu0 %v907
    %v909 = vpop.f32.mrb[0].mxu0
    %v910 = vadd.f32 %v749, %v909
    %v911 = vpop.f32.mrb[0].mxu0
    %912 = vdwg.mxu0
    %913 = vmatprep.subr.mxu0 0.0
    %v914 = vand.u32 %v84, 4294901760
    %915 = vmatpush1.msra.mxu0 %v914
    %916 = vmatprep.subr.mxu0 0.0
    %v917 = vand.u32 %v85, 4294901760
    %918 = vmatpush1.msra.mxu0 %v917
    %919 = vmatprep.subr.mxu0 0.0
    %v920 = vand.u32 %v86, 4294901760
    %921 = vmatpush1.msra.mxu0 %v920
    %922 = vmatprep.subr.mxu0 0.0
    %v923 = vand.u32 %v87, 4294901760
    %924 = vmatpush1.msra.mxu0 %v923
    %925 = vmatprep.subr.mxu0 0.0
    %v926 = vand.u32 %v88, 4294901760
    %927 = vmatpush1.msra.mxu0 %v926
    %928 = vmatprep.subr.mxu0 0.0
    %v929 = vand.u32 %v89, 4294901760
    %930 = vmatpush1.msra.mxu0 %v929
    %931 = vmatprep.subr.mxu0 0.0
    %v932 = vand.u32 %v90, 4294901760
    %933 = vmatpush1.msra.mxu0 %v932
    %934 = vmatprep.subr.mxu0 0.0
    %v935 = vand.u32 %v91, 4294901760
    %936 = vmatpush1.msra.mxu0 %v935
    %937 = vmatprep.subr.mxu0 0.0
    %v938 = vand.u32 %v92, 4294901760
    %939 = vmatpush1.msra.mxu0 %v938
    %940 = vmatprep.subr.mxu0 0.0
    %v941 = vand.u32 %v93, 4294901760
    %942 = vmatpush1.msra.mxu0 %v941
    %943 = vmatprep.subr.mxu0 0.0
    %v944 = vand.u32 %v94, 4294901760
    %945 = vmatpush1.msra.mxu0 %v944
    %946 = vmatprep.subr.mxu0 0.0
    %v947 = vand.u32 %v95, 4294901760
    %948 = vmatpush1.msra.mxu0 %v947
    %949 = vmatprep.subr.mxu0 0.0
    %v950 = vand.u32 %v96, 4294901760
    %951 = vmatpush1.msra.mxu0 %v950
    %952 = vmatprep.subr.mxu0 0.0
    %v953 = vand.u32 %v97, 4294901760
    %954 = vmatpush1.msra.mxu0 %v953
    %955 = vmatprep.subr.mxu0 0.0
    %v956 = vand.u32 %v98, 4294901760
    %957 = vmatpush1.msra.mxu0 %v956
    %958 = vmatprep.subr.mxu0 0.0
    %v959 = vand.u32 %v99, 4294901760
    %960 = vmatpush1.msra.mxu0 %v959
    %961 = vmatprep.subr.mxu0 0.0
    %962 = vmatpush1.msra.mxu0 0.0
    %963 = vmatprep.subr.mxu0 0.0
    %964 = vmatpush1.msra.mxu0 0.0
    %965 = vmatprep.subr.mxu0 0.0
    %966 = vmatpush1.msra.mxu0 0.0
    %967 = vmatprep.subr.mxu0 0.0
    %968 = vmatpush1.msra.mxu0 0.0
    %969 = vmatprep.subr.mxu0 0.0
    %970 = vmatpush1.msra.mxu0 0.0
    %971 = vmatprep.subr.mxu0 0.0
    %972 = vmatpush1.msra.mxu0 0.0
    %973 = vmatprep.subr.mxu0 0.0
    %974 = vmatpush1.msra.mxu0 0.0
    %975 = vmatprep.subr.mxu0 0.0
    %976 = vmatpush1.msra.mxu0 0.0
    %977 = vmatprep.subr.mxu0 0.0
    %978 = vmatpush1.msra.mxu0 0.0
    %979 = vmatprep.subr.mxu0 0.0
    %980 = vmatpush1.msra.mxu0 0.0
    %981 = vmatprep.subr.mxu0 0.0
    %982 = vmatpush1.msra.mxu0 0.0
    %983 = vmatprep.subr.mxu0 0.0
    %984 = vmatpush1.msra.mxu0 0.0
    %985 = vmatprep.subr.mxu0 0.0
    %986 = vmatpush1.msra.mxu0 0.0
    %987 = vmatprep.subr.mxu0 0.0
    %988 = vmatpush1.msra.mxu0 0.0
    %989 = vmatprep.subr.mxu0 0.0
    %990 = vmatpush1.msra.mxu0 0.0
    %991 = vmatprep.subr.mxu0 0.0
    %992 = vmatpush1.msra.mxu0 0.0
    %993 = vmatprep.mubr.f32.mxu0 0.0
    %v994 = vand.u32 %v76, 4294901760
    %995 = vmatmul.mubr.f32.gmra.mrb[0].mxu0 %v994
    %v996 = vpop.f32.mrb[0].mxu0
    %v997 = vadd.f32 %v868, %v996
    %v998 = vpop.f32.mrb[0].mxu0
    %999 = vmatprep.mubr.f32.mxu0 0.0
    %v1000 = vand.u32 %v77, 4294901760
    %1001 = vmatmul.mubr.f32.gmra.mrb[0].mxu0 %v1000
    %v1002 = vpop.f32.mrb[0].mxu0
    %v1003 = vadd.f32 %v874, %v1002
    %v1004 = vpop.f32.mrb[0].mxu0
    %1005 = vmatprep.mubr.f32.mxu0 0.0
    %v1006 = vand.u32 %v78, 4294901760
    %1007 = vmatmul.mubr.f32.gmra.mrb[0].mxu0 %v1006
    %v1008 = vpop.f32.mrb[0].mxu0
    %v1009 = vadd.f32 %v880, %v1008
    %v1010 = vpop.f32.mrb[0].mxu0
    %1011 = vmatprep.mubr.f32.mxu0 0.0
    %v1012 = vand.u32 %v79, 4294901760
    %1013 = vmatmul.mubr.f32.gmra.mrb[0].mxu0 %v1012
    %v1014 = vpop.f32.mrb[0].mxu0
    %v1015 = vadd.f32 %v886, %v1014
    %v1016 = vpop.f32.mrb[0].mxu0
    %1017 = vmatprep.mubr.f32.mxu0 0.0
    %v1018 = vand.u32 %v80, 4294901760
    %1019 = vmatmul.mubr.f32.gmra.mrb[0].mxu0 %v1018
    %v1020 = vpop.f32.mrb[0].mxu0
    %v1021 = vadd.f32 %v892, %v1020
    %v1022 = vpop.f32.mrb[0].mxu0
    %1023 = vmatprep.mubr.f32.mxu0 0.0
    %v1024 = vand.u32 %v81, 4294901760
    %1025 = vmatmul.mubr.f32.gmra.mrb[0].mxu0 %v1024
    %v1026 = vpop.f32.mrb[0].mxu0
    %v1027 = vadd.f32 %v898, %v1026
    %v1028 = vpop.f32.mrb[0].mxu0
    %1029 = vmatprep.mubr.f32.mxu0 0.0
    %v1030 = vand.u32 %v82, 4294901760
    %1031 = vmatmul.mubr.f32.gmra.mrb[0].mxu0 %v1030
    %v1032 = vpop.f32.mrb[0].mxu0
    %v1033 = vadd.f32 %v904, %v1032
    %v1034 = vpop.f32.mrb[0].mxu0
    %1035 = vmatprep.mubr.f32.mxu0 0.0
    %v1036 = vand.u32 %v83, 4294901760
    %1037 = vmatmul.mubr.f32.gmra.mrb[0].mxu0 %v1036
    %v1038 = vpop.f32.mrb[0].mxu0
    %v1039 = vadd.f32 %v910, %v1038
    %v1040 = vpop.f32.mrb[0].mxu0
    %1041 = vdwg.mxu0
    %v1042 = vld [vmem:[#allocation2 + $0x80] sm:$0xff]
    %v1043 = vld [vmem:[#allocation2 + $0x88] sm:$0xff]
    %v1044 = vld [vmem:[#allocation2 + $0x90] sm:$0xff]
    %v1045 = vld [vmem:[#allocation2 + $0x98] sm:$0xff]
    %v1046 = vld [vmem:[#allocation2 + $0xa0] sm:$0x1]
    %v1047 = vlaneseq
    %v1048 = vshrl.u32 %v1047, 7
    %v1049 = vsub.s32 0, %v1048
    %v1050 = vrot.slane %v1046, %v1049
    %v1051 = vxor.u32 %v997, 2147483648
    %v1052 = vmul.f32 %v1051, 1.442695
    %v1053 = vpow.pop %v1052
    %v1054 = vadd.f32 %v1053, 1.0
    %v1055 = vrcp.pop %v1054
    %v1056 = vmul.f32 1.0, %v1055
    %v1057 = vmul.f32 %v1056, %v1050
    %1059 = vrot.lane.b32.xlu0 %v1057, 64
    %v1060 = vpop.permute.xlu0 %1059
    %v1062 = vadd.f32 %v997, %v1060
    %v1063 = vtanh.pop %v1062
    %v1064 = vsub.f32 1.0, %v1056
    %1066 = vrot.lane.b32.xlu0 %v1063, 96
    %v1067 = vpop.permute.xlu0 %1066
    %v1069 = vmul.f32 %v1064, %v1067
    %1071 = vrot.lane.b32.xlu0 %v1069, 96
    %v1072 = vpop.permute.xlu0 %1071
    %vm1073 = vcmask 261120
    %v1074 = vsel %vm1073, %v1072, 0
    %1076 = vmatprep.subr.mxu0 0.0
    %v1077 = vand.u32 %v1042, 4294901760
    %1078 = vmatpush1.msra.mxu0 %v1077
    %1079 = vmatprep.subr.mxu0 0.0
    %v1080 = vand.u32 %v1043, 4294901760
    %1081 = vmatpush1.msra.mxu0 %v1080
    %1082 = vmatprep.subr.mxu0 0.0
    %v1083 = vand.u32 %v1044, 4294901760
    %1084 = vmatpush1.msra.mxu0 %v1083
    %1085 = vmatprep.subr.mxu0 0.0
    %v1086 = vand.u32 %v1045, 4294901760
    %1087 = vmatpush1.msra.mxu0 %v1086
    %1088 = vmatprep.subr.mxu0 0.0
    %1089 = vmatpush1.msra.mxu0 0.0
    %1090 = vmatprep.subr.mxu0 0.0
    %1091 = vmatpush1.msra.mxu0 0.0
    %1092 = vmatprep.subr.mxu0 0.0
    %1093 = vmatpush1.msra.mxu0 0.0
    %1094 = vmatprep.subr.mxu0 0.0
    %1095 = vmatpush1.msra.mxu0 0.0
    %1096 = vmatprep.subr.mxu0 0.0
    %1097 = vmatpush1.msra.mxu0 0.0
    %1098 = vmatprep.subr.mxu0 0.0
    %1099 = vmatpush1.msra.mxu0 0.0
    %1100 = vmatprep.subr.mxu0 0.0
    %1101 = vmatpush1.msra.mxu0 0.0
    %1102 = vmatprep.subr.mxu0 0.0
    %1103 = vmatpush1.msra.mxu0 0.0
    %1104 = vmatprep.subr.mxu0 0.0
    %1105 = vmatpush1.msra.mxu0 0.0
    %1106 = vmatprep.subr.mxu0 0.0
    %1107 = vmatpush1.msra.mxu0 0.0
    %1108 = vmatprep.subr.mxu0 0.0
    %1109 = vmatpush1.msra.mxu0 0.0
    %1110 = vmatprep.subr.mxu0 0.0
    %1111 = vmatpush1.msra.mxu0 0.0
    %1112 = vmatprep.subr.mxu0 0.0
    %1113 = vmatpush1.msra.mxu0 0.0
    %1114 = vmatprep.subr.mxu0 0.0
    %1115 = vmatpush1.msra.mxu0 0.0
    %1116 = vmatprep.subr.mxu0 0.0
    %1117 = vmatpush1.msra.mxu0 0.0
    %1118 = vmatprep.subr.mxu0 0.0
    %1119 = vmatpush1.msra.mxu0 0.0
    %1120 = vmatprep.subr.mxu0 0.0
    %1121 = vmatpush1.msra.mxu0 0.0
    %1122 = vmatprep.subr.mxu0 0.0
    %1123 = vmatpush1.msra.mxu0 0.0
    %1124 = vmatprep.subr.mxu0 0.0
    %1125 = vmatpush1.msra.mxu0 0.0
    %1126 = vmatprep.subr.mxu0 0.0
    %1127 = vmatpush1.msra.mxu0 0.0
    %1128 = vmatprep.subr.mxu0 0.0
    %1129 = vmatpush1.msra.mxu0 0.0
    %1130 = vmatprep.subr.mxu0 0.0
    %1131 = vmatpush1.msra.mxu0 0.0
    %1132 = vmatprep.subr.mxu0 0.0
    %1133 = vmatpush1.msra.mxu0 0.0
    %1134 = vmatprep.subr.mxu0 0.0
    %1135 = vmatpush1.msra.mxu0 0.0
    %1136 = vmatprep.subr.mxu0 0.0
    %1137 = vmatpush1.msra.mxu0 0.0
    %1138 = vmatprep.subr.mxu0 0.0
    %1139 = vmatpush1.msra.mxu0 0.0
    %1140 = vmatprep.subr.mxu0 0.0
    %1141 = vmatpush1.msra.mxu0 0.0
    %1142 = vmatprep.subr.mxu0 0.0
    %1143 = vmatpush1.msra.mxu0 0.0
    %1144 = vmatprep.mubr.f32.mxu0 0.0
    %v1145 = vand.u32 %v1074, 4294901760
    %v1146 = vsub.f32 %v1074, %v1145
    %v1147 = vand.u32 %v1146, 4294901760
    %v1148 = vsub.f32 %v1146, %v1147
    %v1149 = vand.u32 %v1148, 4294901760
    %1150 = vmatmul.mubr.f32.gmra.mrb[0].mxu0 %v1149
    %v1151 = vpop.f32.mrb[0].mxu0
    %v1152 = vadd.f32 0.0, %v1151
    %v1153 = vpop.f32.mrb[0].mxu0
    %1154 = vdwg.mxu0
    %1155 = vmatprep.subr.mxu0 0.0
    %v1156 = vand.u32 %v1042, 4294901760
    %v1157 = vsub.f32 %v1042, %v1156
    %v1158 = vand.u32 %v1157, 4294901760
    %v1159 = vsub.f32 %v1157, %v1158
    %v1160 = vand.u32 %v1159, 4294901760
    %1161 = vmatpush1.msra.mxu0 %v1160
    %1162 = vmatprep.subr.mxu0 0.0
    %v1163 = vand.u32 %v1043, 4294901760
    %v1164 = vsub.f32 %v1043, %v1163
    %v1165 = vand.u32 %v1164, 4294901760
    %v1166 = vsub.f32 %v1164, %v1165
    %v1167 = vand.u32 %v1166, 4294901760
    %1168 = vmatpush1.msra.mxu0 %v1167
    %1169 = vmatprep.subr.mxu0 0.0
    %v1170 = vand.u32 %v1044, 4294901760
    %v1171 = vsub.f32 %v1044, %v1170
    %v1172 = vand.u32 %v1171, 4294901760
    %v1173 = vsub.f32 %v1171, %v1172
    %v1174 = vand.u32 %v1173, 4294901760
    %1175 = vmatpush1.msra.mxu0 %v1174
    %1176 = vmatprep.subr.mxu0 0.0
    %v1177 = vand.u32 %v1045, 4294901760
    %v1178 = vsub.f32 %v1045, %v1177
    %v1179 = vand.u32 %v1178, 4294901760
    %v1180 = vsub.f32 %v1178, %v1179
    %v1181 = vand.u32 %v1180, 4294901760
    %1182 = vmatpush1.msra.mxu0 %v1181
    %1183 = vmatprep.subr.mxu0 0.0
    %1184 = vmatpush1.msra.mxu0 0.0
    %1185 = vmatprep.subr.mxu0 0.0
    %1186 = vmatpush1.msra.mxu0 0.0
    %1187 = vmatprep.subr.mxu0 0.0
    %1188 = vmatpush1.msra.mxu0 0.0
    %1189 = vmatprep.subr.mxu0 0.0
    %1190 = vmatpush1.msra.mxu0 0.0
    %1191 = vmatprep.subr.mxu0 0.0
    %1192 = vmatpush1.msra.mxu0 0.0
    %1193 = vmatprep.subr.mxu0 0.0
    %1194 = vmatpush1.msra.mxu0 0.0
    %1195 = vmatprep.subr.mxu0 0.0
    %1196 = vmatpush1.msra.mxu0 0.0
    %1197 = vmatprep.subr.mxu0 0.0
    %1198 = vmatpush1.msra.mxu0 0.0
    %1199 = vmatprep.subr.mxu0 0.0
    %1200 = vmatpush1.msra.mxu0 0.0
    %1201 = vmatprep.subr.mxu0 0.0
    %1202 = vmatpush1.msra.mxu0 0.0
    %1203 = vmatprep.subr.mxu0 0.0
    %1204 = vmatpush1.msra.mxu0 0.0
    %1205 = vmatprep.subr.mxu0 0.0
    %1206 = vmatpush1.msra.mxu0 0.0
    %1207 = vmatprep.subr.mxu0 0.0
    %1208 = vmatpush1.msra.mxu0 0.0
    %1209 = vmatprep.subr.mxu0 0.0
    %1210 = vmatpush1.msra.mxu0 0.0
    %1211 = vmatprep.subr.mxu0 0.0
    %1212 = vmatpush1.msra.mxu0 0.0
    %1213 = vmatprep.subr.mxu0 0.0
    %1214 = vmatpush1.msra.mxu0 0.0
    %1215 = vmatprep.subr.mxu0 0.0
    %1216 = vmatpush1.msra.mxu0 0.0
    %1217 = vmatprep.subr.mxu0 0.0
    %1218 = vmatpush1.msra.mxu0 0.0
    %1219 = vmatprep.subr.mxu0 0.0
    %1220 = vmatpush1.msra.mxu0 0.0
    %1221 = vmatprep.subr.mxu0 0.0
    %1222 = vmatpush1.msra.mxu0 0.0
    %1223 = vmatprep.subr.mxu0 0.0
    %1224 = vmatpush1.msra.mxu0 0.0
    %1225 = vmatprep.subr.mxu0 0.0
    %1226 = vmatpush1.msra.mxu0 0.0
    %1227 = vmatprep.subr.mxu0 0.0
    %1228 = vmatpush1.msra.mxu0 0.0
    %1229 = vmatprep.subr.mxu0 0.0
    %1230 = vmatpush1.msra.mxu0 0.0
    %1231 = vmatprep.subr.mxu0 0.0
    %1232 = vmatpush1.msra.mxu0 0.0
    %1233 = vmatprep.subr.mxu0 0.0
    %1234 = vmatpush1.msra.mxu0 0.0
    %1235 = vmatprep.subr.mxu0 0.0
    %1236 = vmatpush1.msra.mxu0 0.0
    %1237 = vmatprep.subr.mxu0 0.0
    %1238 = vmatpush1.msra.mxu0 0.0
    %1239 = vmatprep.mubr.f32.mxu0 0.0
    %v1240 = vand.u32 %v1074, 4294901760
    %1241 = vmatmul.mubr.f32.gmra.mrb[0].mxu0 %v1240
    %v1242 = vpop.f32.mrb[0].mxu0
    %v1243 = vadd.f32 %v1152, %v1242
    %v1244 = vpop.f32.mrb[0].mxu0
    %1245 = vdwg.mxu0
    %1246 = vmatprep.subr.mxu0 0.0
    %v1247 = vand.u32 %v1042, 4294901760
    %v1248 = vsub.f32 %v1042, %v1247
    %1249 = vmatpush1.msra.mxu0 %v1248
    %1250 = vmatprep.subr.mxu0 0.0
    %v1251 = vand.u32 %v1043, 4294901760
    %v1252 = vsub.f32 %v1043, %v1251
    %1253 = vmatpush1.msra.mxu0 %v1252
    %1254 = vmatprep.subr.mxu0 0.0
    %v1255 = vand.u32 %v1044, 4294901760
    %v1256 = vsub.f32 %v1044, %v1255
    %1257 = vmatpush1.msra.mxu0 %v1256
    %1258 = vmatprep.subr.mxu0 0.0
    %v1259 = vand.u32 %v1045, 4294901760
    %v1260 = vsub.f32 %v1045, %v1259
    %1261 = vmatpush1.msra.mxu0 %v1260
    %1262 = vmatprep.subr.mxu0 0.0
    %1263 = vmatpush1.msra.mxu0 0.0
    %1264 = vmatprep.subr.mxu0 0.0
    %1265 = vmatpush1.msra.mxu0 0.0
    %1266 = vmatprep.subr.mxu0 0.0
    %1267 = vmatpush1.msra.mxu0 0.0
    %1268 = vmatprep.subr.mxu0 0.0
    %1269 = vmatpush1.msra.mxu0 0.0
    %1270 = vmatprep.subr.mxu0 0.0
    %1271 = vmatpush1.msra.mxu0 0.0
    %1272 = vmatprep.subr.mxu0 0.0
    %1273 = vmatpush1.msra.mxu0 0.0
    %1274 = vmatprep.subr.mxu0 0.0
    %1275 = vmatpush1.msra.mxu0 0.0
    %1276 = vmatprep.subr.mxu0 0.0
    %1277 = vmatpush1.msra.mxu0 0.0
    %1278 = vmatprep.subr.mxu0 0.0
    %1279 = vmatpush1.msra.mxu0 0.0
    %1280 = vmatprep.subr.mxu0 0.0
    %1281 = vmatpush1.msra.mxu0 0.0
    %1282 = vmatprep.subr.mxu0 0.0
    %1283 = vmatpush1.msra.mxu0 0.0
    %1284 = vmatprep.subr.mxu0 0.0
    %1285 = vmatpush1.msra.mxu0 0.0
    %1286 = vmatprep.subr.mxu0 0.0
    %1287 = vmatpush1.msra.mxu0 0.0
    %1288 = vmatprep.subr.mxu0 0.0
    %1289 = vmatpush1.msra.mxu0 0.0
    %1290 = vmatprep.subr.mxu0 0.0
    %1291 = vmatpush1.msra.mxu0 0.0
    %1292 = vmatprep.subr.mxu0 0.0
    %1293 = vmatpush1.msra.mxu0 0.0
    %1294 = vmatprep.subr.mxu0 0.0
    %1295 = vmatpush1.msra.mxu0 0.0
    %1296 = vmatprep.subr.mxu0 0.0
    %1297 = vmatpush1.msra.mxu0 0.0
    %1298 = vmatprep.subr.mxu0 0.0
    %1299 = vmatpush1.msra.mxu0 0.0
    %1300 = vmatprep.subr.mxu0 0.0
    %1301 = vmatpush1.msra.mxu0 0.0
    %1302 = vmatprep.subr.mxu0 0.0
    %1303 = vmatpush1.msra.mxu0 0.0
    %1304 = vmatprep.subr.mxu0 0.0
    %1305 = vmatpush1.msra.mxu0 0.0
    %1306 = vmatprep.subr.mxu0 0.0
    %1307 = vmatpush1.msra.mxu0 0.0
    %1308 = vmatprep.subr.mxu0 0.0
    %1309 = vmatpush1.msra.mxu0 0.0
    %1310 = vmatprep.subr.mxu0 0.0
    %1311 = vmatpush1.msra.mxu0 0.0
    %1312 = vmatprep.subr.mxu0 0.0
    %1313 = vmatpush1.msra.mxu0 0.0
    %1314 = vmatprep.subr.mxu0 0.0
    %1315 = vmatpush1.msra.mxu0 0.0
    %1316 = vmatprep.subr.mxu0 0.0
    %1317 = vmatpush1.msra.mxu0 0.0
    %1318 = vmatprep.mubr.f32.mxu0 0.0
    %v1319 = vand.u32 %v1074, 4294901760
    %v1320 = vsub.f32 %v1074, %v1319
    %1321 = vmatmul.mubr.f32.gmra.mrb[0].mxu0 %v1320
    %v1322 = vpop.f32.mrb[0].mxu0
    %v1323 = vadd.f32 %v1243, %v1322
    %v1324 = vpop.f32.mrb[0].mxu0
    %1325 = vdwg.mxu0
    %1326 = vmatprep.subr.mxu0 0.0
    %v1327 = vand.u32 %v1042, 4294901760
    %1328 = vmatpush1.msra.mxu0 %v1327
    %1329 = vmatprep.subr.mxu0 0.0
    %v1330 = vand.u32 %v1043, 4294901760
    %1331 = vmatpush1.msra.mxu0 %v1330
    %1332 = vmatprep.subr.mxu0 0.0
    %v1333 = vand.u32 %v1044, 4294901760
    %1334 = vmatpush1.msra.mxu0 %v1333
    %1335 = vmatprep.subr.mxu0 0.0
    %v1336 = vand.u32 %v1045, 4294901760
    %1337 = vmatpush1.msra.mxu0 %v1336
    %1338 = vmatprep.subr.mxu0 0.0
    %1339 = vmatpush1.msra.mxu0 0.0
    %1340 = vmatprep.subr.mxu0 0.0
    %1341 = vmatpush1.msra.mxu0 0.0
    %1342 = vmatprep.subr.mxu0 0.0
    %1343 = vmatpush1.msra.mxu0 0.0
    %1344 = vmatprep.subr.mxu0 0.0
    %1345 = vmatpush1.msra.mxu0 0.0
    %1346 = vmatprep.subr.mxu0 0.0
    %1347 = vmatpush1.msra.mxu0 0.0
    %1348 = vmatprep.subr.mxu0 0.0
    %1349 = vmatpush1.msra.mxu0 0.0
    %1350 = vmatprep.subr.mxu0 0.0
    %1351 = vmatpush1.msra.mxu0 0.0
    %1352 = vmatprep.subr.mxu0 0.0
    %1353 = vmatpush1.msra.mxu0 0.0
    %1354 = vmatprep.subr.mxu0 0.0
    %1355 = vmatpush1.msra.mxu0 0.0
    %1356 = vmatprep.subr.mxu0 0.0
    %1357 = vmatpush1.msra.mxu0 0.0
    %1358 = vmatprep.subr.mxu0 0.0
    %1359 = vmatpush1.msra.mxu0 0.0
    %1360 = vmatprep.subr.mxu0 0.0
    %1361 = vmatpush1.msra.mxu0 0.0
    %1362 = vmatprep.subr.mxu0 0.0
    %1363 = vmatpush1.msra.mxu0 0.0
    %1364 = vmatprep.subr.mxu0 0.0
    %1365 = vmatpush1.msra.mxu0 0.0
    %1366 = vmatprep.subr.mxu0 0.0
    %1367 = vmatpush1.msra.mxu0 0.0
    %1368 = vmatprep.subr.mxu0 0.0
    %1369 = vmatpush1.msra.mxu0 0.0
    %1370 = vmatprep.subr.mxu0 0.0
    %1371 = vmatpush1.msra.mxu0 0.0
    %1372 = vmatprep.subr.mxu0 0.0
    %1373 = vmatpush1.msra.mxu0 0.0
    %1374 = vmatprep.subr.mxu0 0.0
    %1375 = vmatpush1.msra.mxu0 0.0
    %1376 = vmatprep.subr.mxu0 0.0
    %1377 = vmatpush1.msra.mxu0 0.0
    %1378 = vmatprep.subr.mxu0 0.0
    %1379 = vmatpush1.msra.mxu0 0.0
    %1380 = vmatprep.subr.mxu0 0.0
    %1381 = vmatpush1.msra.mxu0 0.0
    %1382 = vmatprep.subr.mxu0 0.0
    %1383 = vmatpush1.msra.mxu0 0.0
    %1384 = vmatprep.subr.mxu0 0.0
    %1385 = vmatpush1.msra.mxu0 0.0
    %1386 = vmatprep.subr.mxu0 0.0
    %1387 = vmatpush1.msra.mxu0 0.0
    %1388 = vmatprep.subr.mxu0 0.0
    %1389 = vmatpush1.msra.mxu0 0.0
    %1390 = vmatprep.subr.mxu0 0.0
    %1391 = vmatpush1.msra.mxu0 0.0
    %1392 = vmatprep.subr.mxu0 0.0
    %1393 = vmatpush1.msra.mxu0 0.0
    %1394 = vmatprep.mubr.f32.mxu0 0.0
    %v1395 = vand.u32 %v1074, 4294901760
    %v1396 = vsub.f32 %v1074, %v1395
    %v1397 = vand.u32 %v1396, 4294901760
    %1398 = vmatmul.mubr.f32.gmra.mrb[0].mxu0 %v1397
    %v1399 = vpop.f32.mrb[0].mxu0
    %v1400 = vadd.f32 %v1323, %v1399
    %v1401 = vpop.f32.mrb[0].mxu0
    %1402 = vdwg.mxu0
    %1403 = vmatprep.subr.mxu0 0.0
    %v1404 = vand.u32 %v1042, 4294901760
    %v1405 = vsub.f32 %v1042, %v1404
    %v1406 = vand.u32 %v1405, 4294901760
    %1407 = vmatpush1.msra.mxu0 %v1406
    %1408 = vmatprep.subr.mxu0 0.0
    %v1409 = vand.u32 %v1043, 4294901760
    %v1410 = vsub.f32 %v1043, %v1409
    %v1411 = vand.u32 %v1410, 4294901760
    %1412 = vmatpush1.msra.mxu0 %v1411
    %1413 = vmatprep.subr.mxu0 0.0
    %v1414 = vand.u32 %v1044, 4294901760
    %v1415 = vsub.f32 %v1044, %v1414
    %v1416 = vand.u32 %v1415, 4294901760
    %1417 = vmatpush1.msra.mxu0 %v1416
    %1418 = vmatprep.subr.mxu0 0.0
    %v1419 = vand.u32 %v1045, 4294901760
    %v1420 = vsub.f32 %v1045, %v1419
    %v1421 = vand.u32 %v1420, 4294901760
    %1422 = vmatpush1.msra.mxu0 %v1421
    %1423 = vmatprep.subr.mxu0 0.0
    %1424 = vmatpush1.msra.mxu0 0.0
    %1425 = vmatprep.subr.mxu0 0.0
    %1426 = vmatpush1.msra.mxu0 0.0
    %1427 = vmatprep.subr.mxu0 0.0
    %1428 = vmatpush1.msra.mxu0 0.0
    %1429 = vmatprep.subr.mxu0 0.0
    %1430 = vmatpush1.msra.mxu0 0.0
    %1431 = vmatprep.subr.mxu0 0.0
    %1432 = vmatpush1.msra.mxu0 0.0
    %1433 = vmatprep.subr.mxu0 0.0
    %1434 = vmatpush1.msra.mxu0 0.0
    %1435 = vmatprep.subr.mxu0 0.0
    %1436 = vmatpush1.msra.mxu0 0.0
    %1437 = vmatprep.subr.mxu0 0.0
    %1438 = vmatpush1.msra.mxu0 0.0
    %1439 = vmatprep.subr.mxu0 0.0
    %1440 = vmatpush1.msra.mxu0 0.0
    %1441 = vmatprep.subr.mxu0 0.0
    %1442 = vmatpush1.msra.mxu0 0.0
    %1443 = vmatprep.subr.mxu0 0.0
    %1444 = vmatpush1.msra.mxu0 0.0
    %1445 = vmatprep.subr.mxu0 0.0
    %1446 = vmatpush1.msra.mxu0 0.0
    %1447 = vmatprep.subr.mxu0 0.0
    %1448 = vmatpush1.msra.mxu0 0.0
    %1449 = vmatprep.subr.mxu0 0.0
    %1450 = vmatpush1.msra.mxu0 0.0
    %1451 = vmatprep.subr.mxu0 0.0
    %1452 = vmatpush1.msra.mxu0 0.0
    %1453 = vmatprep.subr.mxu0 0.0
    %1454 = vmatpush1.msra.mxu0 0.0
    %1455 = vmatprep.subr.mxu0 0.0
    %1456 = vmatpush1.msra.mxu0 0.0
    %1457 = vmatprep.subr.mxu0 0.0
    %1458 = vmatpush1.msra.mxu0 0.0
    %1459 = vmatprep.subr.mxu0 0.0
    %1460 = vmatpush1.msra.mxu0 0.0
    %1461 = vmatprep.subr.mxu0 0.0
    %1462 = vmatpush1.msra.mxu0 0.0
    %1463 = vmatprep.subr.mxu0 0.0
    %1464 = vmatpush1.msra.mxu0 0.0
    %1465 = vmatprep.subr.mxu0 0.0
    %1466 = vmatpush1.msra.mxu0 0.0
    %1467 = vmatprep.subr.mxu0 0.0
    %1468 = vmatpush1.msra.mxu0 0.0
    %1469 = vmatprep.subr.mxu0 0.0
    %1470 = vmatpush1.msra.mxu0 0.0
    %1471 = vmatprep.subr.mxu0 0.0
    %1472 = vmatpush1.msra.mxu0 0.0
    %1473 = vmatprep.subr.mxu0 0.0
    %1474 = vmatpush1.msra.mxu0 0.0
    %1475 = vmatprep.subr.mxu0 0.0
    %1476 = vmatpush1.msra.mxu0 0.0
    %1477 = vmatprep.subr.mxu0 0.0
    %1478 = vmatpush1.msra.mxu0 0.0
    %1479 = vmatprep.mubr.f32.mxu0 0.0
    %v1480 = vand.u32 %v1074, 4294901760
    %1481 = vmatmul.mubr.f32.gmra.mrb[0].mxu0 %v1480
    %v1482 = vpop.f32.mrb[0].mxu0
    %v1483 = vadd.f32 %v1400, %v1482
    %v1484 = vpop.f32.mrb[0].mxu0
    %1485 = vdwg.mxu0
    %1486 = vmatprep.subr.mxu0 0.0
    %v1487 = vand.u32 %v1042, 4294901760
    %1488 = vmatpush1.msra.mxu0 %v1487
    %1489 = vmatprep.subr.mxu0 0.0
    %v1490 = vand.u32 %v1043, 4294901760
    %1491 = vmatpush1.msra.mxu0 %v1490
    %1492 = vmatprep.subr.mxu0 0.0
    %v1493 = vand.u32 %v1044, 4294901760
    %1494 = vmatpush1.msra.mxu0 %v1493
    %1495 = vmatprep.subr.mxu0 0.0
    %v1496 = vand.u32 %v1045, 4294901760
    %1497 = vmatpush1.msra.mxu0 %v1496
    %1498 = vmatprep.subr.mxu0 0.0
    %1499 = vmatpush1.msra.mxu0 0.0
    %1500 = vmatprep.subr.mxu0 0.0
    %1501 = vmatpush1.msra.mxu0 0.0
    %1502 = vmatprep.subr.mxu0 0.0
    %1503 = vmatpush1.msra.mxu0 0.0
    %1504 = vmatprep.subr.mxu0 0.0
    %1505 = vmatpush1.msra.mxu0 0.0
    %1506 = vmatprep.subr.mxu0 0.0
    %1507 = vmatpush1.msra.mxu0 0.0
    %1508 = vmatprep.subr.mxu0 0.0
    %1509 = vmatpush1.msra.mxu0 0.0
    %1510 = vmatprep.subr.mxu0 0.0
    %1511 = vmatpush1.msra.mxu0 0.0
    %1512 = vmatprep.subr.mxu0 0.0
    %1513 = vmatpush1.msra.mxu0 0.0
    %1514 = vmatprep.subr.mxu0 0.0
    %1515 = vmatpush1.msra.mxu0 0.0
    %1516 = vmatprep.subr.mxu0 0.0
    %1517 = vmatpush1.msra.mxu0 0.0
    %1518 = vmatprep.subr.mxu0 0.0
    %1519 = vmatpush1.msra.mxu0 0.0
    %1520 = vmatprep.subr.mxu0 0.0
    %1521 = vmatpush1.msra.mxu0 0.0
    %1522 = vmatprep.subr.mxu0 0.0
    %1523 = vmatpush1.msra.mxu0 0.0
    %1524 = vmatprep.subr.mxu0 0.0
    %1525 = vmatpush1.msra.mxu0 0.0
    %1526 = vmatprep.subr.mxu0 0.0
    %1527 = vmatpush1.msra.mxu0 0.0
    %1528 = vmatprep.subr.mxu0 0.0
    %1529 = vmatpush1.msra.mxu0 0.0
    %1530 = vmatprep.subr.mxu0 0.0
    %1531 = vmatpush1.msra.mxu0 0.0
    %1532 = vmatprep.subr.mxu0 0.0
    %1533 = vmatpush1.msra.mxu0 0.0
    %1534 = vmatprep.subr.mxu0 0.0
    %1535 = vmatpush1.msra.mxu0 0.0
    %1536 = vmatprep.subr.mxu0 0.0
    %1537 = vmatpush1.msra.mxu0 0.0
    %1538 = vmatprep.subr.mxu0 0.0
    %1539 = vmatpush1.msra.mxu0 0.0
    %1540 = vmatprep.subr.mxu0 0.0
    %1541 = vmatpush1.msra.mxu0 0.0
    %1542 = vmatprep.subr.mxu0 0.0
    %1543 = vmatpush1.msra.mxu0 0.0
    %1544 = vmatprep.subr.mxu0 0.0
    %1545 = vmatpush1.msra.mxu0 0.0
    %1546 = vmatprep.subr.mxu0 0.0
    %1547 = vmatpush1.msra.mxu0 0.0
    %1548 = vmatprep.subr.mxu0 0.0
    %1549 = vmatpush1.msra.mxu0 0.0
    %1550 = vmatprep.subr.mxu0 0.0
    %1551 = vmatpush1.msra.mxu0 0.0
    %1552 = vmatprep.subr.mxu0 0.0
    %1553 = vmatpush1.msra.mxu0 0.0
    %1554 = vmatprep.mubr.f32.mxu0 0.0
    %v1555 = vand.u32 %v1074, 4294901760
    %1556 = vmatmul.mubr.f32.gmra.mrb[0].mxu0 %v1555
    %v1557 = vpop.f32.mrb[0].mxu0
    %v1558 = vadd.f32 %v1483, %v1557
    %v1559 = vpop.f32.mrb[0].mxu0
    %1560 = vdwg.mxu0
    %v1561 = vadd.f32 %v1003, %v1558
    %v1562 = vxor.u32 %v1561, 2147483648
    %v1563 = vmul.f32 %v1562, 1.442695
    %v1564 = vpow.pop %v1563
    %v1565 = vadd.f32 %v1564, 1.0
    %v1566 = vrcp.pop %v1565
    %v1567 = vmul.f32 1.0, %v1566
    %1569 = vrot.lane.b32.xlu0 %v1050, 64
    %v1570 = vpop.permute.xlu0 %1569
    %v1572 = vadd.f32 %v1558, %v1570
    %1574 = vrot.lane.b32.xlu0 %v1572, 64
    %v1575 = vpop.permute.xlu0 %1574
    %v1577 = vmul.f32 %v1567, %v1575
    %1579 = vrot.lane.b32.xlu0 %v1577, 64
    %v1580 = vpop.permute.xlu0 %1579
    %v1582 = vadd.f32 %v1003, %v1580
    %v1583 = vtanh.pop %v1582
    %v1584 = vsub.f32 1.0, %v1567
    %1586 = vrot.lane.b32.xlu0 %v1583, 96
    %v1587 = vpop.permute.xlu0 %1586
    %v1589 = vmul.f32 %v1584, %v1587
    %v1590 = vmul.f32 %v1567, %v1069
    %v1591 = vadd.f32 %v1589, %v1590
    %1593 = vrot.lane.b32.xlu0 %v1591, 96
    %v1594 = vpop.permute.xlu0 %1593
    %v1595 = vsel %vm1073, %v1594, 0
    %1597 = vmatprep.subr.mxu0 0.0
    %v1598 = vand.u32 %v1042, 4294901760
    %1599 = vmatpush1.msra.mxu0 %v1598
    %1600 = vmatprep.subr.mxu0 0.0
    %v1601 = vand.u32 %v1043, 4294901760
    %1602 = vmatpush1.msra.mxu0 %v1601
    %1603 = vmatprep.subr.mxu0 0.0
    %v1604 = vand.u32 %v1044, 4294901760
    %1605 = vmatpush1.msra.mxu0 %v1604
    %1606 = vmatprep.subr.mxu0 0.0
    %v1607 = vand.u32 %v1045, 4294901760
    %1608 = vmatpush1.msra.mxu0 %v1607
    %1609 = vmatprep.subr.mxu0 0.0
    %1610 = vmatpush1.msra.mxu0 0.0
    %1611 = vmatprep.subr.mxu0 0.0
    %1612 = vmatpush1.msra.mxu0 0.0
    %1613 = vmatprep.subr.mxu0 0.0
    %1614 = vmatpush1.msra.mxu0 0.0
    %1615 = vmatprep.subr.mxu0 0.0
    %1616 = vmatpush1.msra.mxu0 0.0
    %1617 = vmatprep.subr.mxu0 0.0
    %1618 = vmatpush1.msra.mxu0 0.0
    %1619 = vmatprep.subr.mxu0 0.0
    %1620 = vmatpush1.msra.mxu0 0.0
    %1621 = vmatprep.subr.mxu0 0.0
    %1622 = vmatpush1.msra.mxu0 0.0
    %1623 = vmatprep.subr.mxu0 0.0
    %1624 = vmatpush1.msra.mxu0 0.0
    %1625 = vmatprep.subr.mxu0 0.0
    %1626 = vmatpush1.msra.mxu0 0.0
    %1627 = vmatprep.subr.mxu0 0.0
    %1628 = vmatpush1.msra.mxu0 0.0
    %1629 = vmatprep.subr.mxu0 0.0
    %1630 = vmatpush1.msra.mxu0 0.0
    %1631 = vmatprep.subr.mxu0 0.0
    %1632 = vmatpush1.msra.mxu0 0.0
    %1633 = vmatprep.subr.mxu0 0.0
    %1634 = vmatpush1.msra.mxu0 0.0
    %1635 = vmatprep.subr.mxu0 0.0
    %1636 = vmatpush1.msra.mxu0 0.0
    %1637 = vmatprep.subr.mxu0 0.0
    %1638 = vmatpush1.msra.mxu0 0.0
    %1639 = vmatprep.subr.mxu0 0.0
    %1640 = vmatpush1.msra.mxu0 0.0
    %1641 = vmatprep.subr.mxu0 0.0
    %1642 = vmatpush1.msra.mxu0 0.0
    %1643 = vmatprep.subr.mxu0 0.0
    %1644 = vmatpush1.msra.mxu0 0.0
    %1645 = vmatprep.subr.mxu0 0.0
    %1646 = vmatpush1.msra.mxu0 0.0
    %1647 = vmatprep.subr.mxu0 0.0
    %1648 = vmatpush1.msra.mxu0 0.0
    %1649 = vmatprep.subr.mxu0 0.0
    %1650 = vmatpush1.msra.mxu0 0.0
    %1651 = vmatprep.subr.mxu0 0.0
    %1652 = vmatpush1.msra.mxu0 0.0
    %1653 = vmatprep.subr.mxu0 0.0
    %1654 = vmatpush1.msra.mxu0 0.0
    %1655 = vmatprep.subr.mxu0 0.0
    %1656 = vmatpush1.msra.mxu0 0.0
    %1657 = vmatprep.subr.mxu0 0.0
    %1658 = vmatpush1.msra.mxu0 0.0
    %1659 = vmatprep.subr.mxu0 0.0
    %1660 = vmatpush1.msra.mxu0 0.0
    %1661 = vmatprep.subr.mxu0 0.0
    %1662 = vmatpush1.msra.mxu0 0.0
    %1663 = vmatprep.subr.mxu0 0.0
    %1664 = vmatpush1.msra.mxu0 0.0
    %1665 = vmatprep.mubr.f32.mxu0 0.0
    %v1666 = vand.u32 %v1595, 4294901760
    %v1667 = vsub.f32 %v1595, %v1666
    %v1668 = vand.u32 %v1667, 4294901760
    %v1669 = vsub.f32 %v1667, %v1668
    %v1670 = vand.u32 %v1669, 4294901760
    %1671 = vmatmul.mubr.f32.gmra.mrb[0].mxu0 %v1670
    %v1672 = vpop.f32.mrb[0].mxu0
    %v1673 = vadd.f32 0.0, %v1672
    %v1674 = vpop.f32.mrb[0].mxu0
    %1675 = vdwg.mxu0
    %1676 = vmatprep.subr.mxu0 0.0
    %v1677 = vand.u32 %v1042, 4294901760
    %v1678 = vsub.f32 %v1042, %v1677
    %v1679 = vand.u32 %v1678, 4294901760
    %v1680 = vsub.f32 %v1678, %v1679
    %v1681 = vand.u32 %v1680, 4294901760
    %1682 = vmatpush1.msra.mxu0 %v1681
    %1683 = vmatprep.subr.mxu0 0.0
    %v1684 = vand.u32 %v1043, 4294901760
    %v1685 = vsub.f32 %v1043, %v1684
    %v1686 = vand.u32 %v1685, 4294901760
    %v1687 = vsub.f32 %v1685, %v1686
    %v1688 = vand.u32 %v1687, 4294901760
    %1689 = vmatpush1.msra.mxu0 %v1688
    %1690 = vmatprep.subr.mxu0 0.0
    %v1691 = vand.u32 %v1044, 4294901760
    %v1692 = vsub.f32 %v1044, %v1691
    %v1693 = vand.u32 %v1692, 4294901760
    %v1694 = vsub.f32 %v1692, %v1693
    %v1695 = vand.u32 %v1694, 4294901760
    %1696 = vmatpush1.msra.mxu0 %v1695
    %1697 = vmatprep.subr.mxu0 0.0
    %v1698 = vand.u32 %v1045, 4294901760
    %v1699 = vsub.f32 %v1045, %v1698
    %v1700 = vand.u32 %v1699, 4294901760
    %v1701 = vsub.f32 %v1699, %v1700
    %v1702 = vand.u32 %v1701, 4294901760
    %1703 = vmatpush1.msra.mxu0 %v1702
    %1704 = vmatprep.subr.mxu0 0.0
    %1705 = vmatpush1.msra.mxu0 0.0
    %1706 = vmatprep.subr.mxu0 0.0
    %1707 = vmatpush1.msra.mxu0 0.0
    %1708 = vmatprep.subr.mxu0 0.0
    %1709 = vmatpush1.msra.mxu0 0.0
    %1710 = vmatprep.subr.mxu0 0.0
    %1711 = vmatpush1.msra.mxu0 0.0
    %1712 = vmatprep.subr.mxu0 0.0
    %1713 = vmatpush1.msra.mxu0 0.0
    %1714 = vmatprep.subr.mxu0 0.0
    %1715 = vmatpush1.msra.mxu0 0.0
    %1716 = vmatprep.subr.mxu0 0.0
    %1717 = vmatpush1.msra.mxu0 0.0
    %1718 = vmatprep.subr.mxu0 0.0
    %1719 = vmatpush1.msra.mxu0 0.0
    %1720 = vmatprep.subr.mxu0 0.0
    %1721 = vmatpush1.msra.mxu0 0.0
    %1722 = vmatprep.subr.mxu0 0.0
    %1723 = vmatpush1.msra.mxu0 0.0
    %1724 = vmatprep.subr.mxu0 0.0
    %1725 = vmatpush1.msra.mxu0 0.0
    %1726 = vmatprep.subr.mxu0 0.0
    %1727 = vmatpush1.msra.mxu0 0.0
    %1728 = vmatprep.subr.mxu0 0.0
    %1729 = vmatpush1.msra.mxu0 0.0
    %1730 = vmatprep.subr.mxu0 0.0
    %1731 = vmatpush1.msra.mxu0 0.0
    %1732 = vmatprep.subr.mxu0 0.0
    %1733 = vmatpush1.msra.mxu0 0.0
    %1734 = vmatprep.subr.mxu0 0.0
    %1735 = vmatpush1.msra.mxu0 0.0
    %1736 = vmatprep.subr.mxu0 0.0
    %1737 = vmatpush1.msra.mxu0 0.0
    %1738 = vmatprep.subr.mxu0 0.0
    %1739 = vmatpush1.msra.mxu0 0.0
    %1740 = vmatprep.subr.mxu0 0.0
    %1741 = vmatpush1.msra.mxu0 0.0
    %1742 = vmatprep.subr.mxu0 0.0
    %1743 = vmatpush1.msra.mxu0 0.0
    %1744 = vmatprep.subr.mxu0 0.0
    %1745 = vmatpush1.msra.mxu0 0.0
    %1746 = vmatprep.subr.mxu0 0.0
    %1747 = vmatpush1.msra.mxu0 0.0
    %1748 = vmatprep.subr.mxu0 0.0
    %1749 = vmatpush1.msra.mxu0 0.0
    %1750 = vmatprep.subr.mxu0 0.0
    %1751 = vmatpush1.msra.mxu0 0.0
    %1752 = vmatprep.subr.mxu0 0.0
    %1753 = vmatpush1.msra.mxu0 0.0
    %1754 = vmatprep.subr.mxu0 0.0
    %1755 = vmatpush1.msra.mxu0 0.0
    %1756 = vmatprep.subr.mxu0 0.0
    %1757 = vmatpush1.msra.mxu0 0.0
    %1758 = vmatprep.subr.mxu0 0.0
    %1759 = vmatpush1.msra.mxu0 0.0
    %1760 = vmatprep.mubr.f32.mxu0 0.0
    %v1761 = vand.u32 %v1595, 4294901760
    %1762 = vmatmul.mubr.f32.gmra.mrb[0].mxu0 %v1761
    %v1763 = vpop.f32.mrb[0].mxu0
    %v1764 = vadd.f32 %v1673, %v1763
    %v1765 = vpop.f32.mrb[0].mxu0
    %1766 = vdwg.mxu0
    %1767 = vmatprep.subr.mxu0 0.0
    %v1768 = vand.u32 %v1042, 4294901760
    %v1769 = vsub.f32 %v1042, %v1768
    %1770 = vmatpush1.msra.mxu0 %v1769
    %1771 = vmatprep.subr.mxu0 0.0
    %v1772 = vand.u32 %v1043, 4294901760
    %v1773 = vsub.f32 %v1043, %v1772
    %1774 = vmatpush1.msra.mxu0 %v1773
    %1775 = vmatprep.subr.mxu0 0.0
    %v1776 = vand.u32 %v1044, 4294901760
    %v1777 = vsub.f32 %v1044, %v1776
    %1778 = vmatpush1.msra.mxu0 %v1777
    %1779 = vmatprep.subr.mxu0 0.0
    %v1780 = vand.u32 %v1045, 4294901760
    %v1781 = vsub.f32 %v1045, %v1780
    %1782 = vmatpush1.msra.mxu0 %v1781
    %1783 = vmatprep.subr.mxu0 0.0
    %1784 = vmatpush1.msra.mxu0 0.0
    %1785 = vmatprep.subr.mxu0 0.0
    %1786 = vmatpush1.msra.mxu0 0.0
    %1787 = vmatprep.subr.mxu0 0.0
    %1788 = vmatpush1.msra.mxu0 0.0
    %1789 = vmatprep.subr.mxu0 0.0
    %1790 = vmatpush1.msra.mxu0 0.0
    %1791 = vmatprep.subr.mxu0 0.0
    %1792 = vmatpush1.msra.mxu0 0.0
    %1793 = vmatprep.subr.mxu0 0.0
    %1794 = vmatpush1.msra.mxu0 0.0
    %1795 = vmatprep.subr.mxu0 0.0
    %1796 = vmatpush1.msra.mxu0 0.0
    %1797 = vmatprep.subr.mxu0 0.0
    %1798 = vmatpush1.msra.mxu0 0.0
    %1799 = vmatprep.subr.mxu0 0.0
    %1800 = vmatpush1.msra.mxu0 0.0
    %1801 = vmatprep.subr.mxu0 0.0
    %1802 = vmatpush1.msra.mxu0 0.0
    %1803 = vmatprep.subr.mxu0 0.0
    %1804 = vmatpush1.msra.mxu0 0.0
    %1805 = vmatprep.subr.mxu0 0.0
    %1806 = vmatpush1.msra.mxu0 0.0
    %1807 = vmatprep.subr.mxu0 0.0
    %1808 = vmatpush1.msra.mxu0 0.0
    %1809 = vmatprep.subr.mxu0 0.0
    %1810 = vmatpush1.msra.mxu0 0.0
    %1811 = vmatprep.subr.mxu0 0.0
    %1812 = vmatpush1.msra.mxu0 0.0
    %1813 = vmatprep.subr.mxu0 0.0
    %1814 = vmatpush1.msra.mxu0 0.0
    %1815 = vmatprep.subr.mxu0 0.0
    %1816 = vmatpush1.msra.mxu0 0.0
    %1817 = vmatprep.subr.mxu0 0.0
    %1818 = vmatpush1.msra.mxu0 0.0
    %1819 = vmatprep.subr.mxu0 0.0
    %1820 = vmatpush1.msra.mxu0 0.0
    %1821 = vmatprep.subr.mxu0 0.0
    %1822 = vmatpush1.msra.mxu0 0.0
    %1823 = vmatprep.subr.mxu0 0.0
    %1824 = vmatpush1.msra.mxu0 0.0
    %1825 = vmatprep.subr.mxu0 0.0
    %1826 = vmatpush1.msra.mxu0 0.0
    %1827 = vmatprep.subr.mxu0 0.0
    %1828 = vmatpush1.msra.mxu0 0.0
    %1829 = vmatprep.subr.mxu0 0.0
    %1830 = vmatpush1.msra.mxu0 0.0
    %1831 = vmatprep.subr.mxu0 0.0
    %1832 = vmatpush1.msra.mxu0 0.0
    %1833 = vmatprep.subr.mxu0 0.0
    %1834 = vmatpush1.msra.mxu0 0.0
    %1835 = vmatprep.subr.mxu0 0.0
    %1836 = vmatpush1.msra.mxu0 0.0
    %1837 = vmatprep.subr.mxu0 0.0
    %1838 = vmatpush1.msra.mxu0 0.0
    %1839 = vmatprep.mubr.f32.mxu0 0.0
    %v1840 = vand.u32 %v1595, 4294901760
    %v1841 = vsub.f32 %v1595, %v1840
    %1842 = vmatmul.mubr.f32.gmra.mrb[0].mxu0 %v1841
    %v1843 = vpop.f32.mrb[0].mxu0
    %v1844 = vadd.f32 %v1764, %v1843
    %v1845 = vpop.f32.mrb[0].mxu0
    %1846 = vdwg.mxu0
    %1847 = vmatprep.subr.mxu0 0.0
    %v1848 = vand.u32 %v1042, 4294901760
    %1849 = vmatpush1.msra.mxu0 %v1848
    %1850 = vmatprep.subr.mxu0 0.0
    %v1851 = vand.u32 %v1043, 4294901760
    %1852 = vmatpush1.msra.mxu0 %v1851
    %1853 = vmatprep.subr.mxu0 0.0
    %v1854 = vand.u32 %v1044, 4294901760
    %1855 = vmatpush1.msra.mxu0 %v1854
    %1856 = vmatprep.subr.mxu0 0.0
    %v1857 = vand.u32 %v1045, 4294901760
    %1858 = vmatpush1.msra.mxu0 %v1857
    %1859 = vmatprep.subr.mxu0 0.0
    %1860 = vmatpush1.msra.mxu0 0.0
    %1861 = vmatprep.subr.mxu0 0.0
    %1862 = vmatpush1.msra.mxu0 0.0
    %1863 = vmatprep.subr.mxu0 0.0
    %1864 = vmatpush1.msra.mxu0 0.0
    %1865 = vmatprep.subr.mxu0 0.0
    %1866 = vmatpush1.msra.mxu0 0.0
    %1867 = vmatprep.subr.mxu0 0.0
    %1868 = vmatpush1.msra.mxu0 0.0
    %1869 = vmatprep.subr.mxu0 0.0
    %1870 = vmatpush1.msra.mxu0 0.0
    %1871 = vmatprep.subr.mxu0 0.0
    %1872 = vmatpush1.msra.mxu0 0.0
    %1873 = vmatprep.subr.mxu0 0.0
    %1874 = vmatpush1.msra.mxu0 0.0
    %1875 = vmatprep.subr.mxu0 0.0
    %1876 = vmatpush1.msra.mxu0 0.0
    %1877 = vmatprep.subr.mxu0 0.0
    %1878 = vmatpush1.msra.mxu0 0.0
    %1879 = vmatprep.subr.mxu0 0.0
    %1880 = vmatpush1.msra.mxu0 0.0
    %1881 = vmatprep.subr.mxu0 0.0
    %1882 = vmatpush1.msra.mxu0 0.0
    %1883 = vmatprep.subr.mxu0 0.0
    %1884 = vmatpush1.msra.mxu0 0.0
    %1885 = vmatprep.subr.mxu0 0.0
    %1886 = vmatpush1.msra.mxu0 0.0
    %1887 = vmatprep.subr.mxu0 0.0
    %1888 = vmatpush1.msra.mxu0 0.0
    %1889 = vmatprep.subr.mxu0 0.0
    %1890 = vmatpush1.msra.mxu0 0.0
    %1891 = vmatprep.subr.mxu0 0.0
    %1892 = vmatpush1.msra.mxu0 0.0
    %1893 = vmatprep.subr.mxu0 0.0
    %1894 = vmatpush1.msra.mxu0 0.0
    %1895 = vmatprep.subr.mxu0 0.0
    %1896 = vmatpush1.msra.mxu0 0.0
    %1897 = vmatprep.subr.mxu0 0.0
    %1898 = vmatpush1.msra.mxu0 0.0
    %1899 = vmatprep.subr.mxu0 0.0
    %1900 = vmatpush1.msra.mxu0 0.0
    %1901 = vmatprep.subr.mxu0 0.0
    %1902 = vmatpush1.msra.mxu0 0.0
    %1903 = vmatprep.subr.mxu0 0.0
    %1904 = vmatpush1.msra.mxu0 0.0
    %1905 = vmatprep.subr.mxu0 0.0
    %1906 = vmatpush1.msra.mxu0 0.0
    %1907 = vmatprep.subr.mxu0 0.0
    %1908 = vmatpush1.msra.mxu0 0.0
    %1909 = vmatprep.subr.mxu0 0.0
    %1910 = vmatpush1.msra.mxu0 0.0
    %1911 = vmatprep.subr.mxu0 0.0
    %1912 = vmatpush1.msra.mxu0 0.0
    %1913 = vmatprep.subr.mxu0 0.0
    %1914 = vmatpush1.msra.mxu0 0.0
    %1915 = vmatprep.mubr.f32.mxu0 0.0
    %v1916 = vand.u32 %v1595, 4294901760
    %v1917 = vsub.f32 %v1595, %v1916
    %v1918 = vand.u32 %v1917, 4294901760
    %1919 = vmatmul.mubr.f32.gmra.mrb[0].mxu0 %v1918
    %v1920 = vpop.f32.mrb[0].mxu0
    %v1921 = vadd.f32 %v1844, %v1920
    %v1922 = vpop.f32.mrb[0].mxu0
    %1923 = vdwg.mxu0
    %1924 = vmatprep.subr.mxu0 0.0
    %v1925 = vand.u32 %v1042, 4294901760
    %v1926 = vsub.f32 %v1042, %v1925
    %v1927 = vand.u32 %v1926, 4294901760
    %1928 = vmatpush1.msra.mxu0 %v1927
    %1929 = vmatprep.subr.mxu0 0.0
    %v1930 = vand.u32 %v1043, 4294901760
    %v1931 = vsub.f32 %v1043, %v1930
    %v1932 = vand.u32 %v1931, 4294901760
    %1933 = vmatpush1.msra.mxu0 %v1932
    %1934 = vmatprep.subr.mxu0 0.0
    %v1935 = vand.u32 %v1044, 4294901760
    %v1936 = vsub.f32 %v1044, %v1935
    %v1937 = vand.u32 %v1936, 4294901760
    %1938 = vmatpush1.msra.mxu0 %v1937
    %1939 = vmatprep.subr.mxu0 0.0
    %v1940 = vand.u32 %v1045, 4294901760
    %v1941 = vsub.f32 %v1045, %v1940
    %v1942 = vand.u32 %v1941, 4294901760
    %1943 = vmatpush1.msra.mxu0 %v1942
    %1944 = vmatprep.subr.mxu0 0.0
    %1945 = vmatpush1.msra.mxu0 0.0
    %1946 = vmatprep.subr.mxu0 0.0
    %1947 = vmatpush1.msra.mxu0 0.0
    %1948 = vmatprep.subr.mxu0 0.0
    %1949 = vmatpush1.msra.mxu0 0.0
    %1950 = vmatprep.subr.mxu0 0.0
    %1951 = vmatpush1.msra.mxu0 0.0
    %1952 = vmatprep.subr.mxu0 0.0
    %1953 = vmatpush1.msra.mxu0 0.0
    %1954 = vmatprep.subr.mxu0 0.0
    %1955 = vmatpush1.msra.mxu0 0.0
    %1956 = vmatprep.subr.mxu0 0.0
    %1957 = vmatpush1.msra.mxu0 0.0
    %1958 = vmatprep.subr.mxu0 0.0
    %1959 = vmatpush1.msra.mxu0 0.0
    %1960 = vmatprep.subr.mxu0 0.0
    %1961 = vmatpush1.msra.mxu0 0.0
    %1962 = vmatprep.subr.mxu0 0.0
    %1963 = vmatpush1.msra.mxu0 0.0
    %1964 = vmatprep.subr.mxu0 0.0
    %1965 = vmatpush1.msra.mxu0 0.0
    %1966 = vmatprep.subr.mxu0 0.0
    %1967 = vmatpush1.msra.mxu0 0.0
    %1968 = vmatprep.subr.mxu0 0.0
    %1969 = vmatpush1.msra.mxu0 0.0
    %1970 = vmatprep.subr.mxu0 0.0
    %1971 = vmatpush1.msra.mxu0 0.0
    %1972 = vmatprep.subr.mxu0 0.0
    %1973 = vmatpush1.msra.mxu0 0.0
    %1974 = vmatprep.subr.mxu0 0.0
    %1975 = vmatpush1.msra.mxu0 0.0
    %1976 = vmatprep.subr.mxu0 0.0
    %1977 = vmatpush1.msra.mxu0 0.0
    %1978 = vmatprep.subr.mxu0 0.0
    %1979 = vmatpush1.msra.mxu0 0.0
    %1980 = vmatprep.subr.mxu0 0.0
    %1981 = vmatpush1.msra.mxu0 0.0
    %1982 = vmatprep.subr.mxu0 0.0
    %1983 = vmatpush1.msra.mxu0 0.0
    %1984 = vmatprep.subr.mxu0 0.0
    %1985 = vmatpush1.msra.mxu0 0.0
    %1986 = vmatprep.subr.mxu0 0.0
    %1987 = vmatpush1.msra.mxu0 0.0
    %1988 = vmatprep.subr.mxu0 0.0
    %1989 = vmatpush1.msra.mxu0 0.0
    %1990 = vmatprep.subr.mxu0 0.0
    %1991 = vmatpush1.msra.mxu0 0.0
    %1992 = vmatprep.subr.mxu0 0.0
    %1993 = vmatpush1.msra.mxu0 0.0
    %1994 = vmatprep.subr.mxu0 0.0
    %1995 = vmatpush1.msra.mxu0 0.0
    %1996 = vmatprep.subr.mxu0 0.0
    %1997 = vmatpush1.msra.mxu0 0.0
    %1998 = vmatprep.subr.mxu0 0.0
    %1999 = vmatpush1.msra.mxu0 0.0
    %2000 = vmatprep.mubr.f32.mxu0 0.0
    %v2001 = vand.u32 %v1595, 4294901760
    %2002 = vmatmul.mubr.f32.gmra.mrb[0].mxu0 %v2001
    %v2003 = vpop.f32.mrb[0].mxu0
    %v2004 = vadd.f32 %v1921, %v2003
    %v2005 = vpop.f32.mrb[0].mxu0
    %2006 = vdwg.mxu0
    %2007 = vmatprep.subr.mxu0 0.0
    %v2008 = vand.u32 %v1042, 4294901760
    %2009 = vmatpush1.msra.mxu0 %v2008
    %2010 = vmatprep.subr.mxu0 0.0
    %v2011 = vand.u32 %v1043, 4294901760
    %2012 = vmatpush1.msra.mxu0 %v2011
    %2013 = vmatprep.subr.mxu0 0.0
    %v2014 = vand.u32 %v1044, 4294901760
    %2015 = vmatpush1.msra.mxu0 %v2014
    %2016 = vmatprep.subr.mxu0 0.0
    %v2017 = vand.u32 %v1045, 4294901760
    %2018 = vmatpush1.msra.mxu0 %v2017
    %2019 = vmatprep.subr.mxu0 0.0
    %2020 = vmatpush1.msra.mxu0 0.0
    %2021 = vmatprep.subr.mxu0 0.0
    %2022 = vmatpush1.msra.mxu0 0.0
    %2023 = vmatprep.subr.mxu0 0.0
    %2024 = vmatpush1.msra.mxu0 0.0
    %2025 = vmatprep.subr.mxu0 0.0
    %2026 = vmatpush1.msra.mxu0 0.0
    %2027 = vmatprep.subr.mxu0 0.0
    %2028 = vmatpush1.msra.mxu0 0.0
    %2029 = vmatprep.subr.mxu0 0.0
    %2030 = vmatpush1.msra.mxu0 0.0
    %2031 = vmatprep.subr.mxu0 0.0
    %2032 = vmatpush1.msra.mxu0 0.0
    %2033 = vmatprep.subr.mxu0 0.0
    %2034 = vmatpush1.msra.mxu0 0.0
    %2035 = vmatprep.subr.mxu0 0.0
    %2036 = vmatpush1.msra.mxu0 0.0
    %2037 = vmatprep.subr.mxu0 0.0
    %2038 = vmatpush1.msra.mxu0 0.0
    %2039 = vmatprep.subr.mxu0 0.0
    %2040 = vmatpush1.msra.mxu0 0.0
    %2041 = vmatprep.subr.mxu0 0.0
    %2042 = vmatpush1.msra.mxu0 0.0
    %2043 = vmatprep.subr.mxu0 0.0
    %2044 = vmatpush1.msra.mxu0 0.0
    %2045 = vmatprep.subr.mxu0 0.0
    %2046 = vmatpush1.msra.mxu0 0.0
    %2047 = vmatprep.subr.mxu0 0.0
    %2048 = vmatpush1.msra.mxu0 0.0
    %2049 = vmatprep.subr.mxu0 0.0
    %2050 = vmatpush1.msra.mxu0 0.0
    %2051 = vmatprep.subr.mxu0 0.0
    %2052 = vmatpush1.msra.mxu0 0.0
    %2053 = vmatprep.subr.mxu0 0.0
    %2054 = vmatpush1.msra.mxu0 0.0
    %2055 = vmatprep.subr.mxu0 0.0
    %2056 = vmatpush1.msra.mxu0 0.0
    %2057 = vmatprep.subr.mxu0 0.0
    %2058 = vmatpush1.msra.mxu0 0.0
    %2059 = vmatprep.subr.mxu0 0.0
    %2060 = vmatpush1.msra.mxu0 0.0
    %2061 = vmatprep.subr.mxu0 0.0
    %2062 = vmatpush1.msra.mxu0 0.0
    %2063 = vmatprep.subr.mxu0 0.0
    %2064 = vmatpush1.msra.mxu0 0.0
    %2065 = vmatprep.subr.mxu0 0.0
    %2066 = vmatpush1.msra.mxu0 0.0
    %2067 = vmatprep.subr.mxu0 0.0
    %2068 = vmatpush1.msra.mxu0 0.0
    %2069 = vmatprep.subr.mxu0 0.0
    %2070 = vmatpush1.msra.mxu0 0.0
    %2071 = vmatprep.subr.mxu0 0.0
    %2072 = vmatpush1.msra.mxu0 0.0
    %2073 = vmatprep.subr.mxu0 0.0
    %2074 = vmatpush1.msra.mxu0 0.0
    %2075 = vmatprep.mubr.f32.mxu0 0.0
    %v2076 = vand.u32 %v1595, 4294901760
    %2077 = vmatmul.mubr.f32.gmra.mrb[0].mxu0 %v2076
    %v2078 = vpop.f32.mrb[0].mxu0
    %v2079 = vadd.f32 %v2004, %v2078
    %v2080 = vpop.f32.mrb[0].mxu0
    %2081 = vdwg.mxu0
    %v2082 = vadd.f32 %v1009, %v2079
    %v2083 = vxor.u32 %v2082, 2147483648
    %v2084 = vmul.f32 %v2083, 1.442695
    %v2085 = vpow.pop %v2084
    %v2086 = vadd.f32 %v2085, 1.0
    %v2087 = vrcp.pop %v2086
    %v2088 = vmul.f32 1.0, %v2087
    %v2089 = vadd.f32 %v2079, %v1570
    %2091 = vrot.lane.b32.xlu0 %v2089, 64
    %v2092 = vpop.permute.xlu0 %2091
    %v2094 = vmul.f32 %v2088, %v2092
    %2096 = vrot.lane.b32.xlu0 %v2094, 64
    %v2097 = vpop.permute.xlu0 %2096
    %v2099 = vadd.f32 %v1009, %v2097
    %v2100 = vtanh.pop %v2099
    %v2101 = vsub.f32 1.0, %v2088
    %2103 = vrot.lane.b32.xlu0 %v2100, 96
    %v2104 = vpop.permute.xlu0 %2103
    %v2106 = vmul.f32 %v2101, %v2104
    %v2107 = vmul.f32 %v2088, %v1591
    %v2108 = vadd.f32 %v2106, %v2107
    %2110 = vrot.lane.b32.xlu0 %v2108, 96
    %v2111 = vpop.permute.xlu0 %2110
    %v2112 = vsel %vm1073, %v2111, 0
    %2114 = vmatprep.subr.mxu0 0.0
    %v2115 = vand.u32 %v1042, 4294901760
    %2116 = vmatpush1.msra.mxu0 %v2115
    %2117 = vmatprep.subr.mxu0 0.0
    %v2118 = vand.u32 %v1043, 4294901760
    %2119 = vmatpush1.msra.mxu0 %v2118
    %2120 = vmatprep.subr.mxu0 0.0
    %v2121 = vand.u32 %v1044, 4294901760
    %2122 = vmatpush1.msra.mxu0 %v2121
    %2123 = vmatprep.subr.mxu0 0.0
    %v2124 = vand.u32 %v1045, 4294901760
    %2125 = vmatpush1.msra.mxu0 %v2124
    %2126 = vmatprep.subr.mxu0 0.0
    %2127 = vmatpush1.msra.mxu0 0.0
    %2128 = vmatprep.subr.mxu0 0.0
    %2129 = vmatpush1.msra.mxu0 0.0
    %2130 = vmatprep.subr.mxu0 0.0
    %2131 = vmatpush1.msra.mxu0 0.0
    %2132 = vmatprep.subr.mxu0 0.0
    %2133 = vmatpush1.msra.mxu0 0.0
    %2134 = vmatprep.subr.mxu0 0.0
    %2135 = vmatpush1.msra.mxu0 0.0
    %2136 = vmatprep.subr.mxu0 0.0
    %2137 = vmatpush1.msra.mxu0 0.0
    %2138 = vmatprep.subr.mxu0 0.0
    %2139 = vmatpush1.msra.mxu0 0.0
    %2140 = vmatprep.subr.mxu0 0.0
    %2141 = vmatpush1.msra.mxu0 0.0
    %2142 = vmatprep.subr.mxu0 0.0
    %2143 = vmatpush1.msra.mxu0 0.0
    %2144 = vmatprep.subr.mxu0 0.0
    %2145 = vmatpush1.msra.mxu0 0.0
    %2146 = vmatprep.subr.mxu0 0.0
    %2147 = vmatpush1.msra.mxu0 0.0
    %2148 = vmatprep.subr.mxu0 0.0
    %2149 = vmatpush1.msra.mxu0 0.0
    %2150 = vmatprep.subr.mxu0 0.0
    %2151 = vmatpush1.msra.mxu0 0.0
    %2152 = vmatprep.subr.mxu0 0.0
    %2153 = vmatpush1.msra.mxu0 0.0
    %2154 = vmatprep.subr.mxu0 0.0
    %2155 = vmatpush1.msra.mxu0 0.0
    %2156 = vmatprep.subr.mxu0 0.0
    %2157 = vmatpush1.msra.mxu0 0.0
    %2158 = vmatprep.subr.mxu0 0.0
    %2159 = vmatpush1.msra.mxu0 0.0
    %2160 = vmatprep.subr.mxu0 0.0
    %2161 = vmatpush1.msra.mxu0 0.0
    %2162 = vmatprep.subr.mxu0 0.0
    %2163 = vmatpush1.msra.mxu0 0.0
    %2164 = vmatprep.subr.mxu0 0.0
    %2165 = vmatpush1.msra.mxu0 0.0
    %2166 = vmatprep.subr.mxu0 0.0
    %2167 = vmatpush1.msra.mxu0 0.0
    %2168 = vmatprep.subr.mxu0 0.0
    %2169 = vmatpush1.msra.mxu0 0.0
    %2170 = vmatprep.subr.mxu0 0.0
    %2171 = vmatpush1.msra.mxu0 0.0
    %2172 = vmatprep.subr.mxu0 0.0
    %2173 = vmatpush1.msra.mxu0 0.0
    %2174 = vmatprep.subr.mxu0 0.0
    %2175 = vmatpush1.msra.mxu0 0.0
    %2176 = vmatprep.subr.mxu0 0.0
    %2177 = vmatpush1.msra.mxu0 0.0
    %2178 = vmatprep.subr.mxu0 0.0
    %2179 = vmatpush1.msra.mxu0 0.0
    %2180 = vmatprep.subr.mxu0 0.0
    %2181 = vmatpush1.msra.mxu0 0.0
    %2182 = vmatprep.mubr.f32.mxu0 0.0
    %v2183 = vand.u32 %v2112, 4294901760
    %v2184 = vsub.f32 %v2112, %v2183
    %v2185 = vand.u32 %v2184, 4294901760
    %v2186 = vsub.f32 %v2184, %v2185
    %v2187 = vand.u32 %v2186, 4294901760
    %2188 = vmatmul.mubr.f32.gmra.mrb[0].mxu0 %v2187
    %v2189 = vpop.f32.mrb[0].mxu0
    %v2190 = vadd.f32 0.0, %v2189
    %v2191 = vpop.f32.mrb[0].mxu0
    %2192 = vdwg.mxu0
    %2193 = vmatprep.subr.mxu0 0.0
    %v2194 = vand.u32 %v1042, 4294901760
    %v2195 = vsub.f32 %v1042, %v2194
    %v2196 = vand.u32 %v2195, 4294901760
    %v2197 = vsub.f32 %v2195, %v2196
    %v2198 = vand.u32 %v2197, 4294901760
    %2199 = vmatpush1.msra.mxu0 %v2198
    %2200 = vmatprep.subr.mxu0 0.0
    %v2201 = vand.u32 %v1043, 4294901760
    %v2202 = vsub.f32 %v1043, %v2201
    %v2203 = vand.u32 %v2202, 4294901760
    %v2204 = vsub.f32 %v2202, %v2203
    %v2205 = vand.u32 %v2204, 4294901760
    %2206 = vmatpush1.msra.mxu0 %v2205
    %2207 = vmatprep.subr.mxu0 0.0
    %v2208 = vand.u32 %v1044, 4294901760
    %v2209 = vsub.f32 %v1044, %v2208
    %v2210 = vand.u32 %v2209, 4294901760
    %v2211 = vsub.f32 %v2209, %v2210
    %v2212 = vand.u32 %v2211, 4294901760
    %2213 = vmatpush1.msra.mxu0 %v2212
    %2214 = vmatprep.subr.mxu0 0.0
    %v2215 = vand.u32 %v1045, 4294901760
    %v2216 = vsub.f32 %v1045, %v2215
    %v2217 = vand.u32 %v2216, 4294901760
    %v2218 = vsub.f32 %v2216, %v2217
    %v2219 = vand.u32 %v2218, 4294901760
    %2220 = vmatpush1.msra.mxu0 %v2219
    %2221 = vmatprep.subr.mxu0 0.0
    %2222 = vmatpush1.msra.mxu0 0.0
    %2223 = vmatprep.subr.mxu0 0.0
    %2224 = vmatpush1.msra.mxu0 0.0
    %2225 = vmatprep.subr.mxu0 0.0
    %2226 = vmatpush1.msra.mxu0 0.0
    %2227 = vmatprep.subr.mxu0 0.0
    %2228 = vmatpush1.msra.mxu0 0.0
    %2229 = vmatprep.subr.mxu0 0.0
    %2230 = vmatpush1.msra.mxu0 0.0
    %2231 = vmatprep.subr.mxu0 0.0
    %2232 = vmatpush1.msra.mxu0 0.0
    %2233 = vmatprep.subr.mxu0 0.0
    %2234 = vmatpush1.msra.mxu0 0.0
    %2235 = vmatprep.subr.mxu0 0.0
    %2236 = vmatpush1.msra.mxu0 0.0
    %2237 = vmatprep.subr.mxu0 0.0
    %2238 = vmatpush1.msra.mxu0 0.0
    %2239 = vmatprep.subr.mxu0 0.0
    %2240 = vmatpush1.msra.mxu0 0.0
    %2241 = vmatprep.subr.mxu0 0.0
    %2242 = vmatpush1.msra.mxu0 0.0
    %2243 = vmatprep.subr.mxu0 0.0
    %2244 = vmatpush1.msra.mxu0 0.0
    %2245 = vmatprep.subr.mxu0 0.0
    %2246 = vmatpush1.msra.mxu0 0.0
    %2247 = vmatprep.subr.mxu0 0.0
    %2248 = vmatpush1.msra.mxu0 0.0
    %2249 = vmatprep.subr.mxu0 0.0
    %2250 = vmatpush1.msra.mxu0 0.0
    %2251 = vmatprep.subr.mxu0 0.0
    %2252 = vmatpush1.msra.mxu0 0.0
    %2253 = vmatprep.subr.mxu0 0.0
    %2254 = vmatpush1.msra.mxu0 0.0
    %2255 = vmatprep.subr.mxu0 0.0
    %2256 = vmatpush1.msra.mxu0 0.0
    %2257 = vmatprep.subr.mxu0 0.0
    %2258 = vmatpush1.msra.mxu0 0.0
    %2259 = vmatprep.subr.mxu0 0.0
    %2260 = vmatpush1.msra.mxu0 0.0
    %2261 = vmatprep.subr.mxu0 0.0
    %2262 = vmatpush1.msra.mxu0 0.0
    %2263 = vmatprep.subr.mxu0 0.0
    %2264 = vmatpush1.msra.mxu0 0.0
    %2265 = vmatprep.subr.mxu0 0.0
    %2266 = vmatpush1.msra.mxu0 0.0
    %2267 = vmatprep.subr.mxu0 0.0
    %2268 = vmatpush1.msra.mxu0 0.0
    %2269 = vmatprep.subr.mxu0 0.0
    %2270 = vmatpush1.msra.mxu0 0.0
    %2271 = vmatprep.subr.mxu0 0.0
    %2272 = vmatpush1.msra.mxu0 0.0
    %2273 = vmatprep.subr.mxu0 0.0
    %2274 = vmatpush1.msra.mxu0 0.0
    %2275 = vmatprep.subr.mxu0 0.0
    %2276 = vmatpush1.msra.mxu0 0.0
    %2277 = vmatprep.mubr.f32.mxu0 0.0
    %v2278 = vand.u32 %v2112, 4294901760
    %2279 = vmatmul.mubr.f32.gmra.mrb[0].mxu0 %v2278
    %v2280 = vpop.f32.mrb[0].mxu0
    %v2281 = vadd.f32 %v2190, %v2280
    %v2282 = vpop.f32.mrb[0].mxu0
    %2283 = vdwg.mxu0
    %2284 = vmatprep.subr.mxu0 0.0
    %v2285 = vand.u32 %v1042, 4294901760
    %v2286 = vsub.f32 %v1042, %v2285
    %2287 = vmatpush1.msra.mxu0 %v2286
    %2288 = vmatprep.subr.mxu0 0.0
    %v2289 = vand.u32 %v1043, 4294901760
    %v2290 = vsub.f32 %v1043, %v2289
    %2291 = vmatpush1.msra.mxu0 %v2290
    %2292 = vmatprep.subr.mxu0 0.0
    %v2293 = vand.u32 %v1044, 4294901760
    %v2294 = vsub.f32 %v1044, %v2293
    %2295 = vmatpush1.msra.mxu0 %v2294
    %2296 = vmatprep.subr.mxu0 0.0
    %v2297 = vand.u32 %v1045, 4294901760
    %v2298 = vsub.f32 %v1045, %v2297
    %2299 = vmatpush1.msra.mxu0 %v2298
    %2300 = vmatprep.subr.mxu0 0.0
    %2301 = vmatpush1.msra.mxu0 0.0
    %2302 = vmatprep.subr.mxu0 0.0
    %2303 = vmatpush1.msra.mxu0 0.0
    %2304 = vmatprep.subr.mxu0 0.0
    %2305 = vmatpush1.msra.mxu0 0.0
    %2306 = vmatprep.subr.mxu0 0.0
    %2307 = vmatpush1.msra.mxu0 0.0
    %2308 = vmatprep.subr.mxu0 0.0
    %2309 = vmatpush1.msra.mxu0 0.0
    %2310 = vmatprep.subr.mxu0 0.0
    %2311 = vmatpush1.msra.mxu0 0.0
    %2312 = vmatprep.subr.mxu0 0.0
    %2313 = vmatpush1.msra.mxu0 0.0
    %2314 = vmatprep.subr.mxu0 0.0
    %2315 = vmatpush1.msra.mxu0 0.0
    %2316 = vmatprep.subr.mxu0 0.0
    %2317 = vmatpush1.msra.mxu0 0.0
    %2318 = vmatprep.subr.mxu0 0.0
    %2319 = vmatpush1.msra.mxu0 0.0
    %2320 = vmatprep.subr.mxu0 0.0
    %2321 = vmatpush1.msra.mxu0 0.0
    %2322 = vmatprep.subr.mxu0 0.0
    %2323 = vmatpush1.msra.mxu0 0.0
    %2324 = vmatprep.subr.mxu0 0.0
    %2325 = vmatpush1.msra.mxu0 0.0
    %2326 = vmatprep.subr.mxu0 0.0
    %2327 = vmatpush1.msra.mxu0 0.0
    %2328 = vmatprep.subr.mxu0 0.0
    %2329 = vmatpush1.msra.mxu0 0.0
    %2330 = vmatprep.subr.mxu0 0.0
    %2331 = vmatpush1.msra.mxu0 0.0
    %2332 = vmatprep.subr.mxu0 0.0
    %2333 = vmatpush1.msra.mxu0 0.0
    %2334 = vmatprep.subr.mxu0 0.0
    %2335 = vmatpush1.msra.mxu0 0.0
    %2336 = vmatprep.subr.mxu0 0.0
    %2337 = vmatpush1.msra.mxu0 0.0
    %2338 = vmatprep.subr.mxu0 0.0
    %2339 = vmatpush1.msra.mxu0 0.0
    %2340 = vmatprep.subr.mxu0 0.0
    %2341 = vmatpush1.msra.mxu0 0.0
    %2342 = vmatprep.subr.mxu0 0.0
    %2343 = vmatpush1.msra.mxu0 0.0
    %2344 = vmatprep.subr.mxu0 0.0
    %2345 = vmatpush1.msra.mxu0 0.0
    %2346 = vmatprep.subr.mxu0 0.0
    %2347 = vmatpush1.msra.mxu0 0.0
    %2348 = vmatprep.subr.mxu0 0.0
    %2349 = vmatpush1.msra.mxu0 0.0
    %2350 = vmatprep.subr.mxu0 0.0
    %2351 = vmatpush1.msra.mxu0 0.0
    %2352 = vmatprep.subr.mxu0 0.0
    %2353 = vmatpush1.msra.mxu0 0.0
    %2354 = vmatprep.subr.mxu0 0.0
    %2355 = vmatpush1.msra.mxu0 0.0
    %2356 = vmatprep.mubr.f32.mxu0 0.0
    %v2357 = vand.u32 %v2112, 4294901760
    %v2358 = vsub.f32 %v2112, %v2357
    %2359 = vmatmul.mubr.f32.gmra.mrb[0].mxu0 %v2358
    %v2360 = vpop.f32.mrb[0].mxu0
    %v2361 = vadd.f32 %v2281, %v2360
    %v2362 = vpop.f32.mrb[0].mxu0
    %2363 = vdwg.mxu0
    %2364 = vmatprep.subr.mxu0 0.0
    %v2365 = vand.u32 %v1042, 4294901760
    %2366 = vmatpush1.msra.mxu0 %v2365
    %2367 = vmatprep.subr.mxu0 0.0
    %v2368 = vand.u32 %v1043, 4294901760
    %2369 = vmatpush1.msra.mxu0 %v2368
    %2370 = vmatprep.subr.mxu0 0.0
    %v2371 = vand.u32 %v1044, 4294901760
    %2372 = vmatpush1.msra.mxu0 %v2371
    %2373 = vmatprep.subr.mxu0 0.0
    %v2374 = vand.u32 %v1045, 4294901760
    %2375 = vmatpush1.msra.mxu0 %v2374
    %2376 = vmatprep.subr.mxu0 0.0
    %2377 = vmatpush1.msra.mxu0 0.0
    %2378 = vmatprep.subr.mxu0 0.0
    %2379 = vmatpush1.msra.mxu0 0.0
    %2380 = vmatprep.subr.mxu0 0.0
    %2381 = vmatpush1.msra.mxu0 0.0
    %2382 = vmatprep.subr.mxu0 0.0
    %2383 = vmatpush1.msra.mxu0 0.0
    %2384 = vmatprep.subr.mxu0 0.0
    %2385 = vmatpush1.msra.mxu0 0.0
    %2386 = vmatprep.subr.mxu0 0.0
    %2387 = vmatpush1.msra.mxu0 0.0
    %2388 = vmatprep.subr.mxu0 0.0
    %2389 = vmatpush1.msra.mxu0 0.0
    %2390 = vmatprep.subr.mxu0 0.0
    %2391 = vmatpush1.msra.mxu0 0.0
    %2392 = vmatprep.subr.mxu0 0.0
    %2393 = vmatpush1.msra.mxu0 0.0
    %2394 = vmatprep.subr.mxu0 0.0
    %2395 = vmatpush1.msra.mxu0 0.0
    %2396 = vmatprep.subr.mxu0 0.0
    %2397 = vmatpush1.msra.mxu0 0.0
    %2398 = vmatprep.subr.mxu0 0.0
    %2399 = vmatpush1.msra.mxu0 0.0
    %2400 = vmatprep.subr.mxu0 0.0
    %2401 = vmatpush1.msra.mxu0 0.0
    %2402 = vmatprep.subr.mxu0 0.0
    %2403 = vmatpush1.msra.mxu0 0.0
    %2404 = vmatprep.subr.mxu0 0.0
    %2405 = vmatpush1.msra.mxu0 0.0
    %2406 = vmatprep.subr.mxu0 0.0
    %2407 = vmatpush1.msra.mxu0 0.0
    %2408 = vmatprep.subr.mxu0 0.0
    %2409 = vmatpush1.msra.mxu0 0.0
    %2410 = vmatprep.subr.mxu0 0.0
    %2411 = vmatpush1.msra.mxu0 0.0
    %2412 = vmatprep.subr.mxu0 0.0
    %2413 = vmatpush1.msra.mxu0 0.0
    %2414 = vmatprep.subr.mxu0 0.0
    %2415 = vmatpush1.msra.mxu0 0.0
    %2416 = vmatprep.subr.mxu0 0.0
    %2417 = vmatpush1.msra.mxu0 0.0
    %2418 = vmatprep.subr.mxu0 0.0
    %2419 = vmatpush1.msra.mxu0 0.0
    %2420 = vmatprep.subr.mxu0 0.0
    %2421 = vmatpush1.msra.mxu0 0.0
    %2422 = vmatprep.subr.mxu0 0.0
    %2423 = vmatpush1.msra.mxu0 0.0
    %2424 = vmatprep.subr.mxu0 0.0
    %2425 = vmatpush1.msra.mxu0 0.0
    %2426 = vmatprep.subr.mxu0 0.0
    %2427 = vmatpush1.msra.mxu0 0.0
    %2428 = vmatprep.subr.mxu0 0.0
    %2429 = vmatpush1.msra.mxu0 0.0
    %2430 = vmatprep.subr.mxu0 0.0
    %2431 = vmatpush1.msra.mxu0 0.0
    %2432 = vmatprep.mubr.f32.mxu0 0.0
    %v2433 = vand.u32 %v2112, 4294901760
    %v2434 = vsub.f32 %v2112, %v2433
    %v2435 = vand.u32 %v2434, 4294901760
    %2436 = vmatmul.mubr.f32.gmra.mrb[0].mxu0 %v2435
    %v2437 = vpop.f32.mrb[0].mxu0
    %v2438 = vadd.f32 %v2361, %v2437
    %v2439 = vpop.f32.mrb[0].mxu0
    %2440 = vdwg.mxu0
    %2441 = vmatprep.subr.mxu0 0.0
    %v2442 = vand.u32 %v1042, 4294901760
    %v2443 = vsub.f32 %v1042, %v2442
    %v2444 = vand.u32 %v2443, 4294901760
    %2445 = vmatpush1.msra.mxu0 %v2444
    %2446 = vmatprep.subr.mxu0 0.0
    %v2447 = vand.u32 %v1043, 4294901760
    %v2448 = vsub.f32 %v1043, %v2447
    %v2449 = vand.u32 %v2448, 4294901760
    %2450 = vmatpush1.msra.mxu0 %v2449
    %2451 = vmatprep.subr.mxu0 0.0
    %v2452 = vand.u32 %v1044, 4294901760
    %v2453 = vsub.f32 %v1044, %v2452
    %v2454 = vand.u32 %v2453, 4294901760
    %2455 = vmatpush1.msra.mxu0 %v2454
    %2456 = vmatprep.subr.mxu0 0.0
    %v2457 = vand.u32 %v1045, 4294901760
    %v2458 = vsub.f32 %v1045, %v2457
    %v2459 = vand.u32 %v2458, 4294901760
    %2460 = vmatpush1.msra.mxu0 %v2459
    %2461 = vmatprep.subr.mxu0 0.0
    %2462 = vmatpush1.msra.mxu0 0.0
    %2463 = vmatprep.subr.mxu0 0.0
    %2464 = vmatpush1.msra.mxu0 0.0
    %2465 = vmatprep.subr.mxu0 0.0
    %2466 = vmatpush1.msra.mxu0 0.0
    %2467 = vmatprep.subr.mxu0 0.0
    %2468 = vmatpush1.msra.mxu0 0.0
    %2469 = vmatprep.subr.mxu0 0.0
    %2470 = vmatpush1.msra.mxu0 0.0
    %2471 = vmatprep.subr.mxu0 0.0
    %2472 = vmatpush1.msra.mxu0 0.0
    %2473 = vmatprep.subr.mxu0 0.0
    %2474 = vmatpush1.msra.mxu0 0.0
    %2475 = vmatprep.subr.mxu0 0.0
    %2476 = vmatpush1.msra.mxu0 0.0
    %2477 = vmatprep.subr.mxu0 0.0
    %2478 = vmatpush1.msra.mxu0 0.0
    %2479 = vmatprep.subr.mxu0 0.0
    %2480 = vmatpush1.msra.mxu0 0.0
    %2481 = vmatprep.subr.mxu0 0.0
    %2482 = vmatpush1.msra.mxu0 0.0
    %2483 = vmatprep.subr.mxu0 0.0
    %2484 = vmatpush1.msra.mxu0 0.0
    %2485 = vmatprep.subr.mxu0 0.0
    %2486 = vmatpush1.msra.mxu0 0.0
    %2487 = vmatprep.subr.mxu0 0.0
    %2488 = vmatpush1.msra.mxu0 0.0
    %2489 = vmatprep.subr.mxu0 0.0
    %2490 = vmatpush1.msra.mxu0 0.0
    %2491 = vmatprep.subr.mxu0 0.0
    %2492 = vmatpush1.msra.mxu0 0.0
    %2493 = vmatprep.subr.mxu0 0.0
    %2494 = vmatpush1.msra.mxu0 0.0
    %2495 = vmatprep.subr.mxu0 0.0
    %2496 = vmatpush1.msra.mxu0 0.0
    %2497 = vmatprep.subr.mxu0 0.0
    %2498 = vmatpush1.msra.mxu0 0.0
    %2499 = vmatprep.subr.mxu0 0.0
    %2500 = vmatpush1.msra.mxu0 0.0
    %2501 = vmatprep.subr.mxu0 0.0
    %2502 = vmatpush1.msra.mxu0 0.0
    %2503 = vmatprep.subr.mxu0 0.0
    %2504 = vmatpush1.msra.mxu0 0.0
    %2505 = vmatprep.subr.mxu0 0.0
    %2506 = vmatpush1.msra.mxu0 0.0
    %2507 = vmatprep.subr.mxu0 0.0
    %2508 = vmatpush1.msra.mxu0 0.0
    %2509 = vmatprep.subr.mxu0 0.0
    %2510 = vmatpush1.msra.mxu0 0.0
    %2511 = vmatprep.subr.mxu0 0.0
    %2512 = vmatpush1.msra.mxu0 0.0
    %2513 = vmatprep.subr.mxu0 0.0
    %2514 = vmatpush1.msra.mxu0 0.0
    %2515 = vmatprep.subr.mxu0 0.0
    %2516 = vmatpush1.msra.mxu0 0.0
    %2517 = vmatprep.mubr.f32.mxu0 0.0
    %v2518 = vand.u32 %v2112, 4294901760
    %2519 = vmatmul.mubr.f32.gmra.mrb[0].mxu0 %v2518
    %v2520 = vpop.f32.mrb[0].mxu0
    %v2521 = vadd.f32 %v2438, %v2520
    %v2522 = vpop.f32.mrb[0].mxu0
    %2523 = vdwg.mxu0
    %2524 = vmatprep.subr.mxu0 0.0
    %v2525 = vand.u32 %v1042, 4294901760
    %2526 = vmatpush1.msra.mxu0 %v2525
    %2527 = vmatprep.subr.mxu0 0.0
    %v2528 = vand.u32 %v1043, 4294901760
    %2529 = vmatpush1.msra.mxu0 %v2528
    %2530 = vmatprep.subr.mxu0 0.0
    %v2531 = vand.u32 %v1044, 4294901760
    %2532 = vmatpush1.msra.mxu0 %v2531
    %2533 = vmatprep.subr.mxu0 0.0
    %v2534 = vand.u32 %v1045, 4294901760
    %2535 = vmatpush1.msra.mxu0 %v2534
    %2536 = vmatprep.subr.mxu0 0.0
    %2537 = vmatpush1.msra.mxu0 0.0
    %2538 = vmatprep.subr.mxu0 0.0
    %2539 = vmatpush1.msra.mxu0 0.0
    %2540 = vmatprep.subr.mxu0 0.0
    %2541 = vmatpush1.msra.mxu0 0.0
    %2542 = vmatprep.subr.mxu0 0.0
    %2543 = vmatpush1.msra.mxu0 0.0
    %2544 = vmatprep.subr.mxu0 0.0
    %2545 = vmatpush1.msra.mxu0 0.0
    %2546 = vmatprep.subr.mxu0 0.0
    %2547 = vmatpush1.msra.mxu0 0.0
    %2548 = vmatprep.subr.mxu0 0.0
    %2549 = vmatpush1.msra.mxu0 0.0
    %2550 = vmatprep.subr.mxu0 0.0
    %2551 = vmatpush1.msra.mxu0 0.0
    %2552 = vmatprep.subr.mxu0 0.0
    %2553 = vmatpush1.msra.mxu0 0.0
    %2554 = vmatprep.subr.mxu0 0.0
    %2555 = vmatpush1.msra.mxu0 0.0
    %2556 = vmatprep.subr.mxu0 0.0
    %2557 = vmatpush1.msra.mxu0 0.0
    %2558 = vmatprep.subr.mxu0 0.0
    %2559 = vmatpush1.msra.mxu0 0.0
    %2560 = vmatprep.subr.mxu0 0.0
    %2561 = vmatpush1.msra.mxu0 0.0
    %2562 = vmatprep.subr.mxu0 0.0
    %2563 = vmatpush1.msra.mxu0 0.0
    %2564 = vmatprep.subr.mxu0 0.0
    %2565 = vmatpush1.msra.mxu0 0.0
    %2566 = vmatprep.subr.mxu0 0.0
    %2567 = vmatpush1.msra.mxu0 0.0
    %2568 = vmatprep.subr.mxu0 0.0
    %2569 = vmatpush1.msra.mxu0 0.0
    %2570 = vmatprep.subr.mxu0 0.0
    %2571 = vmatpush1.msra.mxu0 0.0
    %2572 = vmatprep.subr.mxu0 0.0
    %2573 = vmatpush1.msra.mxu0 0.0
    %2574 = vmatprep.subr.mxu0 0.0
    %2575 = vmatpush1.msra.mxu0 0.0
    %2576 = vmatprep.subr.mxu0 0.0
    %2577 = vmatpush1.msra.mxu0 0.0
    %2578 = vmatprep.subr.mxu0 0.0
    %2579 = vmatpush1.msra.mxu0 0.0
    %2580 = vmatprep.subr.mxu0 0.0
    %2581 = vmatpush1.msra.mxu0 0.0
    %2582 = vmatprep.subr.mxu0 0.0
    %2583 = vmatpush1.msra.mxu0 0.0
    %2584 = vmatprep.subr.mxu0 0.0
    %2585 = vmatpush1.msra.mxu0 0.0
    %2586 = vmatprep.subr.mxu0 0.0
    %2587 = vmatpush1.msra.mxu0 0.0
    %2588 = vmatprep.subr.mxu0 0.0
    %2589 = vmatpush1.msra.mxu0 0.0
    %2590 = vmatprep.subr.mxu0 0.0
    %2591 = vmatpush1.msra.mxu0 0.0
    %2592 = vmatprep.mubr.f32.mxu0 0.0
    %v2593 = vand.u32 %v2112, 4294901760
    %2594 = vmatmul.mubr.f32.gmra.mrb[0].mxu0 %v2593
    %v2595 = vpop.f32.mrb[0].mxu0
    %v2596 = vadd.f32 %v2521, %v2595
    %v2597 = vpop.f32.mrb[0].mxu0
    %2598 = vdwg.mxu0
    %v2599 = vadd.f32 %v1015, %v2596
    %v2600 = vxor.u32 %v2599, 2147483648
    %v2601 = vmul.f32 %v2600, 1.442695
    %v2602 = vpow.pop %v2601
    %v2603 = vadd.f32 %v2602, 1.0
    %v2604 = vrcp.pop %v2603
    %v2605 = vmul.f32 1.0, %v2604
    %v2606 = vadd.f32 %v2596, %v1570
    %2608 = vrot.lane.b32.xlu0 %v2606, 64
    %v2609 = vpop.permute.xlu0 %2608
    %v2611 = vmul.f32 %v2605, %v2609
    %2613 = vrot.lane.b32.xlu0 %v2611, 64
    %v2614 = vpop.permute.xlu0 %2613
    %v2616 = vadd.f32 %v1015, %v2614
    %v2617 = vtanh.pop %v2616
    %v2618 = vsub.f32 1.0, %v2605
    %2620 = vrot.lane.b32.xlu0 %v2617, 96
    %v2621 = vpop.permute.xlu0 %2620
    %v2623 = vmul.f32 %v2618, %v2621
    %v2624 = vmul.f32 %v2605, %v2108
    %v2625 = vadd.f32 %v2623, %v2624
    %2627 = vrot.lane.b32.xlu0 %v2625, 96
    %v2628 = vpop.permute.xlu0 %2627
    %v2629 = vsel %vm1073, %v2628, 0
    %2631 = vmatprep.subr.mxu0 0.0
    %v2632 = vand.u32 %v1042, 4294901760
    %2633 = vmatpush1.msra.mxu0 %v2632
    %2634 = vmatprep.subr.mxu0 0.0
    %v2635 = vand.u32 %v1043, 4294901760
    %2636 = vmatpush1.msra.mxu0 %v2635
    %2637 = vmatprep.subr.mxu0 0.0
    %v2638 = vand.u32 %v1044, 4294901760
    %2639 = vmatpush1.msra.mxu0 %v2638
    %2640 = vmatprep.subr.mxu0 0.0
    %v2641 = vand.u32 %v1045, 4294901760
    %2642 = vmatpush1.msra.mxu0 %v2641
    %2643 = vmatprep.subr.mxu0 0.0
    %2644 = vmatpush1.msra.mxu0 0.0
    %2645 = vmatprep.subr.mxu0 0.0
    %2646 = vmatpush1.msra.mxu0 0.0
    %2647 = vmatprep.subr.mxu0 0.0
    %2648 = vmatpush1.msra.mxu0 0.0
    %2649 = vmatprep.subr.mxu0 0.0
    %2650 = vmatpush1.msra.mxu0 0.0
    %2651 = vmatprep.subr.mxu0 0.0
    %2652 = vmatpush1.msra.mxu0 0.0
    %2653 = vmatprep.subr.mxu0 0.0
    %2654 = vmatpush1.msra.mxu0 0.0
    %2655 = vmatprep.subr.mxu0 0.0
    %2656 = vmatpush1.msra.mxu0 0.0
    %2657 = vmatprep.subr.mxu0 0.0
    %2658 = vmatpush1.msra.mxu0 0.0
    %2659 = vmatprep.subr.mxu0 0.0
    %2660 = vmatpush1.msra.mxu0 0.0
    %2661 = vmatprep.subr.mxu0 0.0
    %2662 = vmatpush1.msra.mxu0 0.0
    %2663 = vmatprep.subr.mxu0 0.0
    %2664 = vmatpush1.msra.mxu0 0.0
    %2665 = vmatprep.subr.mxu0 0.0
    %2666 = vmatpush1.msra.mxu0 0.0
    %2667 = vmatprep.subr.mxu0 0.0
    %2668 = vmatpush1.msra.mxu0 0.0
    %2669 = vmatprep.subr.mxu0 0.0
    %2670 = vmatpush1.msra.mxu0 0.0
    %2671 = vmatprep.subr.mxu0 0.0
    %2672 = vmatpush1.msra.mxu0 0.0
    %2673 = vmatprep.subr.mxu0 0.0
    %2674 = vmatpush1.msra.mxu0 0.0
    %2675 = vmatprep.subr.mxu0 0.0
    %2676 = vmatpush1.msra.mxu0 0.0
    %2677 = vmatprep.subr.mxu0 0.0
    %2678 = vmatpush1.msra.mxu0 0.0
    %2679 = vmatprep.subr.mxu0 0.0
    %2680 = vmatpush1.msra.mxu0 0.0
    %2681 = vmatprep.subr.mxu0 0.0
    %2682 = vmatpush1.msra.mxu0 0.0
    %2683 = vmatprep.subr.mxu0 0.0
    %2684 = vmatpush1.msra.mxu0 0.0
    %2685 = vmatprep.subr.mxu0 0.0
    %2686 = vmatpush1.msra.mxu0 0.0
    %2687 = vmatprep.subr.mxu0 0.0
    %2688 = vmatpush1.msra.mxu0 0.0
    %2689 = vmatprep.subr.mxu0 0.0
    %2690 = vmatpush1.msra.mxu0 0.0
    %2691 = vmatprep.subr.mxu0 0.0
    %2692 = vmatpush1.msra.mxu0 0.0
    %2693 = vmatprep.subr.mxu0 0.0
    %2694 = vmatpush1.msra.mxu0 0.0
    %2695 = vmatprep.subr.mxu0 0.0
    %2696 = vmatpush1.msra.mxu0 0.0
    %2697 = vmatprep.subr.mxu0 0.0
    %2698 = vmatpush1.msra.mxu0 0.0
    %2699 = vmatprep.mubr.f32.mxu0 0.0
    %v2700 = vand.u32 %v2629, 4294901760
    %v2701 = vsub.f32 %v2629, %v2700
    %v2702 = vand.u32 %v2701, 4294901760
    %v2703 = vsub.f32 %v2701, %v2702
    %v2704 = vand.u32 %v2703, 4294901760
    %2705 = vmatmul.mubr.f32.gmra.mrb[0].mxu0 %v2704
    %v2706 = vpop.f32.mrb[0].mxu0
    %v2707 = vadd.f32 0.0, %v2706
    %v2708 = vpop.f32.mrb[0].mxu0
    %2709 = vdwg.mxu0
    %2710 = vmatprep.subr.mxu0 0.0
    %v2711 = vand.u32 %v1042, 4294901760
    %v2712 = vsub.f32 %v1042, %v2711
    %v2713 = vand.u32 %v2712, 4294901760
    %v2714 = vsub.f32 %v2712, %v2713
    %v2715 = vand.u32 %v2714, 4294901760
    %2716 = vmatpush1.msra.mxu0 %v2715
    %2717 = vmatprep.subr.mxu0 0.0
    %v2718 = vand.u32 %v1043, 4294901760
    %v2719 = vsub.f32 %v1043, %v2718
    %v2720 = vand.u32 %v2719, 4294901760
    %v2721 = vsub.f32 %v2719, %v2720
    %v2722 = vand.u32 %v2721, 4294901760
    %2723 = vmatpush1.msra.mxu0 %v2722
    %2724 = vmatprep.subr.mxu0 0.0
    %v2725 = vand.u32 %v1044, 4294901760
    %v2726 = vsub.f32 %v1044, %v2725
    %v2727 = vand.u32 %v2726, 4294901760
    %v2728 = vsub.f32 %v2726, %v2727
    %v2729 = vand.u32 %v2728, 4294901760
    %2730 = vmatpush1.msra.mxu0 %v2729
    %2731 = vmatprep.subr.mxu0 0.0
    %v2732 = vand.u32 %v1045, 4294901760
    %v2733 = vsub.f32 %v1045, %v2732
    %v2734 = vand.u32 %v2733, 4294901760
    %v2735 = vsub.f32 %v2733, %v2734
    %v2736 = vand.u32 %v2735, 4294901760
    %2737 = vmatpush1.msra.mxu0 %v2736
    %2738 = vmatprep.subr.mxu0 0.0
    %2739 = vmatpush1.msra.mxu0 0.0
    %2740 = vmatprep.subr.mxu0 0.0
    %2741 = vmatpush1.msra.mxu0 0.0
    %2742 = vmatprep.subr.mxu0 0.0
    %2743 = vmatpush1.msra.mxu0 0.0
    %2744 = vmatprep.subr.mxu0 0.0
    %2745 = vmatpush1.msra.mxu0 0.0
    %2746 = vmatprep.subr.mxu0 0.0
    %2747 = vmatpush1.msra.mxu0 0.0
    %2748 = vmatprep.subr.mxu0 0.0
    %2749 = vmatpush1.msra.mxu0 0.0
    %2750 = vmatprep.subr.mxu0 0.0
    %2751 = vmatpush1.msra.mxu0 0.0
    %2752 = vmatprep.subr.mxu0 0.0
    %2753 = vmatpush1.msra.mxu0 0.0
    %2754 = vmatprep.subr.mxu0 0.0
    %2755 = vmatpush1.msra.mxu0 0.0
    %2756 = vmatprep.subr.mxu0 0.0
    %2757 = vmatpush1.msra.mxu0 0.0
    %2758 = vmatprep.subr.mxu0 0.0
    %2759 = vmatpush1.msra.mxu0 0.0
    %2760 = vmatprep.subr.mxu0 0.0
    %2761 = vmatpush1.msra.mxu0 0.0
    %2762 = vmatprep.subr.mxu0 0.0
    %2763 = vmatpush1.msra.mxu0 0.0
    %2764 = vmatprep.subr.mxu0 0.0
    %2765 = vmatpush1.msra.mxu0 0.0
    %2766 = vmatprep.subr.mxu0 0.0
    %2767 = vmatpush1.msra.mxu0 0.0
    %2768 = vmatprep.subr.mxu0 0.0
    %2769 = vmatpush1.msra.mxu0 0.0
    %2770 = vmatprep.subr.mxu0 0.0
    %2771 = vmatpush1.msra.mxu0 0.0
    %2772 = vmatprep.subr.mxu0 0.0
    %2773 = vmatpush1.msra.mxu0 0.0
    %2774 = vmatprep.subr.mxu0 0.0
    %2775 = vmatpush1.msra.mxu0 0.0
    %2776 = vmatprep.subr.mxu0 0.0
    %2777 = vmatpush1.msra.mxu0 0.0
    %2778 = vmatprep.subr.mxu0 0.0
    %2779 = vmatpush1.msra.mxu0 0.0
    %2780 = vmatprep.subr.mxu0 0.0
    %2781 = vmatpush1.msra.mxu0 0.0
    %2782 = vmatprep.subr.mxu0 0.0
    %2783 = vmatpush1.msra.mxu0 0.0
    %2784 = vmatprep.subr.mxu0 0.0
    %2785 = vmatpush1.msra.mxu0 0.0
    %2786 = vmatprep.subr.mxu0 0.0
    %2787 = vmatpush1.msra.mxu0 0.0
    %2788 = vmatprep.subr.mxu0 0.0
    %2789 = vmatpush1.msra.mxu0 0.0
    %2790 = vmatprep.subr.mxu0 0.0
    %2791 = vmatpush1.msra.mxu0 0.0
    %2792 = vmatprep.subr.mxu0 0.0
    %2793 = vmatpush1.msra.mxu0 0.0
    %2794 = vmatprep.mubr.f32.mxu0 0.0
    %v2795 = vand.u32 %v2629, 4294901760
    %2796 = vmatmul.mubr.f32.gmra.mrb[0].mxu0 %v2795
    %v2797 = vpop.f32.mrb[0].mxu0
    %v2798 = vadd.f32 %v2707, %v2797
    %v2799 = vpop.f32.mrb[0].mxu0
    %2800 = vdwg.mxu0
    %2801 = vmatprep.subr.mxu0 0.0
    %v2802 = vand.u32 %v1042, 4294901760
    %v2803 = vsub.f32 %v1042, %v2802
    %2804 = vmatpush1.msra.mxu0 %v2803
    %2805 = vmatprep.subr.mxu0 0.0
    %v2806 = vand.u32 %v1043, 4294901760
    %v2807 = vsub.f32 %v1043, %v2806
    %2808 = vmatpush1.msra.mxu0 %v2807
    %2809 = vmatprep.subr.mxu0 0.0
    %v2810 = vand.u32 %v1044, 4294901760
    %v2811 = vsub.f32 %v1044, %v2810
    %2812 = vmatpush1.msra.mxu0 %v2811
    %2813 = vmatprep.subr.mxu0 0.0
    %v2814 = vand.u32 %v1045, 4294901760
    %v2815 = vsub.f32 %v1045, %v2814
    %2816 = vmatpush1.msra.mxu0 %v2815
    %2817 = vmatprep.subr.mxu0 0.0
    %2818 = vmatpush1.msra.mxu0 0.0
    %2819 = vmatprep.subr.mxu0 0.0
    %2820 = vmatpush1.msra.mxu0 0.0
    %2821 = vmatprep.subr.mxu0 0.0
    %2822 = vmatpush1.msra.mxu0 0.0
    %2823 = vmatprep.subr.mxu0 0.0
    %2824 = vmatpush1.msra.mxu0 0.0
    %2825 = vmatprep.subr.mxu0 0.0
    %2826 = vmatpush1.msra.mxu0 0.0
    %2827 = vmatprep.subr.mxu0 0.0
    %2828 = vmatpush1.msra.mxu0 0.0
    %2829 = vmatprep.subr.mxu0 0.0
    %2830 = vmatpush1.msra.mxu0 0.0
    %2831 = vmatprep.subr.mxu0 0.0
    %2832 = vmatpush1.msra.mxu0 0.0
    %2833 = vmatprep.subr.mxu0 0.0
    %2834 = vmatpush1.msra.mxu0 0.0
    %2835 = vmatprep.subr.mxu0 0.0
    %2836 = vmatpush1.msra.mxu0 0.0
    %2837 = vmatprep.subr.mxu0 0.0
    %2838 = vmatpush1.msra.mxu0 0.0
    %2839 = vmatprep.subr.mxu0 0.0
    %2840 = vmatpush1.msra.mxu0 0.0
    %2841 = vmatprep.subr.mxu0 0.0
    %2842 = vmatpush1.msra.mxu0 0.0
    %2843 = vmatprep.subr.mxu0 0.0
    %2844 = vmatpush1.msra.mxu0 0.0
    %2845 = vmatprep.subr.mxu0 0.0
    %2846 = vmatpush1.msra.mxu0 0.0
    %2847 = vmatprep.subr.mxu0 0.0
    %2848 = vmatpush1.msra.mxu0 0.0
    %2849 = vmatprep.subr.mxu0 0.0
    %2850 = vmatpush1.msra.mxu0 0.0
    %2851 = vmatprep.subr.mxu0 0.0
    %2852 = vmatpush1.msra.mxu0 0.0
    %2853 = vmatprep.subr.mxu0 0.0
    %2854 = vmatpush1.msra.mxu0 0.0
    %2855 = vmatprep.subr.mxu0 0.0
    %2856 = vmatpush1.msra.mxu0 0.0
    %2857 = vmatprep.subr.mxu0 0.0
    %2858 = vmatpush1.msra.mxu0 0.0
    %2859 = vmatprep.subr.mxu0 0.0
    %2860 = vmatpush1.msra.mxu0 0.0
    %2861 = vmatprep.subr.mxu0 0.0
    %2862 = vmatpush1.msra.mxu0 0.0
    %2863 = vmatprep.subr.mxu0 0.0
    %2864 = vmatpush1.msra.mxu0 0.0
    %2865 = vmatprep.subr.mxu0 0.0
    %2866 = vmatpush1.msra.mxu0 0.0
    %2867 = vmatprep.subr.mxu0 0.0
    %2868 = vmatpush1.msra.mxu0 0.0
    %2869 = vmatprep.subr.mxu0 0.0
    %2870 = vmatpush1.msra.mxu0 0.0
    %2871 = vmatprep.subr.mxu0 0.0
    %2872 = vmatpush1.msra.mxu0 0.0
    %2873 = vmatprep.mubr.f32.mxu0 0.0
    %v2874 = vand.u32 %v2629, 4294901760
    %v2875 = vsub.f32 %v2629, %v2874
    %2876 = vmatmul.mubr.f32.gmra.mrb[0].mxu0 %v2875
    %v2877 = vpop.f32.mrb[0].mxu0
    %v2878 = vadd.f32 %v2798, %v2877
    %v2879 = vpop.f32.mrb[0].mxu0
    %2880 = vdwg.mxu0
    %2881 = vmatprep.subr.mxu0 0.0
    %v2882 = vand.u32 %v1042, 4294901760
    %2883 = vmatpush1.msra.mxu0 %v2882
    %2884 = vmatprep.subr.mxu0 0.0
    %v2885 = vand.u32 %v1043, 4294901760
    %2886 = vmatpush1.msra.mxu0 %v2885
    %2887 = vmatprep.subr.mxu0 0.0
    %v2888 = vand.u32 %v1044, 4294901760
    %2889 = vmatpush1.msra.mxu0 %v2888
    %2890 = vmatprep.subr.mxu0 0.0
    %v2891 = vand.u32 %v1045, 4294901760
    %2892 = vmatpush1.msra.mxu0 %v2891
    %2893 = vmatprep.subr.mxu0 0.0
    %2894 = vmatpush1.msra.mxu0 0.0
    %2895 = vmatprep.subr.mxu0 0.0
    %2896 = vmatpush1.msra.mxu0 0.0
    %2897 = vmatprep.subr.mxu0 0.0
    %2898 = vmatpush1.msra.mxu0 0.0
    %2899 = vmatprep.subr.mxu0 0.0
    %2900 = vmatpush1.msra.mxu0 0.0
    %2901 = vmatprep.subr.mxu0 0.0
    %2902 = vmatpush1.msra.mxu0 0.0
    %2903 = vmatprep.subr.mxu0 0.0
    %2904 = vmatpush1.msra.mxu0 0.0
    %2905 = vmatprep.subr.mxu0 0.0
    %2906 = vmatpush1.msra.mxu0 0.0
    %2907 = vmatprep.subr.mxu0 0.0
    %2908 = vmatpush1.msra.mxu0 0.0
    %2909 = vmatprep.subr.mxu0 0.0
    %2910 = vmatpush1.msra.mxu0 0.0
    %2911 = vmatprep.subr.mxu0 0.0
    %2912 = vmatpush1.msra.mxu0 0.0
    %2913 = vmatprep.subr.mxu0 0.0
    %2914 = vmatpush1.msra.mxu0 0.0
    %2915 = vmatprep.subr.mxu0 0.0
    %2916 = vmatpush1.msra.mxu0 0.0
    %2917 = vmatprep.subr.mxu0 0.0
    %2918 = vmatpush1.msra.mxu0 0.0
    %2919 = vmatprep.subr.mxu0 0.0
    %2920 = vmatpush1.msra.mxu0 0.0
    %2921 = vmatprep.subr.mxu0 0.0
    %2922 = vmatpush1.msra.mxu0 0.0
    %2923 = vmatprep.subr.mxu0 0.0
    %2924 = vmatpush1.msra.mxu0 0.0
    %2925 = vmatprep.subr.mxu0 0.0
    %2926 = vmatpush1.msra.mxu0 0.0
    %2927 = vmatprep.subr.mxu0 0.0
    %2928 = vmatpush1.msra.mxu0 0.0
    %2929 = vmatprep.subr.mxu0 0.0
    %2930 = vmatpush1.msra.mxu0 0.0
    %2931 = vmatprep.subr.mxu0 0.0
    %2932 = vmatpush1.msra.mxu0 0.0
    %2933 = vmatprep.subr.mxu0 0.0
    %2934 = vmatpush1.msra.mxu0 0.0
    %2935 = vmatprep.subr.mxu0 0.0
    %2936 = vmatpush1.msra.mxu0 0.0
    %2937 = vmatprep.subr.mxu0 0.0
    %2938 = vmatpush1.msra.mxu0 0.0
    %2939 = vmatprep.subr.mxu0 0.0
    %2940 = vmatpush1.msra.mxu0 0.0
    %2941 = vmatprep.subr.mxu0 0.0
    %2942 = vmatpush1.msra.mxu0 0.0
    %2943 = vmatprep.subr.mxu0 0.0
    %2944 = vmatpush1.msra.mxu0 0.0
    %2945 = vmatprep.subr.mxu0 0.0
    %2946 = vmatpush1.msra.mxu0 0.0
    %2947 = vmatprep.subr.mxu0 0.0
    %2948 = vmatpush1.msra.mxu0 0.0
    %2949 = vmatprep.mubr.f32.mxu0 0.0
    %v2950 = vand.u32 %v2629, 4294901760
    %v2951 = vsub.f32 %v2629, %v2950
    %v2952 = vand.u32 %v2951, 4294901760
    %2953 = vmatmul.mubr.f32.gmra.mrb[0].mxu0 %v2952
    %v2954 = vpop.f32.mrb[0].mxu0
    %v2955 = vadd.f32 %v2878, %v2954
    %v2956 = vpop.f32.mrb[0].mxu0
    %2957 = vdwg.mxu0
    %2958 = vmatprep.subr.mxu0 0.0
    %v2959 = vand.u32 %v1042, 4294901760
    %v2960 = vsub.f32 %v1042, %v2959
    %v2961 = vand.u32 %v2960, 4294901760
    %2962 = vmatpush1.msra.mxu0 %v2961
    %2963 = vmatprep.subr.mxu0 0.0
    %v2964 = vand.u32 %v1043, 4294901760
    %v2965 = vsub.f32 %v1043, %v2964
    %v2966 = vand.u32 %v2965, 4294901760
    %2967 = vmatpush1.msra.mxu0 %v2966
    %2968 = vmatprep.subr.mxu0 0.0
    %v2969 = vand.u32 %v1044, 4294901760
    %v2970 = vsub.f32 %v1044, %v2969
    %v2971 = vand.u32 %v2970, 4294901760
    %2972 = vmatpush1.msra.mxu0 %v2971
    %2973 = vmatprep.subr.mxu0 0.0
    %v2974 = vand.u32 %v1045, 4294901760
    %v2975 = vsub.f32 %v1045, %v2974
    %v2976 = vand.u32 %v2975, 4294901760
    %2977 = vmatpush1.msra.mxu0 %v2976
    %2978 = vmatprep.subr.mxu0 0.0
    %2979 = vmatpush1.msra.mxu0 0.0
    %2980 = vmatprep.subr.mxu0 0.0
    %2981 = vmatpush1.msra.mxu0 0.0
    %2982 = vmatprep.subr.mxu0 0.0
    %2983 = vmatpush1.msra.mxu0 0.0
    %2984 = vmatprep.subr.mxu0 0.0
    %2985 = vmatpush1.msra.mxu0 0.0
    %2986 = vmatprep.subr.mxu0 0.0
    %2987 = vmatpush1.msra.mxu0 0.0
    %2988 = vmatprep.subr.mxu0 0.0
    %2989 = vmatpush1.msra.mxu0 0.0
    %2990 = vmatprep.subr.mxu0 0.0
    %2991 = vmatpush1.msra.mxu0 0.0
    %2992 = vmatprep.subr.mxu0 0.0
    %2993 = vmatpush1.msra.mxu0 0.0
    %2994 = vmatprep.subr.mxu0 0.0
    %2995 = vmatpush1.msra.mxu0 0.0
    %2996 = vmatprep.subr.mxu0 0.0
    %2997 = vmatpush1.msra.mxu0 0.0
    %2998 = vmatprep.subr.mxu0 0.0
    %2999 = vmatpush1.msra.mxu0 0.0
    %3000 = vmatprep.subr.mxu0 0.0
    %3001 = vmatpush1.msra.mxu0 0.0
    %3002 = vmatprep.subr.mxu0 0.0
    %3003 = vmatpush1.msra.mxu0 0.0
    %3004 = vmatprep.subr.mxu0 0.0
    %3005 = vmatpush1.msra.mxu0 0.0
    %3006 = vmatprep.subr.mxu0 0.0
    %3007 = vmatpush1.msra.mxu0 0.0
    %3008 = vmatprep.subr.mxu0 0.0
    %3009 = vmatpush1.msra.mxu0 0.0
    %3010 = vmatprep.subr.mxu0 0.0
    %3011 = vmatpush1.msra.mxu0 0.0
    %3012 = vmatprep.subr.mxu0 0.0
    %3013 = vmatpush1.msra.mxu0 0.0
    %3014 = vmatprep.subr.mxu0 0.0
    %3015 = vmatpush1.msra.mxu0 0.0
    %3016 = vmatprep.subr.mxu0 0.0
    %3017 = vmatpush1.msra.mxu0 0.0
    %3018 = vmatprep.subr.mxu0 0.0
    %3019 = vmatpush1.msra.mxu0 0.0
    %3020 = vmatprep.subr.mxu0 0.0
    %3021 = vmatpush1.msra.mxu0 0.0
    %3022 = vmatprep.subr.mxu0 0.0
    %3023 = vmatpush1.msra.mxu0 0.0
    %3024 = vmatprep.subr.mxu0 0.0
    %3025 = vmatpush1.msra.mxu0 0.0
    %3026 = vmatprep.subr.mxu0 0.0
    %3027 = vmatpush1.msra.mxu0 0.0
    %3028 = vmatprep.subr.mxu0 0.0
    %3029 = vmatpush1.msra.mxu0 0.0
    %3030 = vmatprep.subr.mxu0 0.0
    %3031 = vmatpush1.msra.mxu0 0.0
    %3032 = vmatprep.subr.mxu0 0.0
    %3033 = vmatpush1.msra.mxu0 0.0
    %3034 = vmatprep.mubr.f32.mxu0 0.0
    %v3035 = vand.u32 %v2629, 4294901760
    %3036 = vmatmul.mubr.f32.gmra.mrb[0].mxu0 %v3035
    %v3037 = vpop.f32.mrb[0].mxu0
    %v3038 = vadd.f32 %v2955, %v3037
    %v3039 = vpop.f32.mrb[0].mxu0
    %3040 = vdwg.mxu0
    %3041 = vmatprep.subr.mxu0 0.0
    %v3042 = vand.u32 %v1042, 4294901760
    %3043 = vmatpush1.msra.mxu0 %v3042
    %3044 = vmatprep.subr.mxu0 0.0
    %v3045 = vand.u32 %v1043, 4294901760
    %3046 = vmatpush1.msra.mxu0 %v3045
    %3047 = vmatprep.subr.mxu0 0.0
    %v3048 = vand.u32 %v1044, 4294901760
    %3049 = vmatpush1.msra.mxu0 %v3048
    %3050 = vmatprep.subr.mxu0 0.0
    %v3051 = vand.u32 %v1045, 4294901760
    %3052 = vmatpush1.msra.mxu0 %v3051
    %3053 = vmatprep.subr.mxu0 0.0
    %3054 = vmatpush1.msra.mxu0 0.0
    %3055 = vmatprep.subr.mxu0 0.0
    %3056 = vmatpush1.msra.mxu0 0.0
    %3057 = vmatprep.subr.mxu0 0.0
    %3058 = vmatpush1.msra.mxu0 0.0
    %3059 = vmatprep.subr.mxu0 0.0
    %3060 = vmatpush1.msra.mxu0 0.0
    %3061 = vmatprep.subr.mxu0 0.0
    %3062 = vmatpush1.msra.mxu0 0.0
    %3063 = vmatprep.subr.mxu0 0.0
    %3064 = vmatpush1.msra.mxu0 0.0
    %3065 = vmatprep.subr.mxu0 0.0
    %3066 = vmatpush1.msra.mxu0 0.0
    %3067 = vmatprep.subr.mxu0 0.0
    %3068 = vmatpush1.msra.mxu0 0.0
    %3069 = vmatprep.subr.mxu0 0.0
    %3070 = vmatpush1.msra.mxu0 0.0
    %3071 = vmatprep.subr.mxu0 0.0
    %3072 = vmatpush1.msra.mxu0 0.0
    %3073 = vmatprep.subr.mxu0 0.0
    %3074 = vmatpush1.msra.mxu0 0.0
    %3075 = vmatprep.subr.mxu0 0.0
    %3076 = vmatpush1.msra.mxu0 0.0
    %3077 = vmatprep.subr.mxu0 0.0
    %3078 = vmatpush1.msra.mxu0 0.0
    %3079 = vmatprep.subr.mxu0 0.0
    %3080 = vmatpush1.msra.mxu0 0.0
    %3081 = vmatprep.subr.mxu0 0.0
    %3082 = vmatpush1.msra.mxu0 0.0
    %3083 = vmatprep.subr.mxu0 0.0
    %3084 = vmatpush1.msra.mxu0 0.0
    %3085 = vmatprep.subr.mxu0 0.0
    %3086 = vmatpush1.msra.mxu0 0.0
    %3087 = vmatprep.subr.mxu0 0.0
    %3088 = vmatpush1.msra.mxu0 0.0
    %3089 = vmatprep.subr.mxu0 0.0
    %3090 = vmatpush1.msra.mxu0 0.0
    %3091 = vmatprep.subr.mxu0 0.0
    %3092 = vmatpush1.msra.mxu0 0.0
    %3093 = vmatprep.subr.mxu0 0.0
    %3094 = vmatpush1.msra.mxu0 0.0
    %3095 = vmatprep.subr.mxu0 0.0
    %3096 = vmatpush1.msra.mxu0 0.0
    %3097 = vmatprep.subr.mxu0 0.0
    %3098 = vmatpush1.msra.mxu0 0.0
    %3099 = vmatprep.subr.mxu0 0.0
    %3100 = vmatpush1.msra.mxu0 0.0
    %3101 = vmatprep.subr.mxu0 0.0
    %3102 = vmatpush1.msra.mxu0 0.0
    %3103 = vmatprep.subr.mxu0 0.0
    %3104 = vmatpush1.msra.mxu0 0.0
    %3105 = vmatprep.subr.mxu0 0.0
    %3106 = vmatpush1.msra.mxu0 0.0
    %3107 = vmatprep.subr.mxu0 0.0
    %3108 = vmatpush1.msra.mxu0 0.0
    %3109 = vmatprep.mubr.f32.mxu0 0.0
    %v3110 = vand.u32 %v2629, 4294901760
    %3111 = vmatmul.mubr.f32.gmra.mrb[0].mxu0 %v3110
    %v3112 = vpop.f32.mrb[0].mxu0
    %v3113 = vadd.f32 %v3038, %v3112
    %v3114 = vpop.f32.mrb[0].mxu0
    %3115 = vdwg.mxu0
    %v3116 = vadd.f32 %v1021, %v3113
    %v3117 = vxor.u32 %v3116, 2147483648
    %v3118 = vmul.f32 %v3117, 1.442695
    %v3119 = vpow.pop %v3118
    %v3120 = vadd.f32 %v3119, 1.0
    %v3121 = vrcp.pop %v3120
    %v3122 = vmul.f32 1.0, %v3121
    %v3123 = vadd.f32 %v3113, %v1570
    %3125 = vrot.lane.b32.xlu0 %v3123, 64
    %v3126 = vpop.permute.xlu0 %3125
    %v3128 = vmul.f32 %v3122, %v3126
    %3130 = vrot.lane.b32.xlu0 %v3128, 64
    %v3131 = vpop.permute.xlu0 %3130
    %v3133 = vadd.f32 %v1021, %v3131
    %v3134 = vtanh.pop %v3133
    %v3135 = vsub.f32 1.0, %v3122
    %3137 = vrot.lane.b32.xlu0 %v3134, 96
    %v3138 = vpop.permute.xlu0 %3137
    %v3140 = vmul.f32 %v3135, %v3138
    %v3141 = vmul.f32 %v3122, %v2625
    %v3142 = vadd.f32 %v3140, %v3141
    %3144 = vrot.lane.b32.xlu0 %v3142, 96
    %v3145 = vpop.permute.xlu0 %3144
    %v3146 = vsel %vm1073, %v3145, 0
    %3148 = vmatprep.subr.mxu0 0.0
    %v3149 = vand.u32 %v1042, 4294901760
    %3150 = vmatpush1.msra.mxu0 %v3149
    %3151 = vmatprep.subr.mxu0 0.0
    %v3152 = vand.u32 %v1043, 4294901760
    %3153 = vmatpush1.msra.mxu0 %v3152
    %3154 = vmatprep.subr.mxu0 0.0
    %v3155 = vand.u32 %v1044, 4294901760
    %3156 = vmatpush1.msra.mxu0 %v3155
    %3157 = vmatprep.subr.mxu0 0.0
    %v3158 = vand.u32 %v1045, 4294901760
    %3159 = vmatpush1.msra.mxu0 %v3158
    %3160 = vmatprep.subr.mxu0 0.0
    %3161 = vmatpush1.msra.mxu0 0.0
    %3162 = vmatprep.subr.mxu0 0.0
    %3163 = vmatpush1.msra.mxu0 0.0
    %3164 = vmatprep.subr.mxu0 0.0
    %3165 = vmatpush1.msra.mxu0 0.0
    %3166 = vmatprep.subr.mxu0 0.0
    %3167 = vmatpush1.msra.mxu0 0.0
    %3168 = vmatprep.subr.mxu0 0.0
    %3169 = vmatpush1.msra.mxu0 0.0
    %3170 = vmatprep.subr.mxu0 0.0
    %3171 = vmatpush1.msra.mxu0 0.0
    %3172 = vmatprep.subr.mxu0 0.0
    %3173 = vmatpush1.msra.mxu0 0.0
    %3174 = vmatprep.subr.mxu0 0.0
    %3175 = vmatpush1.msra.mxu0 0.0
    %3176 = vmatprep.subr.mxu0 0.0
    %3177 = vmatpush1.msra.mxu0 0.0
    %3178 = vmatprep.subr.mxu0 0.0
    %3179 = vmatpush1.msra.mxu0 0.0
    %3180 = vmatprep.subr.mxu0 0.0
    %3181 = vmatpush1.msra.mxu0 0.0
    %3182 = vmatprep.subr.mxu0 0.0
    %3183 = vmatpush1.msra.mxu0 0.0
    %3184 = vmatprep.subr.mxu0 0.0
    %3185 = vmatpush1.msra.mxu0 0.0
    %3186 = vmatprep.subr.mxu0 0.0
    %3187 = vmatpush1.msra.mxu0 0.0
    %3188 = vmatprep.subr.mxu0 0.0
    %3189 = vmatpush1.msra.mxu0 0.0
    %3190 = vmatprep.subr.mxu0 0.0
    %3191 = vmatpush1.msra.mxu0 0.0
    %3192 = vmatprep.subr.mxu0 0.0
    %3193 = vmatpush1.msra.mxu0 0.0
    %3194 = vmatprep.subr.mxu0 0.0
    %3195 = vmatpush1.msra.mxu0 0.0
    %3196 = vmatprep.subr.mxu0 0.0
    %3197 = vmatpush1.msra.mxu0 0.0
    %3198 = vmatprep.subr.mxu0 0.0
    %3199 = vmatpush1.msra.mxu0 0.0
    %3200 = vmatprep.subr.mxu0 0.0
    %3201 = vmatpush1.msra.mxu0 0.0
    %3202 = vmatprep.subr.mxu0 0.0
    %3203 = vmatpush1.msra.mxu0 0.0
    %3204 = vmatprep.subr.mxu0 0.0
    %3205 = vmatpush1.msra.mxu0 0.0
    %3206 = vmatprep.subr.mxu0 0.0
    %3207 = vmatpush1.msra.mxu0 0.0
    %3208 = vmatprep.subr.mxu0 0.0
    %3209 = vmatpush1.msra.mxu0 0.0
    %3210 = vmatprep.subr.mxu0 0.0
    %3211 = vmatpush1.msra.mxu0 0.0
    %3212 = vmatprep.subr.mxu0 0.0
    %3213 = vmatpush1.msra.mxu0 0.0
    %3214 = vmatprep.subr.mxu0 0.0
    %3215 = vmatpush1.msra.mxu0 0.0
    %3216 = vmatprep.mubr.f32.mxu0 0.0
    %v3217 = vand.u32 %v3146, 4294901760
    %v3218 = vsub.f32 %v3146, %v3217
    %v3219 = vand.u32 %v3218, 4294901760
    %v3220 = vsub.f32 %v3218, %v3219
    %v3221 = vand.u32 %v3220, 4294901760
    %3222 = vmatmul.mubr.f32.gmra.mrb[0].mxu0 %v3221
    %v3223 = vpop.f32.mrb[0].mxu0
    %v3224 = vadd.f32 0.0, %v3223
    %v3225 = vpop.f32.mrb[0].mxu0
    %3226 = vdwg.mxu0
    %3227 = vmatprep.subr.mxu0 0.0
    %v3228 = vand.u32 %v1042, 4294901760
    %v3229 = vsub.f32 %v1042, %v3228
    %v3230 = vand.u32 %v3229, 4294901760
    %v3231 = vsub.f32 %v3229, %v3230
    %v3232 = vand.u32 %v3231, 4294901760
    %3233 = vmatpush1.msra.mxu0 %v3232
    %3234 = vmatprep.subr.mxu0 0.0
    %v3235 = vand.u32 %v1043, 4294901760
    %v3236 = vsub.f32 %v1043, %v3235
    %v3237 = vand.u32 %v3236, 4294901760
    %v3238 = vsub.f32 %v3236, %v3237
    %v3239 = vand.u32 %v3238, 4294901760
    %3240 = vmatpush1.msra.mxu0 %v3239
    %3241 = vmatprep.subr.mxu0 0.0
    %v3242 = vand.u32 %v1044, 4294901760
    %v3243 = vsub.f32 %v1044, %v3242
    %v3244 = vand.u32 %v3243, 4294901760
    %v3245 = vsub.f32 %v3243, %v3244
    %v3246 = vand.u32 %v3245, 4294901760
    %3247 = vmatpush1.msra.mxu0 %v3246
    %3248 = vmatprep.subr.mxu0 0.0
    %v3249 = vand.u32 %v1045, 4294901760
    %v3250 = vsub.f32 %v1045, %v3249
    %v3251 = vand.u32 %v3250, 4294901760
    %v3252 = vsub.f32 %v3250, %v3251
    %v3253 = vand.u32 %v3252, 4294901760
    %3254 = vmatpush1.msra.mxu0 %v3253
    %3255 = vmatprep.subr.mxu0 0.0
    %3256 = vmatpush1.msra.mxu0 0.0
    %3257 = vmatprep.subr.mxu0 0.0
    %3258 = vmatpush1.msra.mxu0 0.0
    %3259 = vmatprep.subr.mxu0 0.0
    %3260 = vmatpush1.msra.mxu0 0.0
    %3261 = vmatprep.subr.mxu0 0.0
    %3262 = vmatpush1.msra.mxu0 0.0
    %3263 = vmatprep.subr.mxu0 0.0
    %3264 = vmatpush1.msra.mxu0 0.0
    %3265 = vmatprep.subr.mxu0 0.0
    %3266 = vmatpush1.msra.mxu0 0.0
    %3267 = vmatprep.subr.mxu0 0.0
    %3268 = vmatpush1.msra.mxu0 0.0
    %3269 = vmatprep.subr.mxu0 0.0
    %3270 = vmatpush1.msra.mxu0 0.0
    %3271 = vmatprep.subr.mxu0 0.0
    %3272 = vmatpush1.msra.mxu0 0.0
    %3273 = vmatprep.subr.mxu0 0.0
    %3274 = vmatpush1.msra.mxu0 0.0
    %3275 = vmatprep.subr.mxu0 0.0
    %3276 = vmatpush1.msra.mxu0 0.0
    %3277 = vmatprep.subr.mxu0 0.0
    %3278 = vmatpush1.msra.mxu0 0.0
    %3279 = vmatprep.subr.mxu0 0.0
    %3280 = vmatpush1.msra.mxu0 0.0
    %3281 = vmatprep.subr.mxu0 0.0
    %3282 = vmatpush1.msra.mxu0 0.0
    %3283 = vmatprep.subr.mxu0 0.0
    %3284 = vmatpush1.msra.mxu0 0.0
    %3285 = vmatprep.subr.mxu0 0.0
    %3286 = vmatpush1.msra.mxu0 0.0
    %3287 = vmatprep.subr.mxu0 0.0
    %3288 = vmatpush1.msra.mxu0 0.0
    %3289 = vmatprep.subr.mxu0 0.0
    %3290 = vmatpush1.msra.mxu0 0.0
    %3291 = vmatprep.subr.mxu0 0.0
    %3292 = vmatpush1.msra.mxu0 0.0
    %3293 = vmatprep.subr.mxu0 0.0
    %3294 = vmatpush1.msra.mxu0 0.0
    %3295 = vmatprep.subr.mxu0 0.0
    %3296 = vmatpush1.msra.mxu0 0.0
    %3297 = vmatprep.subr.mxu0 0.0
    %3298 = vmatpush1.msra.mxu0 0.0
    %3299 = vmatprep.subr.mxu0 0.0
    %3300 = vmatpush1.msra.mxu0 0.0
    %3301 = vmatprep.subr.mxu0 0.0
    %3302 = vmatpush1.msra.mxu0 0.0
    %3303 = vmatprep.subr.mxu0 0.0
    %3304 = vmatpush1.msra.mxu0 0.0
    %3305 = vmatprep.subr.mxu0 0.0
    %3306 = vmatpush1.msra.mxu0 0.0
    %3307 = vmatprep.subr.mxu0 0.0
    %3308 = vmatpush1.msra.mxu0 0.0
    %3309 = vmatprep.subr.mxu0 0.0
    %3310 = vmatpush1.msra.mxu0 0.0
    %3311 = vmatprep.mubr.f32.mxu0 0.0
    %v3312 = vand.u32 %v3146, 4294901760
    %3313 = vmatmul.mubr.f32.gmra.mrb[0].mxu0 %v3312
    %v3314 = vpop.f32.mrb[0].mxu0
    %v3315 = vadd.f32 %v3224, %v3314
    %v3316 = vpop.f32.mrb[0].mxu0
    %3317 = vdwg.mxu0
    %3318 = vmatprep.subr.mxu0 0.0
    %v3319 = vand.u32 %v1042, 4294901760
    %v3320 = vsub.f32 %v1042, %v3319
    %3321 = vmatpush1.msra.mxu0 %v3320
    %3322 = vmatprep.subr.mxu0 0.0
    %v3323 = vand.u32 %v1043, 4294901760
    %v3324 = vsub.f32 %v1043, %v3323
    %3325 = vmatpush1.msra.mxu0 %v3324
    %3326 = vmatprep.subr.mxu0 0.0
    %v3327 = vand.u32 %v1044, 4294901760
    %v3328 = vsub.f32 %v1044, %v3327
    %3329 = vmatpush1.msra.mxu0 %v3328
    %3330 = vmatprep.subr.mxu0 0.0
    %v3331 = vand.u32 %v1045, 4294901760
    %v3332 = vsub.f32 %v1045, %v3331
    %3333 = vmatpush1.msra.mxu0 %v3332
    %3334 = vmatprep.subr.mxu0 0.0
    %3335 = vmatpush1.msra.mxu0 0.0
    %3336 = vmatprep.subr.mxu0 0.0
    %3337 = vmatpush1.msra.mxu0 0.0
    %3338 = vmatprep.subr.mxu0 0.0
    %3339 = vmatpush1.msra.mxu0 0.0
    %3340 = vmatprep.subr.mxu0 0.0
    %3341 = vmatpush1.msra.mxu0 0.0
    %3342 = vmatprep.subr.mxu0 0.0
    %3343 = vmatpush1.msra.mxu0 0.0
    %3344 = vmatprep.subr.mxu0 0.0
    %3345 = vmatpush1.msra.mxu0 0.0
    %3346 = vmatprep.subr.mxu0 0.0
    %3347 = vmatpush1.msra.mxu0 0.0
    %3348 = vmatprep.subr.mxu0 0.0
    %3349 = vmatpush1.msra.mxu0 0.0
    %3350 = vmatprep.subr.mxu0 0.0
    %3351 = vmatpush1.msra.mxu0 0.0
    %3352 = vmatprep.subr.mxu0 0.0
    %3353 = vmatpush1.msra.mxu0 0.0
    %3354 = vmatprep.subr.mxu0 0.0
    %3355 = vmatpush1.msra.mxu0 0.0
    %3356 = vmatprep.subr.mxu0 0.0
    %3357 = vmatpush1.msra.mxu0 0.0
    %3358 = vmatprep.subr.mxu0 0.0
    %3359 = vmatpush1.msra.mxu0 0.0
    %3360 = vmatprep.subr.mxu0 0.0
    %3361 = vmatpush1.msra.mxu0 0.0
    %3362 = vmatprep.subr.mxu0 0.0
    %3363 = vmatpush1.msra.mxu0 0.0
    %3364 = vmatprep.subr.mxu0 0.0
    %3365 = vmatpush1.msra.mxu0 0.0
    %3366 = vmatprep.subr.mxu0 0.0
    %3367 = vmatpush1.msra.mxu0 0.0
    %3368 = vmatprep.subr.mxu0 0.0
    %3369 = vmatpush1.msra.mxu0 0.0
    %3370 = vmatprep.subr.mxu0 0.0
    %3371 = vmatpush1.msra.mxu0 0.0
    %3372 = vmatprep.subr.mxu0 0.0
    %3373 = vmatpush1.msra.mxu0 0.0
    %3374 = vmatprep.subr.mxu0 0.0
    %3375 = vmatpush1.msra.mxu0 0.0
    %3376 = vmatprep.subr.mxu0 0.0
    %3377 = vmatpush1.msra.mxu0 0.0
    %3378 = vmatprep.subr.mxu0 0.0
    %3379 = vmatpush1.msra.mxu0 0.0
    %3380 = vmatprep.subr.mxu0 0.0
    %3381 = vmatpush1.msra.mxu0 0.0
    %3382 = vmatprep.subr.mxu0 0.0
    %3383 = vmatpush1.msra.mxu0 0.0
    %3384 = vmatprep.subr.mxu0 0.0
    %3385 = vmatpush1.msra.mxu0 0.0
    %3386 = vmatprep.subr.mxu0 0.0
    %3387 = vmatpush1.msra.mxu0 0.0
    %3388 = vmatprep.subr.mxu0 0.0
    %3389 = vmatpush1.msra.mxu0 0.0
    %3390 = vmatprep.mubr.f32.mxu0 0.0
    %v3391 = vand.u32 %v3146, 4294901760
    %v3392 = vsub.f32 %v3146, %v3391
    %3393 = vmatmul.mubr.f32.gmra.mrb[0].mxu0 %v3392
    %v3394 = vpop.f32.mrb[0].mxu0
    %v3395 = vadd.f32 %v3315, %v3394
    %v3396 = vpop.f32.mrb[0].mxu0
    %3397 = vdwg.mxu0
    %3398 = vmatprep.subr.mxu0 0.0
    %v3399 = vand.u32 %v1042, 4294901760
    %3400 = vmatpush1.msra.mxu0 %v3399
    %3401 = vmatprep.subr.mxu0 0.0
    %v3402 = vand.u32 %v1043, 4294901760
    %3403 = vmatpush1.msra.mxu0 %v3402
    %3404 = vmatprep.subr.mxu0 0.0
    %v3405 = vand.u32 %v1044, 4294901760
    %3406 = vmatpush1.msra.mxu0 %v3405
    %3407 = vmatprep.subr.mxu0 0.0
    %v3408 = vand.u32 %v1045, 4294901760
    %3409 = vmatpush1.msra.mxu0 %v3408
    %3410 = vmatprep.subr.mxu0 0.0
    %3411 = vmatpush1.msra.mxu0 0.0
    %3412 = vmatprep.subr.mxu0 0.0
    %3413 = vmatpush1.msra.mxu0 0.0
    %3414 = vmatprep.subr.mxu0 0.0
    %3415 = vmatpush1.msra.mxu0 0.0
    %3416 = vmatprep.subr.mxu0 0.0
    %3417 = vmatpush1.msra.mxu0 0.0
    %3418 = vmatprep.subr.mxu0 0.0
    %3419 = vmatpush1.msra.mxu0 0.0
    %3420 = vmatprep.subr.mxu0 0.0
    %3421 = vmatpush1.msra.mxu0 0.0
    %3422 = vmatprep.subr.mxu0 0.0
    %3423 = vmatpush1.msra.mxu0 0.0
    %3424 = vmatprep.subr.mxu0 0.0
    %3425 = vmatpush1.msra.mxu0 0.0
    %3426 = vmatprep.subr.mxu0 0.0
    %3427 = vmatpush1.msra.mxu0 0.0
    %3428 = vmatprep.subr.mxu0 0.0
    %3429 = vmatpush1.msra.mxu0 0.0
    %3430 = vmatprep.subr.mxu0 0.0
    %3431 = vmatpush1.msra.mxu0 0.0
    %3432 = vmatprep.subr.mxu0 0.0
    %3433 = vmatpush1.msra.mxu0 0.0
    %3434 = vmatprep.subr.mxu0 0.0
    %3435 = vmatpush1.msra.mxu0 0.0
    %3436 = vmatprep.subr.mxu0 0.0
    %3437 = vmatpush1.msra.mxu0 0.0
    %3438 = vmatprep.subr.mxu0 0.0
    %3439 = vmatpush1.msra.mxu0 0.0
    %3440 = vmatprep.subr.mxu0 0.0
    %3441 = vmatpush1.msra.mxu0 0.0
    %3442 = vmatprep.subr.mxu0 0.0
    %3443 = vmatpush1.msra.mxu0 0.0
    %3444 = vmatprep.subr.mxu0 0.0
    %3445 = vmatpush1.msra.mxu0 0.0
    %3446 = vmatprep.subr.mxu0 0.0
    %3447 = vmatpush1.msra.mxu0 0.0
    %3448 = vmatprep.subr.mxu0 0.0
    %3449 = vmatpush1.msra.mxu0 0.0
    %3450 = vmatprep.subr.mxu0 0.0
    %3451 = vmatpush1.msra.mxu0 0.0
    %3452 = vmatprep.subr.mxu0 0.0
    %3453 = vmatpush1.msra.mxu0 0.0
    %3454 = vmatprep.subr.mxu0 0.0
    %3455 = vmatpush1.msra.mxu0 0.0
    %3456 = vmatprep.subr.mxu0 0.0
    %3457 = vmatpush1.msra.mxu0 0.0
    %3458 = vmatprep.subr.mxu0 0.0
    %3459 = vmatpush1.msra.mxu0 0.0
    %3460 = vmatprep.subr.mxu0 0.0
    %3461 = vmatpush1.msra.mxu0 0.0
    %3462 = vmatprep.subr.mxu0 0.0
    %3463 = vmatpush1.msra.mxu0 0.0
    %3464 = vmatprep.subr.mxu0 0.0
    %3465 = vmatpush1.msra.mxu0 0.0
    %3466 = vmatprep.mubr.f32.mxu0 0.0
    %v3467 = vand.u32 %v3146, 4294901760
    %v3468 = vsub.f32 %v3146, %v3467
    %v3469 = vand.u32 %v3468, 4294901760
    %3470 = vmatmul.mubr.f32.gmra.mrb[0].mxu0 %v3469
    %v3471 = vpop.f32.mrb[0].mxu0
    %v3472 = vadd.f32 %v3395, %v3471
    %v3473 = vpop.f32.mrb[0].mxu0
    %3474 = vdwg.mxu0
    %3475 = vmatprep.subr.mxu0 0.0
    %v3476 = vand.u32 %v1042, 4294901760
    %v3477 = vsub.f32 %v1042, %v3476
    %v3478 = vand.u32 %v3477, 4294901760
    %3479 = vmatpush1.msra.mxu0 %v3478
    %3480 = vmatprep.subr.mxu0 0.0
    %v3481 = vand.u32 %v1043, 4294901760
    %v3482 = vsub.f32 %v1043, %v3481
    %v3483 = vand.u32 %v3482, 4294901760
    %3484 = vmatpush1.msra.mxu0 %v3483
    %3485 = vmatprep.subr.mxu0 0.0
    %v3486 = vand.u32 %v1044, 4294901760
    %v3487 = vsub.f32 %v1044, %v3486
    %v3488 = vand.u32 %v3487, 4294901760
    %3489 = vmatpush1.msra.mxu0 %v3488
    %3490 = vmatprep.subr.mxu0 0.0
    %v3491 = vand.u32 %v1045, 4294901760
    %v3492 = vsub.f32 %v1045, %v3491
    %v3493 = vand.u32 %v3492, 4294901760
    %3494 = vmatpush1.msra.mxu0 %v3493
    %3495 = vmatprep.subr.mxu0 0.0
    %3496 = vmatpush1.msra.mxu0 0.0
    %3497 = vmatprep.subr.mxu0 0.0
    %3498 = vmatpush1.msra.mxu0 0.0
    %3499 = vmatprep.subr.mxu0 0.0
    %3500 = vmatpush1.msra.mxu0 0.0
    %3501 = vmatprep.subr.mxu0 0.0
    %3502 = vmatpush1.msra.mxu0 0.0
    %3503 = vmatprep.subr.mxu0 0.0
    %3504 = vmatpush1.msra.mxu0 0.0
    %3505 = vmatprep.subr.mxu0 0.0
    %3506 = vmatpush1.msra.mxu0 0.0
    %3507 = vmatprep.subr.mxu0 0.0
    %3508 = vmatpush1.msra.mxu0 0.0
    %3509 = vmatprep.subr.mxu0 0.0
    %3510 = vmatpush1.msra.mxu0 0.0
    %3511 = vmatprep.subr.mxu0 0.0
    %3512 = vmatpush1.msra.mxu0 0.0
    %3513 = vmatprep.subr.mxu0 0.0
    %3514 = vmatpush1.msra.mxu0 0.0
    %3515 = vmatprep.subr.mxu0 0.0
    %3516 = vmatpush1.msra.mxu0 0.0
    %3517 = vmatprep.subr.mxu0 0.0
    %3518 = vmatpush1.msra.mxu0 0.0
    %3519 = vmatprep.subr.mxu0 0.0
    %3520 = vmatpush1.msra.mxu0 0.0
    %3521 = vmatprep.subr.mxu0 0.0
    %3522 = vmatpush1.msra.mxu0 0.0
    %3523 = vmatprep.subr.mxu0 0.0
    %3524 = vmatpush1.msra.mxu0 0.0
    %3525 = vmatprep.subr.mxu0 0.0
    %3526 = vmatpush1.msra.mxu0 0.0
    %3527 = vmatprep.subr.mxu0 0.0
    %3528 = vmatpush1.msra.mxu0 0.0
    %3529 = vmatprep.subr.mxu0 0.0
    %3530 = vmatpush1.msra.mxu0 0.0
    %3531 = vmatprep.subr.mxu0 0.0
    %3532 = vmatpush1.msra.mxu0 0.0
    %3533 = vmatprep.subr.mxu0 0.0
    %3534 = vmatpush1.msra.mxu0 0.0
    %3535 = vmatprep.subr.mxu0 0.0
    %3536 = vmatpush1.msra.mxu0 0.0
    %3537 = vmatprep.subr.mxu0 0.0
    %3538 = vmatpush1.msra.mxu0 0.0
    %3539 = vmatprep.subr.mxu0 0.0
    %3540 = vmatpush1.msra.mxu0 0.0
    %3541 = vmatprep.subr.mxu0 0.0
    %3542 = vmatpush1.msra.mxu0 0.0
    %3543 = vmatprep.subr.mxu0 0.0
    %3544 = vmatpush1.msra.mxu0 0.0
    %3545 = vmatprep.subr.mxu0 0.0
    %3546 = vmatpush1.msra.mxu0 0.0
    %3547 = vmatprep.subr.mxu0 0.0
    %3548 = vmatpush1.msra.mxu0 0.0
    %3549 = vmatprep.subr.mxu0 0.0
    %3550 = vmatpush1.msra.mxu0 0.0
    %3551 = vmatprep.mubr.f32.mxu0 0.0
    %v3552 = vand.u32 %v3146, 4294901760
    %3553 = vmatmul.mubr.f32.gmra.mrb[0].mxu0 %v3552
    %v3554 = vpop.f32.mrb[0].mxu0
    %v3555 = vadd.f32 %v3472, %v3554
    %v3556 = vpop.f32.mrb[0].mxu0
    %3557 = vdwg.mxu0
    %3558 = vmatprep.subr.mxu0 0.0
    %v3559 = vand.u32 %v1042, 4294901760
    %3560 = vmatpush1.msra.mxu0 %v3559
    %3561 = vmatprep.subr.mxu0 0.0
    %v3562 = vand.u32 %v1043, 4294901760
    %3563 = vmatpush1.msra.mxu0 %v3562
    %3564 = vmatprep.subr.mxu0 0.0
    %v3565 = vand.u32 %v1044, 4294901760
    %3566 = vmatpush1.msra.mxu0 %v3565
    %3567 = vmatprep.subr.mxu0 0.0
    %v3568 = vand.u32 %v1045, 4294901760
    %3569 = vmatpush1.msra.mxu0 %v3568
    %3570 = vmatprep.subr.mxu0 0.0
    %3571 = vmatpush1.msra.mxu0 0.0
    %3572 = vmatprep.subr.mxu0 0.0
    %3573 = vmatpush1.msra.mxu0 0.0
    %3574 = vmatprep.subr.mxu0 0.0
    %3575 = vmatpush1.msra.mxu0 0.0
    %3576 = vmatprep.subr.mxu0 0.0
    %3577 = vmatpush1.msra.mxu0 0.0
    %3578 = vmatprep.subr.mxu0 0.0
    %3579 = vmatpush1.msra.mxu0 0.0
    %3580 = vmatprep.subr.mxu0 0.0
    %3581 = vmatpush1.msra.mxu0 0.0
    %3582 = vmatprep.subr.mxu0 0.0
    %3583 = vmatpush1.msra.mxu0 0.0
    %3584 = vmatprep.subr.mxu0 0.0
    %3585 = vmatpush1.msra.mxu0 0.0
    %3586 = vmatprep.subr.mxu0 0.0
    %3587 = vmatpush1.msra.mxu0 0.0
    %3588 = vmatprep.subr.mxu0 0.0
    %3589 = vmatpush1.msra.mxu0 0.0
    %3590 = vmatprep.subr.mxu0 0.0
    %3591 = vmatpush1.msra.mxu0 0.0
    %3592 = vmatprep.subr.mxu0 0.0
    %3593 = vmatpush1.msra.mxu0 0.0
    %3594 = vmatprep.subr.mxu0 0.0
    %3595 = vmatpush1.msra.mxu0 0.0
    %3596 = vmatprep.subr.mxu0 0.0
    %3597 = vmatpush1.msra.mxu0 0.0
    %3598 = vmatprep.subr.mxu0 0.0
    %3599 = vmatpush1.msra.mxu0 0.0
    %3600 = vmatprep.subr.mxu0 0.0
    %3601 = vmatpush1.msra.mxu0 0.0
    %3602 = vmatprep.subr.mxu0 0.0
    %3603 = vmatpush1.msra.mxu0 0.0
    %3604 = vmatprep.subr.mxu0 0.0
    %3605 = vmatpush1.msra.mxu0 0.0
    %3606 = vmatprep.subr.mxu0 0.0
    %3607 = vmatpush1.msra.mxu0 0.0
    %3608 = vmatprep.subr.mxu0 0.0
    %3609 = vmatpush1.msra.mxu0 0.0
    %3610 = vmatprep.subr.mxu0 0.0
    %3611 = vmatpush1.msra.mxu0 0.0
    %3612 = vmatprep.subr.mxu0 0.0
    %3613 = vmatpush1.msra.mxu0 0.0
    %3614 = vmatprep.subr.mxu0 0.0
    %3615 = vmatpush1.msra.mxu0 0.0
    %3616 = vmatprep.subr.mxu0 0.0
    %3617 = vmatpush1.msra.mxu0 0.0
    %3618 = vmatprep.subr.mxu0 0.0
    %3619 = vmatpush1.msra.mxu0 0.0
    %3620 = vmatprep.subr.mxu0 0.0
    %3621 = vmatpush1.msra.mxu0 0.0
    %3622 = vmatprep.subr.mxu0 0.0
    %3623 = vmatpush1.msra.mxu0 0.0
    %3624 = vmatprep.subr.mxu0 0.0
    %3625 = vmatpush1.msra.mxu0 0.0
    %3626 = vmatprep.mubr.f32.mxu0 0.0
    %v3627 = vand.u32 %v3146, 4294901760
    %3628 = vmatmul.mubr.f32.gmra.mrb[0].mxu0 %v3627
    %v3629 = vpop.f32.mrb[0].mxu0
    %v3630 = vadd.f32 %v3555, %v3629
    %v3631 = vpop.f32.mrb[0].mxu0
    %3632 = vdwg.mxu0
    %v3633 = vadd.f32 %v1027, %v3630
    %v3634 = vxor.u32 %v3633, 2147483648
    %v3635 = vmul.f32 %v3634, 1.442695
    %v3636 = vpow.pop %v3635
    %v3637 = vadd.f32 %v3636, 1.0
    %v3638 = vrcp.pop %v3637
    %v3639 = vmul.f32 1.0, %v3638
    %v3640 = vadd.f32 %v3630, %v1570
    %3642 = vrot.lane.b32.xlu0 %v3640, 64
    %v3643 = vpop.permute.xlu0 %3642
    %v3645 = vmul.f32 %v3639, %v3643
    %3647 = vrot.lane.b32.xlu0 %v3645, 64
    %v3648 = vpop.permute.xlu0 %3647
    %v3650 = vadd.f32 %v1027, %v3648
    %v3651 = vtanh.pop %v3650
    %v3652 = vsub.f32 1.0, %v3639
    %3654 = vrot.lane.b32.xlu0 %v3651, 96
    %v3655 = vpop.permute.xlu0 %3654
    %v3657 = vmul.f32 %v3652, %v3655
    %v3658 = vmul.f32 %v3639, %v3142
    %v3659 = vadd.f32 %v3657, %v3658
    %3661 = vrot.lane.b32.xlu0 %v3659, 96
    %v3662 = vpop.permute.xlu0 %3661
    %v3663 = vsel %vm1073, %v3662, 0
    %3665 = vmatprep.subr.mxu0 0.0
    %v3666 = vand.u32 %v1042, 4294901760
    %3667 = vmatpush1.msra.mxu0 %v3666
    %3668 = vmatprep.subr.mxu0 0.0
    %v3669 = vand.u32 %v1043, 4294901760
    %3670 = vmatpush1.msra.mxu0 %v3669
    %3671 = vmatprep.subr.mxu0 0.0
    %v3672 = vand.u32 %v1044, 4294901760
    %3673 = vmatpush1.msra.mxu0 %v3672
    %3674 = vmatprep.subr.mxu0 0.0
    %v3675 = vand.u32 %v1045, 4294901760
    %3676 = vmatpush1.msra.mxu0 %v3675
    %3677 = vmatprep.subr.mxu0 0.0
    %3678 = vmatpush1.msra.mxu0 0.0
    %3679 = vmatprep.subr.mxu0 0.0
    %3680 = vmatpush1.msra.mxu0 0.0
    %3681 = vmatprep.subr.mxu0 0.0
    %3682 = vmatpush1.msra.mxu0 0.0
    %3683 = vmatprep.subr.mxu0 0.0
    %3684 = vmatpush1.msra.mxu0 0.0
    %3685 = vmatprep.subr.mxu0 0.0
    %3686 = vmatpush1.msra.mxu0 0.0
    %3687 = vmatprep.subr.mxu0 0.0
    %3688 = vmatpush1.msra.mxu0 0.0
    %3689 = vmatprep.subr.mxu0 0.0
    %3690 = vmatpush1.msra.mxu0 0.0
    %3691 = vmatprep.subr.mxu0 0.0
    %3692 = vmatpush1.msra.mxu0 0.0
    %3693 = vmatprep.subr.mxu0 0.0
    %3694 = vmatpush1.msra.mxu0 0.0
    %3695 = vmatprep.subr.mxu0 0.0
    %3696 = vmatpush1.msra.mxu0 0.0
    %3697 = vmatprep.subr.mxu0 0.0
    %3698 = vmatpush1.msra.mxu0 0.0
    %3699 = vmatprep.subr.mxu0 0.0
    %3700 = vmatpush1.msra.mxu0 0.0
    %3701 = vmatprep.subr.mxu0 0.0
    %3702 = vmatpush1.msra.mxu0 0.0
    %3703 = vmatprep.subr.mxu0 0.0
    %3704 = vmatpush1.msra.mxu0 0.0
    %3705 = vmatprep.subr.mxu0 0.0
    %3706 = vmatpush1.msra.mxu0 0.0
    %3707 = vmatprep.subr.mxu0 0.0
    %3708 = vmatpush1.msra.mxu0 0.0
    %3709 = vmatprep.subr.mxu0 0.0
    %3710 = vmatpush1.msra.mxu0 0.0
    %3711 = vmatprep.subr.mxu0 0.0
    %3712 = vmatpush1.msra.mxu0 0.0
    %3713 = vmatprep.subr.mxu0 0.0
    %3714 = vmatpush1.msra.mxu0 0.0
    %3715 = vmatprep.subr.mxu0 0.0
    %3716 = vmatpush1.msra.mxu0 0.0
    %3717 = vmatprep.subr.mxu0 0.0
    %3718 = vmatpush1.msra.mxu0 0.0
    %3719 = vmatprep.subr.mxu0 0.0
    %3720 = vmatpush1.msra.mxu0 0.0
    %3721 = vmatprep.subr.mxu0 0.0
    %3722 = vmatpush1.msra.mxu0 0.0
    %3723 = vmatprep.subr.mxu0 0.0
    %3724 = vmatpush1.msra.mxu0 0.0
    %3725 = vmatprep.subr.mxu0 0.0
    %3726 = vmatpush1.msra.mxu0 0.0
    %3727 = vmatprep.subr.mxu0 0.0
    %3728 = vmatpush1.msra.mxu0 0.0
    %3729 = vmatprep.subr.mxu0 0.0
    %3730 = vmatpush1.msra.mxu0 0.0
    %3731 = vmatprep.subr.mxu0 0.0
    %3732 = vmatpush1.msra.mxu0 0.0
    %3733 = vmatprep.mubr.f32.mxu0 0.0
    %v3734 = vand.u32 %v3663, 4294901760
    %v3735 = vsub.f32 %v3663, %v3734
    %v3736 = vand.u32 %v3735, 4294901760
    %v3737 = vsub.f32 %v3735, %v3736
    %v3738 = vand.u32 %v3737, 4294901760
    %3739 = vmatmul.mubr.f32.gmra.mrb[0].mxu0 %v3738
    %v3740 = vpop.f32.mrb[0].mxu0
    %v3741 = vadd.f32 0.0, %v3740
    %v3742 = vpop.f32.mrb[0].mxu0
    %3743 = vdwg.mxu0
    %3744 = vmatprep.subr.mxu0 0.0
    %v3745 = vand.u32 %v1042, 4294901760
    %v3746 = vsub.f32 %v1042, %v3745
    %v3747 = vand.u32 %v3746, 4294901760
    %v3748 = vsub.f32 %v3746, %v3747
    %v3749 = vand.u32 %v3748, 4294901760
    %3750 = vmatpush1.msra.mxu0 %v3749
    %3751 = vmatprep.subr.mxu0 0.0
    %v3752 = vand.u32 %v1043, 4294901760
    %v3753 = vsub.f32 %v1043, %v3752
    %v3754 = vand.u32 %v3753, 4294901760
    %v3755 = vsub.f32 %v3753, %v3754
    %v3756 = vand.u32 %v3755, 4294901760
    %3757 = vmatpush1.msra.mxu0 %v3756
    %3758 = vmatprep.subr.mxu0 0.0
    %v3759 = vand.u32 %v1044, 4294901760
    %v3760 = vsub.f32 %v1044, %v3759
    %v3761 = vand.u32 %v3760, 4294901760
    %v3762 = vsub.f32 %v3760, %v3761
    %v3763 = vand.u32 %v3762, 4294901760
    %3764 = vmatpush1.msra.mxu0 %v3763
    %3765 = vmatprep.subr.mxu0 0.0
    %v3766 = vand.u32 %v1045, 4294901760
    %v3767 = vsub.f32 %v1045, %v3766
    %v3768 = vand.u32 %v3767, 4294901760
    %v3769 = vsub.f32 %v3767, %v3768
    %v3770 = vand.u32 %v3769, 4294901760
    %3771 = vmatpush1.msra.mxu0 %v3770
    %3772 = vmatprep.subr.mxu0 0.0
    %3773 = vmatpush1.msra.mxu0 0.0
    %3774 = vmatprep.subr.mxu0 0.0
    %3775 = vmatpush1.msra.mxu0 0.0
    %3776 = vmatprep.subr.mxu0 0.0
    %3777 = vmatpush1.msra.mxu0 0.0
    %3778 = vmatprep.subr.mxu0 0.0
    %3779 = vmatpush1.msra.mxu0 0.0
    %3780 = vmatprep.subr.mxu0 0.0
    %3781 = vmatpush1.msra.mxu0 0.0
    %3782 = vmatprep.subr.mxu0 0.0
    %3783 = vmatpush1.msra.mxu0 0.0
    %3784 = vmatprep.subr.mxu0 0.0
    %3785 = vmatpush1.msra.mxu0 0.0
    %3786 = vmatprep.subr.mxu0 0.0
    %3787 = vmatpush1.msra.mxu0 0.0
    %3788 = vmatprep.subr.mxu0 0.0
    %3789 = vmatpush1.msra.mxu0 0.0
    %3790 = vmatprep.subr.mxu0 0.0
    %3791 = vmatpush1.msra.mxu0 0.0
    %3792 = vmatprep.subr.mxu0 0.0
    %3793 = vmatpush1.msra.mxu0 0.0
    %3794 = vmatprep.subr.mxu0 0.0
    %3795 = vmatpush1.msra.mxu0 0.0
    %3796 = vmatprep.subr.mxu0 0.0
    %3797 = vmatpush1.msra.mxu0 0.0
    %3798 = vmatprep.subr.mxu0 0.0
    %3799 = vmatpush1.msra.mxu0 0.0
    %3800 = vmatprep.subr.mxu0 0.0
    %3801 = vmatpush1.msra.mxu0 0.0
    %3802 = vmatprep.subr.mxu0 0.0
    %3803 = vmatpush1.msra.mxu0 0.0
    %3804 = vmatprep.subr.mxu0 0.0
    %3805 = vmatpush1.msra.mxu0 0.0
    %3806 = vmatprep.subr.mxu0 0.0
    %3807 = vmatpush1.msra.mxu0 0.0
    %3808 = vmatprep.subr.mxu0 0.0
    %3809 = vmatpush1.msra.mxu0 0.0
    %3810 = vmatprep.subr.mxu0 0.0
    %3811 = vmatpush1.msra.mxu0 0.0
    %3812 = vmatprep.subr.mxu0 0.0
    %3813 = vmatpush1.msra.mxu0 0.0
    %3814 = vmatprep.subr.mxu0 0.0
    %3815 = vmatpush1.msra.mxu0 0.0
    %3816 = vmatprep.subr.mxu0 0.0
    %3817 = vmatpush1.msra.mxu0 0.0
    %3818 = vmatprep.subr.mxu0 0.0
    %3819 = vmatpush1.msra.mxu0 0.0
    %3820 = vmatprep.subr.mxu0 0.0
    %3821 = vmatpush1.msra.mxu0 0.0
    %3822 = vmatprep.subr.mxu0 0.0
    %3823 = vmatpush1.msra.mxu0 0.0
    %3824 = vmatprep.subr.mxu0 0.0
    %3825 = vmatpush1.msra.mxu0 0.0
    %3826 = vmatprep.subr.mxu0 0.0
    %3827 = vmatpush1.msra.mxu0 0.0
    %3828 = vmatprep.mubr.f32.mxu0 0.0
    %v3829 = vand.u32 %v3663, 4294901760
    %3830 = vmatmul.mubr.f32.gmra.mrb[0].mxu0 %v3829
    %v3831 = vpop.f32.mrb[0].mxu0
    %v3832 = vadd.f32 %v3741, %v3831
    %v3833 = vpop.f32.mrb[0].mxu0
    %3834 = vdwg.mxu0
    %3835 = vmatprep.subr.mxu0 0.0
    %v3836 = vand.u32 %v1042, 4294901760
    %v3837 = vsub.f32 %v1042, %v3836
    %3838 = vmatpush1.msra.mxu0 %v3837
    %3839 = vmatprep.subr.mxu0 0.0
    %v3840 = vand.u32 %v1043, 4294901760
    %v3841 = vsub.f32 %v1043, %v3840
    %3842 = vmatpush1.msra.mxu0 %v3841
    %3843 = vmatprep.subr.mxu0 0.0
    %v3844 = vand.u32 %v1044, 4294901760
    %v3845 = vsub.f32 %v1044, %v3844
    %3846 = vmatpush1.msra.mxu0 %v3845
    %3847 = vmatprep.subr.mxu0 0.0
    %v3848 = vand.u32 %v1045, 4294901760
    %v3849 = vsub.f32 %v1045, %v3848
    %3850 = vmatpush1.msra.mxu0 %v3849
    %3851 = vmatprep.subr.mxu0 0.0
    %3852 = vmatpush1.msra.mxu0 0.0
    %3853 = vmatprep.subr.mxu0 0.0
    %3854 = vmatpush1.msra.mxu0 0.0
    %3855 = vmatprep.subr.mxu0 0.0
    %3856 = vmatpush1.msra.mxu0 0.0
    %3857 = vmatprep.subr.mxu0 0.0
    %3858 = vmatpush1.msra.mxu0 0.0
    %3859 = vmatprep.subr.mxu0 0.0
    %3860 = vmatpush1.msra.mxu0 0.0
    %3861 = vmatprep.subr.mxu0 0.0
    %3862 = vmatpush1.msra.mxu0 0.0
    %3863 = vmatprep.subr.mxu0 0.0
    %3864 = vmatpush1.msra.mxu0 0.0
    %3865 = vmatprep.subr.mxu0 0.0
    %3866 = vmatpush1.msra.mxu0 0.0
    %3867 = vmatprep.subr.mxu0 0.0
    %3868 = vmatpush1.msra.mxu0 0.0
    %3869 = vmatprep.subr.mxu0 0.0
    %3870 = vmatpush1.msra.mxu0 0.0
    %3871 = vmatprep.subr.mxu0 0.0
    %3872 = vmatpush1.msra.mxu0 0.0
    %3873 = vmatprep.subr.mxu0 0.0
    %3874 = vmatpush1.msra.mxu0 0.0
    %3875 = vmatprep.subr.mxu0 0.0
    %3876 = vmatpush1.msra.mxu0 0.0
    %3877 = vmatprep.subr.mxu0 0.0
    %3878 = vmatpush1.msra.mxu0 0.0
    %3879 = vmatprep.subr.mxu0 0.0
    %3880 = vmatpush1.msra.mxu0 0.0
    %3881 = vmatprep.subr.mxu0 0.0
    %3882 = vmatpush1.msra.mxu0 0.0
    %3883 = vmatprep.subr.mxu0 0.0
    %3884 = vmatpush1.msra.mxu0 0.0
    %3885 = vmatprep.subr.mxu0 0.0
    %3886 = vmatpush1.msra.mxu0 0.0
    %3887 = vmatprep.subr.mxu0 0.0
    %3888 = vmatpush1.msra.mxu0 0.0
    %3889 = vmatprep.subr.mxu0 0.0
    %3890 = vmatpush1.msra.mxu0 0.0
    %3891 = vmatprep.subr.mxu0 0.0
    %3892 = vmatpush1.msra.mxu0 0.0
    %3893 = vmatprep.subr.mxu0 0.0
    %3894 = vmatpush1.msra.mxu0 0.0
    %3895 = vmatprep.subr.mxu0 0.0
    %3896 = vmatpush1.msra.mxu0 0.0
    %3897 = vmatprep.subr.mxu0 0.0
    %3898 = vmatpush1.msra.mxu0 0.0
    %3899 = vmatprep.subr.mxu0 0.0
    %3900 = vmatpush1.msra.mxu0 0.0
    %3901 = vmatprep.subr.mxu0 0.0
    %3902 = vmatpush1.msra.mxu0 0.0
    %3903 = vmatprep.subr.mxu0 0.0
    %3904 = vmatpush1.msra.mxu0 0.0
    %3905 = vmatprep.subr.mxu0 0.0
    %3906 = vmatpush1.msra.mxu0 0.0
    %3907 = vmatprep.mubr.f32.mxu0 0.0
    %v3908 = vand.u32 %v3663, 4294901760
    %v3909 = vsub.f32 %v3663, %v3908
    %3910 = vmatmul.mubr.f32.gmra.mrb[0].mxu0 %v3909
    %v3911 = vpop.f32.mrb[0].mxu0
    %v3912 = vadd.f32 %v3832, %v3911
    %v3913 = vpop.f32.mrb[0].mxu0
    %3914 = vdwg.mxu0
    %3915 = vmatprep.subr.mxu0 0.0
    %v3916 = vand.u32 %v1042, 4294901760
    %3917 = vmatpush1.msra.mxu0 %v3916
    %3918 = vmatprep.subr.mxu0 0.0
    %v3919 = vand.u32 %v1043, 4294901760
    %3920 = vmatpush1.msra.mxu0 %v3919
    %3921 = vmatprep.subr.mxu0 0.0
    %v3922 = vand.u32 %v1044, 4294901760
    %3923 = vmatpush1.msra.mxu0 %v3922
    %3924 = vmatprep.subr.mxu0 0.0
    %v3925 = vand.u32 %v1045, 4294901760
    %3926 = vmatpush1.msra.mxu0 %v3925
    %3927 = vmatprep.subr.mxu0 0.0
    %3928 = vmatpush1.msra.mxu0 0.0
    %3929 = vmatprep.subr.mxu0 0.0
    %3930 = vmatpush1.msra.mxu0 0.0
    %3931 = vmatprep.subr.mxu0 0.0
    %3932 = vmatpush1.msra.mxu0 0.0
    %3933 = vmatprep.subr.mxu0 0.0
    %3934 = vmatpush1.msra.mxu0 0.0
    %3935 = vmatprep.subr.mxu0 0.0
    %3936 = vmatpush1.msra.mxu0 0.0
    %3937 = vmatprep.subr.mxu0 0.0
    %3938 = vmatpush1.msra.mxu0 0.0
    %3939 = vmatprep.subr.mxu0 0.0
    %3940 = vmatpush1.msra.mxu0 0.0
    %3941 = vmatprep.subr.mxu0 0.0
    %3942 = vmatpush1.msra.mxu0 0.0
    %3943 = vmatprep.subr.mxu0 0.0
    %3944 = vmatpush1.msra.mxu0 0.0
    %3945 = vmatprep.subr.mxu0 0.0
    %3946 = vmatpush1.msra.mxu0 0.0
    %3947 = vmatprep.subr.mxu0 0.0
    %3948 = vmatpush1.msra.mxu0 0.0
    %3949 = vmatprep.subr.mxu0 0.0
    %3950 = vmatpush1.msra.mxu0 0.0
    %3951 = vmatprep.subr.mxu0 0.0
    %3952 = vmatpush1.msra.mxu0 0.0
    %3953 = vmatprep.subr.mxu0 0.0
    %3954 = vmatpush1.msra.mxu0 0.0
    %3955 = vmatprep.subr.mxu0 0.0
    %3956 = vmatpush1.msra.mxu0 0.0
    %3957 = vmatprep.subr.mxu0 0.0
    %3958 = vmatpush1.msra.mxu0 0.0
    %3959 = vmatprep.subr.mxu0 0.0
    %3960 = vmatpush1.msra.mxu0 0.0
    %3961 = vmatprep.subr.mxu0 0.0
    %3962 = vmatpush1.msra.mxu0 0.0
    %3963 = vmatprep.subr.mxu0 0.0
    %3964 = vmatpush1.msra.mxu0 0.0
    %3965 = vmatprep.subr.mxu0 0.0
    %3966 = vmatpush1.msra.mxu0 0.0
    %3967 = vmatprep.subr.mxu0 0.0
    %3968 = vmatpush1.msra.mxu0 0.0
    %3969 = vmatprep.subr.mxu0 0.0
    %3970 = vmatpush1.msra.mxu0 0.0
    %3971 = vmatprep.subr.mxu0 0.0
    %3972 = vmatpush1.msra.mxu0 0.0
    %3973 = vmatprep.subr.mxu0 0.0
    %3974 = vmatpush1.msra.mxu0 0.0
    %3975 = vmatprep.subr.mxu0 0.0
    %3976 = vmatpush1.msra.mxu0 0.0
    %3977 = vmatprep.subr.mxu0 0.0
    %3978 = vmatpush1.msra.mxu0 0.0
    %3979 = vmatprep.subr.mxu0 0.0
    %3980 = vmatpush1.msra.mxu0 0.0
    %3981 = vmatprep.subr.mxu0 0.0
    %3982 = vmatpush1.msra.mxu0 0.0
    %3983 = vmatprep.mubr.f32.mxu0 0.0
    %v3984 = vand.u32 %v3663, 4294901760
    %v3985 = vsub.f32 %v3663, %v3984
    %v3986 = vand.u32 %v3985, 4294901760
    %3987 = vmatmul.mubr.f32.gmra.mrb[0].mxu0 %v3986
    %v3988 = vpop.f32.mrb[0].mxu0
    %v3989 = vadd.f32 %v3912, %v3988
    %v3990 = vpop.f32.mrb[0].mxu0
    %3991 = vdwg.mxu0
    %3992 = vmatprep.subr.mxu0 0.0
    %v3993 = vand.u32 %v1042, 4294901760
    %v3994 = vsub.f32 %v1042, %v3993
    %v3995 = vand.u32 %v3994, 4294901760
    %3996 = vmatpush1.msra.mxu0 %v3995
    %3997 = vmatprep.subr.mxu0 0.0
    %v3998 = vand.u32 %v1043, 4294901760
    %v3999 = vsub.f32 %v1043, %v3998
    %v4000 = vand.u32 %v3999, 4294901760
    %4001 = vmatpush1.msra.mxu0 %v4000
    %4002 = vmatprep.subr.mxu0 0.0
    %v4003 = vand.u32 %v1044, 4294901760
    %v4004 = vsub.f32 %v1044, %v4003
    %v4005 = vand.u32 %v4004, 4294901760
    %4006 = vmatpush1.msra.mxu0 %v4005
    %4007 = vmatprep.subr.mxu0 0.0
    %v4008 = vand.u32 %v1045, 4294901760
    %v4009 = vsub.f32 %v1045, %v4008
    %v4010 = vand.u32 %v4009, 4294901760
    %4011 = vmatpush1.msra.mxu0 %v4010
    %4012 = vmatprep.subr.mxu0 0.0
    %4013 = vmatpush1.msra.mxu0 0.0
    %4014 = vmatprep.subr.mxu0 0.0
    %4015 = vmatpush1.msra.mxu0 0.0
    %4016 = vmatprep.subr.mxu0 0.0
    %4017 = vmatpush1.msra.mxu0 0.0
    %4018 = vmatprep.subr.mxu0 0.0
    %4019 = vmatpush1.msra.mxu0 0.0
    %4020 = vmatprep.subr.mxu0 0.0
    %4021 = vmatpush1.msra.mxu0 0.0
    %4022 = vmatprep.subr.mxu0 0.0
    %4023 = vmatpush1.msra.mxu0 0.0
    %4024 = vmatprep.subr.mxu0 0.0
    %4025 = vmatpush1.msra.mxu0 0.0
    %4026 = vmatprep.subr.mxu0 0.0
    %4027 = vmatpush1.msra.mxu0 0.0
    %4028 = vmatprep.subr.mxu0 0.0
    %4029 = vmatpush1.msra.mxu0 0.0
    %4030 = vmatprep.subr.mxu0 0.0
    %4031 = vmatpush1.msra.mxu0 0.0
    %4032 = vmatprep.subr.mxu0 0.0
    %4033 = vmatpush1.msra.mxu0 0.0
    %4034 = vmatprep.subr.mxu0 0.0
    %4035 = vmatpush1.msra.mxu0 0.0
    %4036 = vmatprep.subr.mxu0 0.0
    %4037 = vmatpush1.msra.mxu0 0.0
    %4038 = vmatprep.subr.mxu0 0.0
    %4039 = vmatpush1.msra.mxu0 0.0
    %4040 = vmatprep.subr.mxu0 0.0
    %4041 = vmatpush1.msra.mxu0 0.0
    %4042 = vmatprep.subr.mxu0 0.0
    %4043 = vmatpush1.msra.mxu0 0.0
    %4044 = vmatprep.subr.mxu0 0.0
    %4045 = vmatpush1.msra.mxu0 0.0
    %4046 = vmatprep.subr.mxu0 0.0
    %4047 = vmatpush1.msra.mxu0 0.0
    %4048 = vmatprep.subr.mxu0 0.0
    %4049 = vmatpush1.msra.mxu0 0.0
    %4050 = vmatprep.subr.mxu0 0.0
    %4051 = vmatpush1.msra.mxu0 0.0
    %4052 = vmatprep.subr.mxu0 0.0
    %4053 = vmatpush1.msra.mxu0 0.0
    %4054 = vmatprep.subr.mxu0 0.0
    %4055 = vmatpush1.msra.mxu0 0.0
    %4056 = vmatprep.subr.mxu0 0.0
    %4057 = vmatpush1.msra.mxu0 0.0
    %4058 = vmatprep.subr.mxu0 0.0
    %4059 = vmatpush1.msra.mxu0 0.0
    %4060 = vmatprep.subr.mxu0 0.0
    %4061 = vmatpush1.msra.mxu0 0.0
    %4062 = vmatprep.subr.mxu0 0.0
    %4063 = vmatpush1.msra.mxu0 0.0
    %4064 = vmatprep.subr.mxu0 0.0
    %4065 = vmatpush1.msra.mxu0 0.0
    %4066 = vmatprep.subr.mxu0 0.0
    %4067 = vmatpush1.msra.mxu0 0.0
    %4068 = vmatprep.mubr.f32.mxu0 0.0
    %v4069 = vand.u32 %v3663, 4294901760
    %4070 = vmatmul.mubr.f32.gmra.mrb[0].mxu0 %v4069
    %v4071 = vpop.f32.mrb[0].mxu0
    %v4072 = vadd.f32 %v3989, %v4071
    %v4073 = vpop.f32.mrb[0].mxu0
    %4074 = vdwg.mxu0
    %4075 = vmatprep.subr.mxu0 0.0
    %v4076 = vand.u32 %v1042, 4294901760
    %4077 = vmatpush1.msra.mxu0 %v4076
    %4078 = vmatprep.subr.mxu0 0.0
    %v4079 = vand.u32 %v1043, 4294901760
    %4080 = vmatpush1.msra.mxu0 %v4079
    %4081 = vmatprep.subr.mxu0 0.0
    %v4082 = vand.u32 %v1044, 4294901760
    %4083 = vmatpush1.msra.mxu0 %v4082
    %4084 = vmatprep.subr.mxu0 0.0
    %v4085 = vand.u32 %v1045, 4294901760
    %4086 = vmatpush1.msra.mxu0 %v4085
    %4087 = vmatprep.subr.mxu0 0.0
    %4088 = vmatpush1.msra.mxu0 0.0
    %4089 = vmatprep.subr.mxu0 0.0
    %4090 = vmatpush1.msra.mxu0 0.0
    %4091 = vmatprep.subr.mxu0 0.0
    %4092 = vmatpush1.msra.mxu0 0.0
    %4093 = vmatprep.subr.mxu0 0.0
    %4094 = vmatpush1.msra.mxu0 0.0
    %4095 = vmatprep.subr.mxu0 0.0
    %4096 = vmatpush1.msra.mxu0 0.0
    %4097 = vmatprep.subr.mxu0 0.0
    %4098 = vmatpush1.msra.mxu0 0.0
    %4099 = vmatprep.subr.mxu0 0.0
    %4100 = vmatpush1.msra.mxu0 0.0
    %4101 = vmatprep.subr.mxu0 0.0
    %4102 = vmatpush1.msra.mxu0 0.0
    %4103 = vmatprep.subr.mxu0 0.0
    %4104 = vmatpush1.msra.mxu0 0.0
    %4105 = vmatprep.subr.mxu0 0.0
    %4106 = vmatpush1.msra.mxu0 0.0
    %4107 = vmatprep.subr.mxu0 0.0
    %4108 = vmatpush1.msra.mxu0 0.0
    %4109 = vmatprep.subr.mxu0 0.0
    %4110 = vmatpush1.msra.mxu0 0.0
    %4111 = vmatprep.subr.mxu0 0.0
    %4112 = vmatpush1.msra.mxu0 0.0
    %4113 = vmatprep.subr.mxu0 0.0
    %4114 = vmatpush1.msra.mxu0 0.0
    %4115 = vmatprep.subr.mxu0 0.0
    %4116 = vmatpush1.msra.mxu0 0.0
    %4117 = vmatprep.subr.mxu0 0.0
    %4118 = vmatpush1.msra.mxu0 0.0
    %4119 = vmatprep.subr.mxu0 0.0
    %4120 = vmatpush1.msra.mxu0 0.0
    %4121 = vmatprep.subr.mxu0 0.0
    %4122 = vmatpush1.msra.mxu0 0.0
    %4123 = vmatprep.subr.mxu0 0.0
    %4124 = vmatpush1.msra.mxu0 0.0
    %4125 = vmatprep.subr.mxu0 0.0
    %4126 = vmatpush1.msra.mxu0 0.0
    %4127 = vmatprep.subr.mxu0 0.0
    %4128 = vmatpush1.msra.mxu0 0.0
    %4129 = vmatprep.subr.mxu0 0.0
    %4130 = vmatpush1.msra.mxu0 0.0
    %4131 = vmatprep.subr.mxu0 0.0
    %4132 = vmatpush1.msra.mxu0 0.0
    %4133 = vmatprep.subr.mxu0 0.0
    %4134 = vmatpush1.msra.mxu0 0.0
    %4135 = vmatprep.subr.mxu0 0.0
    %4136 = vmatpush1.msra.mxu0 0.0
    %4137 = vmatprep.subr.mxu0 0.0
    %4138 = vmatpush1.msra.mxu0 0.0
    %4139 = vmatprep.subr.mxu0 0.0
    %4140 = vmatpush1.msra.mxu0 0.0
    %4141 = vmatprep.subr.mxu0 0.0
    %4142 = vmatpush1.msra.mxu0 0.0
    %4143 = vmatprep.mubr.f32.mxu0 0.0
    %v4144 = vand.u32 %v3663, 4294901760
    %4145 = vmatmul.mubr.f32.gmra.mrb[0].mxu0 %v4144
    %v4146 = vpop.f32.mrb[0].mxu0
    %v4147 = vadd.f32 %v4072, %v4146
    %v4148 = vpop.f32.mrb[0].mxu0
    %4149 = vdwg.mxu0
    %v4150 = vadd.f32 %v1033, %v4147
    %v4151 = vxor.u32 %v4150, 2147483648
    %v4152 = vmul.f32 %v4151, 1.442695
    %v4153 = vpow.pop %v4152
    %v4154 = vadd.f32 %v4153, 1.0
    %v4155 = vrcp.pop %v4154
    %v4156 = vmul.f32 1.0, %v4155
    %v4157 = vadd.f32 %v4147, %v1570
    %4159 = vrot.lane.b32.xlu0 %v4157, 64
    %v4160 = vpop.permute.xlu0 %4159
    %v4162 = vmul.f32 %v4156, %v4160
    %4164 = vrot.lane.b32.xlu0 %v4162, 64
    %v4165 = vpop.permute.xlu0 %4164
    %v4167 = vadd.f32 %v1033, %v4165
    %v4168 = vtanh.pop %v4167
    %v4169 = vsub.f32 1.0, %v4156
    %4171 = vrot.lane.b32.xlu0 %v4168, 96
    %v4172 = vpop.permute.xlu0 %4171
    %v4174 = vmul.f32 %v4169, %v4172
    %v4175 = vmul.f32 %v4156, %v3659
    %v4176 = vadd.f32 %v4174, %v4175
    %4178 = vrot.lane.b32.xlu0 %v4176, 96
    %v4179 = vpop.permute.xlu0 %4178
    %v4180 = vsel %vm1073, %v4179, 0
    %4182 = vmatprep.subr.mxu0 0.0
    %v4183 = vand.u32 %v1042, 4294901760
    %4184 = vmatpush1.msra.mxu0 %v4183
    %4185 = vmatprep.subr.mxu0 0.0
    %v4186 = vand.u32 %v1043, 4294901760
    %4187 = vmatpush1.msra.mxu0 %v4186
    %4188 = vmatprep.subr.mxu0 0.0
    %v4189 = vand.u32 %v1044, 4294901760
    %4190 = vmatpush1.msra.mxu0 %v4189
    %4191 = vmatprep.subr.mxu0 0.0
    %v4192 = vand.u32 %v1045, 4294901760
    %4193 = vmatpush1.msra.mxu0 %v4192
    %4194 = vmatprep.subr.mxu0 0.0
    %4195 = vmatpush1.msra.mxu0 0.0
    %4196 = vmatprep.subr.mxu0 0.0
    %4197 = vmatpush1.msra.mxu0 0.0
    %4198 = vmatprep.subr.mxu0 0.0
    %4199 = vmatpush1.msra.mxu0 0.0
    %4200 = vmatprep.subr.mxu0 0.0
    %4201 = vmatpush1.msra.mxu0 0.0
    %4202 = vmatprep.subr.mxu0 0.0
    %4203 = vmatpush1.msra.mxu0 0.0
    %4204 = vmatprep.subr.mxu0 0.0
    %4205 = vmatpush1.msra.mxu0 0.0
    %4206 = vmatprep.subr.mxu0 0.0
    %4207 = vmatpush1.msra.mxu0 0.0
    %4208 = vmatprep.subr.mxu0 0.0
    %4209 = vmatpush1.msra.mxu0 0.0
    %4210 = vmatprep.subr.mxu0 0.0
    %4211 = vmatpush1.msra.mxu0 0.0
    %4212 = vmatprep.subr.mxu0 0.0
    %4213 = vmatpush1.msra.mxu0 0.0
    %4214 = vmatprep.subr.mxu0 0.0
    %4215 = vmatpush1.msra.mxu0 0.0
    %4216 = vmatprep.subr.mxu0 0.0
    %4217 = vmatpush1.msra.mxu0 0.0
    %4218 = vmatprep.subr.mxu0 0.0
    %4219 = vmatpush1.msra.mxu0 0.0
    %4220 = vmatprep.subr.mxu0 0.0
    %4221 = vmatpush1.msra.mxu0 0.0
    %4222 = vmatprep.subr.mxu0 0.0
    %4223 = vmatpush1.msra.mxu0 0.0
    %4224 = vmatprep.subr.mxu0 0.0
    %4225 = vmatpush1.msra.mxu0 0.0
    %4226 = vmatprep.subr.mxu0 0.0
    %4227 = vmatpush1.msra.mxu0 0.0
    %4228 = vmatprep.subr.mxu0 0.0
    %4229 = vmatpush1.msra.mxu0 0.0
    %4230 = vmatprep.subr.mxu0 0.0
    %4231 = vmatpush1.msra.mxu0 0.0
    %4232 = vmatprep.subr.mxu0 0.0
    %4233 = vmatpush1.msra.mxu0 0.0
    %4234 = vmatprep.subr.mxu0 0.0
    %4235 = vmatpush1.msra.mxu0 0.0
    %4236 = vmatprep.subr.mxu0 0.0
    %4237 = vmatpush1.msra.mxu0 0.0
    %4238 = vmatprep.subr.mxu0 0.0
    %4239 = vmatpush1.msra.mxu0 0.0
    %4240 = vmatprep.subr.mxu0 0.0
    %4241 = vmatpush1.msra.mxu0 0.0
    %4242 = vmatprep.subr.mxu0 0.0
    %4243 = vmatpush1.msra.mxu0 0.0
    %4244 = vmatprep.subr.mxu0 0.0
    %4245 = vmatpush1.msra.mxu0 0.0
    %4246 = vmatprep.subr.mxu0 0.0
    %4247 = vmatpush1.msra.mxu0 0.0
    %4248 = vmatprep.subr.mxu0 0.0
    %4249 = vmatpush1.msra.mxu0 0.0
    %4250 = vmatprep.mubr.f32.mxu0 0.0
    %v4251 = vand.u32 %v4180, 4294901760
    %v4252 = vsub.f32 %v4180, %v4251
    %v4253 = vand.u32 %v4252, 4294901760
    %v4254 = vsub.f32 %v4252, %v4253
    %v4255 = vand.u32 %v4254, 4294901760
    %4256 = vmatmul.mubr.f32.gmra.mrb[0].mxu0 %v4255
    %v4257 = vpop.f32.mrb[0].mxu0
    %v4258 = vadd.f32 0.0, %v4257
    %v4259 = vpop.f32.mrb[0].mxu0
    %4260 = vdwg.mxu0
    %4261 = vmatprep.subr.mxu0 0.0
    %v4262 = vand.u32 %v1042, 4294901760
    %v4263 = vsub.f32 %v1042, %v4262
    %v4264 = vand.u32 %v4263, 4294901760
    %v4265 = vsub.f32 %v4263, %v4264
    %v4266 = vand.u32 %v4265, 4294901760
    %4267 = vmatpush1.msra.mxu0 %v4266
    %4268 = vmatprep.subr.mxu0 0.0
    %v4269 = vand.u32 %v1043, 4294901760
    %v4270 = vsub.f32 %v1043, %v4269
    %v4271 = vand.u32 %v4270, 4294901760
    %v4272 = vsub.f32 %v4270, %v4271
    %v4273 = vand.u32 %v4272, 4294901760
    %4274 = vmatpush1.msra.mxu0 %v4273
    %4275 = vmatprep.subr.mxu0 0.0
    %v4276 = vand.u32 %v1044, 4294901760
    %v4277 = vsub.f32 %v1044, %v4276
    %v4278 = vand.u32 %v4277, 4294901760
    %v4279 = vsub.f32 %v4277, %v4278
    %v4280 = vand.u32 %v4279, 4294901760
    %4281 = vmatpush1.msra.mxu0 %v4280
    %4282 = vmatprep.subr.mxu0 0.0
    %v4283 = vand.u32 %v1045, 4294901760
    %v4284 = vsub.f32 %v1045, %v4283
    %v4285 = vand.u32 %v4284, 4294901760
    %v4286 = vsub.f32 %v4284, %v4285
    %v4287 = vand.u32 %v4286, 4294901760
    %4288 = vmatpush1.msra.mxu0 %v4287
    %4289 = vmatprep.subr.mxu0 0.0
    %4290 = vmatpush1.msra.mxu0 0.0
    %4291 = vmatprep.subr.mxu0 0.0
    %4292 = vmatpush1.msra.mxu0 0.0
    %4293 = vmatprep.subr.mxu0 0.0
    %4294 = vmatpush1.msra.mxu0 0.0
    %4295 = vmatprep.subr.mxu0 0.0
    %4296 = vmatpush1.msra.mxu0 0.0
    %4297 = vmatprep.subr.mxu0 0.0
    %4298 = vmatpush1.msra.mxu0 0.0
    %4299 = vmatprep.subr.mxu0 0.0
    %4300 = vmatpush1.msra.mxu0 0.0
    %4301 = vmatprep.subr.mxu0 0.0
    %4302 = vmatpush1.msra.mxu0 0.0
    %4303 = vmatprep.subr.mxu0 0.0
    %4304 = vmatpush1.msra.mxu0 0.0
    %4305 = vmatprep.subr.mxu0 0.0
    %4306 = vmatpush1.msra.mxu0 0.0
    %4307 = vmatprep.subr.mxu0 0.0
    %4308 = vmatpush1.msra.mxu0 0.0
    %4309 = vmatprep.subr.mxu0 0.0
    %4310 = vmatpush1.msra.mxu0 0.0
    %4311 = vmatprep.subr.mxu0 0.0
    %4312 = vmatpush1.msra.mxu0 0.0
    %4313 = vmatprep.subr.mxu0 0.0
    %4314 = vmatpush1.msra.mxu0 0.0
    %4315 = vmatprep.subr.mxu0 0.0
    %4316 = vmatpush1.msra.mxu0 0.0
    %4317 = vmatprep.subr.mxu0 0.0
    %4318 = vmatpush1.msra.mxu0 0.0
    %4319 = vmatprep.subr.mxu0 0.0
    %4320 = vmatpush1.msra.mxu0 0.0
    %4321 = vmatprep.subr.mxu0 0.0
    %4322 = vmatpush1.msra.mxu0 0.0
    %4323 = vmatprep.subr.mxu0 0.0
    %4324 = vmatpush1.msra.mxu0 0.0
    %4325 = vmatprep.subr.mxu0 0.0
    %4326 = vmatpush1.msra.mxu0 0.0
    %4327 = vmatprep.subr.mxu0 0.0
    %4328 = vmatpush1.msra.mxu0 0.0
    %4329 = vmatprep.subr.mxu0 0.0
    %4330 = vmatpush1.msra.mxu0 0.0
    %4331 = vmatprep.subr.mxu0 0.0
    %4332 = vmatpush1.msra.mxu0 0.0
    %4333 = vmatprep.subr.mxu0 0.0
    %4334 = vmatpush1.msra.mxu0 0.0
    %4335 = vmatprep.subr.mxu0 0.0
    %4336 = vmatpush1.msra.mxu0 0.0
    %4337 = vmatprep.subr.mxu0 0.0
    %4338 = vmatpush1.msra.mxu0 0.0
    %4339 = vmatprep.subr.mxu0 0.0
    %4340 = vmatpush1.msra.mxu0 0.0
    %4341 = vmatprep.subr.mxu0 0.0
    %4342 = vmatpush1.msra.mxu0 0.0
    %4343 = vmatprep.subr.mxu0 0.0
    %4344 = vmatpush1.msra.mxu0 0.0
    %4345 = vmatprep.mubr.f32.mxu0 0.0
    %v4346 = vand.u32 %v4180, 4294901760
    %4347 = vmatmul.mubr.f32.gmra.mrb[0].mxu0 %v4346
    %v4348 = vpop.f32.mrb[0].mxu0
    %v4349 = vadd.f32 %v4258, %v4348
    %v4350 = vpop.f32.mrb[0].mxu0
    %4351 = vdwg.mxu0
    %4352 = vmatprep.subr.mxu0 0.0
    %v4353 = vand.u32 %v1042, 4294901760
    %v4354 = vsub.f32 %v1042, %v4353
    %4355 = vmatpush1.msra.mxu0 %v4354
    %4356 = vmatprep.subr.mxu0 0.0
    %v4357 = vand.u32 %v1043, 4294901760
    %v4358 = vsub.f32 %v1043, %v4357
    %4359 = vmatpush1.msra.mxu0 %v4358
    %4360 = vmatprep.subr.mxu0 0.0
    %v4361 = vand.u32 %v1044, 4294901760
    %v4362 = vsub.f32 %v1044, %v4361
    %4363 = vmatpush1.msra.mxu0 %v4362
    %4364 = vmatprep.subr.mxu0 0.0
    %v4365 = vand.u32 %v1045, 4294901760
    %v4366 = vsub.f32 %v1045, %v4365
    %4367 = vmatpush1.msra.mxu0 %v4366
    %4368 = vmatprep.subr.mxu0 0.0
    %4369 = vmatpush1.msra.mxu0 0.0
    %4370 = vmatprep.subr.mxu0 0.0
    %4371 = vmatpush1.msra.mxu0 0.0
    %4372 = vmatprep.subr.mxu0 0.0
    %4373 = vmatpush1.msra.mxu0 0.0
    %4374 = vmatprep.subr.mxu0 0.0
    %4375 = vmatpush1.msra.mxu0 0.0
    %4376 = vmatprep.subr.mxu0 0.0
    %4377 = vmatpush1.msra.mxu0 0.0
    %4378 = vmatprep.subr.mxu0 0.0
    %4379 = vmatpush1.msra.mxu0 0.0
    %4380 = vmatprep.subr.mxu0 0.0
    %4381 = vmatpush1.msra.mxu0 0.0
    %4382 = vmatprep.subr.mxu0 0.0
    %4383 = vmatpush1.msra.mxu0 0.0
    %4384 = vmatprep.subr.mxu0 0.0
    %4385 = vmatpush1.msra.mxu0 0.0
    %4386 = vmatprep.subr.mxu0 0.0
    %4387 = vmatpush1.msra.mxu0 0.0
    %4388 = vmatprep.subr.mxu0 0.0
    %4389 = vmatpush1.msra.mxu0 0.0
    %4390 = vmatprep.subr.mxu0 0.0
    %4391 = vmatpush1.msra.mxu0 0.0
    %4392 = vmatprep.subr.mxu0 0.0
    %4393 = vmatpush1.msra.mxu0 0.0
    %4394 = vmatprep.subr.mxu0 0.0
    %4395 = vmatpush1.msra.mxu0 0.0
    %4396 = vmatprep.subr.mxu0 0.0
    %4397 = vmatpush1.msra.mxu0 0.0
    %4398 = vmatprep.subr.mxu0 0.0
    %4399 = vmatpush1.msra.mxu0 0.0
    %4400 = vmatprep.subr.mxu0 0.0
    %4401 = vmatpush1.msra.mxu0 0.0
    %4402 = vmatprep.subr.mxu0 0.0
    %4403 = vmatpush1.msra.mxu0 0.0
    %4404 = vmatprep.subr.mxu0 0.0
    %4405 = vmatpush1.msra.mxu0 0.0
    %4406 = vmatprep.subr.mxu0 0.0
    %4407 = vmatpush1.msra.mxu0 0.0
    %4408 = vmatprep.subr.mxu0 0.0
    %4409 = vmatpush1.msra.mxu0 0.0
    %4410 = vmatprep.subr.mxu0 0.0
    %4411 = vmatpush1.msra.mxu0 0.0
    %4412 = vmatprep.subr.mxu0 0.0
    %4413 = vmatpush1.msra.mxu0 0.0
    %4414 = vmatprep.subr.mxu0 0.0
    %4415 = vmatpush1.msra.mxu0 0.0
    %4416 = vmatprep.subr.mxu0 0.0
    %4417 = vmatpush1.msra.mxu0 0.0
    %4418 = vmatprep.subr.mxu0 0.0
    %4419 = vmatpush1.msra.mxu0 0.0
    %4420 = vmatprep.subr.mxu0 0.0
    %4421 = vmatpush1.msra.mxu0 0.0
    %4422 = vmatprep.subr.mxu0 0.0
    %4423 = vmatpush1.msra.mxu0 0.0
    %4424 = vmatprep.mubr.f32.mxu0 0.0
    %v4425 = vand.u32 %v4180, 4294901760
    %v4426 = vsub.f32 %v4180, %v4425
    %4427 = vmatmul.mubr.f32.gmra.mrb[0].mxu0 %v4426
    %v4428 = vpop.f32.mrb[0].mxu0
    %v4429 = vadd.f32 %v4349, %v4428
    %v4430 = vpop.f32.mrb[0].mxu0
    %4431 = vdwg.mxu0
    %4432 = vmatprep.subr.mxu0 0.0
    %v4433 = vand.u32 %v1042, 4294901760
    %4434 = vmatpush1.msra.mxu0 %v4433
    %4435 = vmatprep.subr.mxu0 0.0
    %v4436 = vand.u32 %v1043, 4294901760
    %4437 = vmatpush1.msra.mxu0 %v4436
    %4438 = vmatprep.subr.mxu0 0.0
    %v4439 = vand.u32 %v1044, 4294901760
    %4440 = vmatpush1.msra.mxu0 %v4439
    %4441 = vmatprep.subr.mxu0 0.0
    %v4442 = vand.u32 %v1045, 4294901760
    %4443 = vmatpush1.msra.mxu0 %v4442
    %4444 = vmatprep.subr.mxu0 0.0
    %4445 = vmatpush1.msra.mxu0 0.0
    %4446 = vmatprep.subr.mxu0 0.0
    %4447 = vmatpush1.msra.mxu0 0.0
    %4448 = vmatprep.subr.mxu0 0.0
    %4449 = vmatpush1.msra.mxu0 0.0
    %4450 = vmatprep.subr.mxu0 0.0
    %4451 = vmatpush1.msra.mxu0 0.0
    %4452 = vmatprep.subr.mxu0 0.0
    %4453 = vmatpush1.msra.mxu0 0.0
    %4454 = vmatprep.subr.mxu0 0.0
    %4455 = vmatpush1.msra.mxu0 0.0
    %4456 = vmatprep.subr.mxu0 0.0
    %4457 = vmatpush1.msra.mxu0 0.0
    %4458 = vmatprep.subr.mxu0 0.0
    %4459 = vmatpush1.msra.mxu0 0.0
    %4460 = vmatprep.subr.mxu0 0.0
    %4461 = vmatpush1.msra.mxu0 0.0
    %4462 = vmatprep.subr.mxu0 0.0
    %4463 = vmatpush1.msra.mxu0 0.0
    %4464 = vmatprep.subr.mxu0 0.0
    %4465 = vmatpush1.msra.mxu0 0.0
    %4466 = vmatprep.subr.mxu0 0.0
    %4467 = vmatpush1.msra.mxu0 0.0
    %4468 = vmatprep.subr.mxu0 0.0
    %4469 = vmatpush1.msra.mxu0 0.0
    %4470 = vmatprep.subr.mxu0 0.0
    %4471 = vmatpush1.msra.mxu0 0.0
    %4472 = vmatprep.subr.mxu0 0.0
    %4473 = vmatpush1.msra.mxu0 0.0
    %4474 = vmatprep.subr.mxu0 0.0
    %4475 = vmatpush1.msra.mxu0 0.0
    %4476 = vmatprep.subr.mxu0 0.0
    %4477 = vmatpush1.msra.mxu0 0.0
    %4478 = vmatprep.subr.mxu0 0.0
    %4479 = vmatpush1.msra.mxu0 0.0
    %4480 = vmatprep.subr.mxu0 0.0
    %4481 = vmatpush1.msra.mxu0 0.0
    %4482 = vmatprep.subr.mxu0 0.0
    %4483 = vmatpush1.msra.mxu0 0.0
    %4484 = vmatprep.subr.mxu0 0.0
    %4485 = vmatpush1.msra.mxu0 0.0
    %4486 = vmatprep.subr.mxu0 0.0
    %4487 = vmatpush1.msra.mxu0 0.0
    %4488 = vmatprep.subr.mxu0 0.0
    %4489 = vmatpush1.msra.mxu0 0.0
    %4490 = vmatprep.subr.mxu0 0.0
    %4491 = vmatpush1.msra.mxu0 0.0
    %4492 = vmatprep.subr.mxu0 0.0
    %4493 = vmatpush1.msra.mxu0 0.0
    %4494 = vmatprep.subr.mxu0 0.0
    %4495 = vmatpush1.msra.mxu0 0.0
    %4496 = vmatprep.subr.mxu0 0.0
    %4497 = vmatpush1.msra.mxu0 0.0
    %4498 = vmatprep.subr.mxu0 0.0
    %4499 = vmatpush1.msra.mxu0 0.0
    %4500 = vmatprep.mubr.f32.mxu0 0.0
    %v4501 = vand.u32 %v4180, 4294901760
    %v4502 = vsub.f32 %v4180, %v4501
    %v4503 = vand.u32 %v4502, 4294901760
    %4504 = vmatmul.mubr.f32.gmra.mrb[0].mxu0 %v4503
    %v4505 = vpop.f32.mrb[0].mxu0
    %v4506 = vadd.f32 %v4429, %v4505
    %v4507 = vpop.f32.mrb[0].mxu0
    %4508 = vdwg.mxu0
    %4509 = vmatprep.subr.mxu0 0.0
    %v4510 = vand.u32 %v1042, 4294901760
    %v4511 = vsub.f32 %v1042, %v4510
    %v4512 = vand.u32 %v4511, 4294901760
    %4513 = vmatpush1.msra.mxu0 %v4512
    %4514 = vmatprep.subr.mxu0 0.0
    %v4515 = vand.u32 %v1043, 4294901760
    %v4516 = vsub.f32 %v1043, %v4515
    %v4517 = vand.u32 %v4516, 4294901760
    %4518 = vmatpush1.msra.mxu0 %v4517
    %4519 = vmatprep.subr.mxu0 0.0
    %v4520 = vand.u32 %v1044, 4294901760
    %v4521 = vsub.f32 %v1044, %v4520
    %v4522 = vand.u32 %v4521, 4294901760
    %4523 = vmatpush1.msra.mxu0 %v4522
    %4524 = vmatprep.subr.mxu0 0.0
    %v4525 = vand.u32 %v1045, 4294901760
    %v4526 = vsub.f32 %v1045, %v4525
    %v4527 = vand.u32 %v4526, 4294901760
    %4528 = vmatpush1.msra.mxu0 %v4527
    %4529 = vmatprep.subr.mxu0 0.0
    %4530 = vmatpush1.msra.mxu0 0.0
    %4531 = vmatprep.subr.mxu0 0.0
    %4532 = vmatpush1.msra.mxu0 0.0
    %4533 = vmatprep.subr.mxu0 0.0
    %4534 = vmatpush1.msra.mxu0 0.0
    %4535 = vmatprep.subr.mxu0 0.0
    %4536 = vmatpush1.msra.mxu0 0.0
    %4537 = vmatprep.subr.mxu0 0.0
    %4538 = vmatpush1.msra.mxu0 0.0
    %4539 = vmatprep.subr.mxu0 0.0
    %4540 = vmatpush1.msra.mxu0 0.0
    %4541 = vmatprep.subr.mxu0 0.0
    %4542 = vmatpush1.msra.mxu0 0.0
    %4543 = vmatprep.subr.mxu0 0.0
    %4544 = vmatpush1.msra.mxu0 0.0
    %4545 = vmatprep.subr.mxu0 0.0
    %4546 = vmatpush1.msra.mxu0 0.0
    %4547 = vmatprep.subr.mxu0 0.0
    %4548 = vmatpush1.msra.mxu0 0.0
    %4549 = vmatprep.subr.mxu0 0.0
    %4550 = vmatpush1.msra.mxu0 0.0
    %4551 = vmatprep.subr.mxu0 0.0
    %4552 = vmatpush1.msra.mxu0 0.0
    %4553 = vmatprep.subr.mxu0 0.0
    %4554 = vmatpush1.msra.mxu0 0.0
    %4555 = vmatprep.subr.mxu0 0.0
    %4556 = vmatpush1.msra.mxu0 0.0
    %4557 = vmatprep.subr.mxu0 0.0
    %4558 = vmatpush1.msra.mxu0 0.0
    %4559 = vmatprep.subr.mxu0 0.0
    %4560 = vmatpush1.msra.mxu0 0.0
    %4561 = vmatprep.subr.mxu0 0.0
    %4562 = vmatpush1.msra.mxu0 0.0
    %4563 = vmatprep.subr.mxu0 0.0
    %4564 = vmatpush1.msra.mxu0 0.0
    %4565 = vmatprep.subr.mxu0 0.0
    %4566 = vmatpush1.msra.mxu0 0.0
    %4567 = vmatprep.subr.mxu0 0.0
    %4568 = vmatpush1.msra.mxu0 0.0
    %4569 = vmatprep.subr.mxu0 0.0
    %4570 = vmatpush1.msra.mxu0 0.0
    %4571 = vmatprep.subr.mxu0 0.0
    %4572 = vmatpush1.msra.mxu0 0.0
    %4573 = vmatprep.subr.mxu0 0.0
    %4574 = vmatpush1.msra.mxu0 0.0
    %4575 = vmatprep.subr.mxu0 0.0
    %4576 = vmatpush1.msra.mxu0 0.0
    %4577 = vmatprep.subr.mxu0 0.0
    %4578 = vmatpush1.msra.mxu0 0.0
    %4579 = vmatprep.subr.mxu0 0.0
    %4580 = vmatpush1.msra.mxu0 0.0
    %4581 = vmatprep.subr.mxu0 0.0
    %4582 = vmatpush1.msra.mxu0 0.0
    %4583 = vmatprep.subr.mxu0 0.0
    %4584 = vmatpush1.msra.mxu0 0.0
    %4585 = vmatprep.mubr.f32.mxu0 0.0
    %v4586 = vand.u32 %v4180, 4294901760
    %4587 = vmatmul.mubr.f32.gmra.mrb[0].mxu0 %v4586
    %v4588 = vpop.f32.mrb[0].mxu0
    %v4589 = vadd.f32 %v4506, %v4588
    %v4590 = vpop.f32.mrb[0].mxu0
    %4591 = vdwg.mxu0
    %4592 = vmatprep.subr.mxu0 0.0
    %v4593 = vand.u32 %v1042, 4294901760
    %4594 = vmatpush1.msra.mxu0 %v4593
    %4595 = vmatprep.subr.mxu0 0.0
    %v4596 = vand.u32 %v1043, 4294901760
    %4597 = vmatpush1.msra.mxu0 %v4596
    %4598 = vmatprep.subr.mxu0 0.0
    %v4599 = vand.u32 %v1044, 4294901760
    %4600 = vmatpush1.msra.mxu0 %v4599
    %4601 = vmatprep.subr.mxu0 0.0
    %v4602 = vand.u32 %v1045, 4294901760
    %4603 = vmatpush1.msra.mxu0 %v4602
    %4604 = vmatprep.subr.mxu0 0.0
    %4605 = vmatpush1.msra.mxu0 0.0
    %4606 = vmatprep.subr.mxu0 0.0
    %4607 = vmatpush1.msra.mxu0 0.0
    %4608 = vmatprep.subr.mxu0 0.0
    %4609 = vmatpush1.msra.mxu0 0.0
    %4610 = vmatprep.subr.mxu0 0.0
    %4611 = vmatpush1.msra.mxu0 0.0
    %4612 = vmatprep.subr.mxu0 0.0
    %4613 = vmatpush1.msra.mxu0 0.0
    %4614 = vmatprep.subr.mxu0 0.0
    %4615 = vmatpush1.msra.mxu0 0.0
    %4616 = vmatprep.subr.mxu0 0.0
    %4617 = vmatpush1.msra.mxu0 0.0
    %4618 = vmatprep.subr.mxu0 0.0
    %4619 = vmatpush1.msra.mxu0 0.0
    %4620 = vmatprep.subr.mxu0 0.0
    %4621 = vmatpush1.msra.mxu0 0.0
    %4622 = vmatprep.subr.mxu0 0.0
    %4623 = vmatpush1.msra.mxu0 0.0
    %4624 = vmatprep.subr.mxu0 0.0
    %4625 = vmatpush1.msra.mxu0 0.0
    %4626 = vmatprep.subr.mxu0 0.0
    %4627 = vmatpush1.msra.mxu0 0.0
    %4628 = vmatprep.subr.mxu0 0.0
    %4629 = vmatpush1.msra.mxu0 0.0
    %4630 = vmatprep.subr.mxu0 0.0
    %4631 = vmatpush1.msra.mxu0 0.0
    %4632 = vmatprep.subr.mxu0 0.0
    %4633 = vmatpush1.msra.mxu0 0.0
    %4634 = vmatprep.subr.mxu0 0.0
    %4635 = vmatpush1.msra.mxu0 0.0
    %4636 = vmatprep.subr.mxu0 0.0
    %4637 = vmatpush1.msra.mxu0 0.0
    %4638 = vmatprep.subr.mxu0 0.0
    %4639 = vmatpush1.msra.mxu0 0.0
    %4640 = vmatprep.subr.mxu0 0.0
    %4641 = vmatpush1.msra.mxu0 0.0
    %4642 = vmatprep.subr.mxu0 0.0
    %4643 = vmatpush1.msra.mxu0 0.0
    %4644 = vmatprep.subr.mxu0 0.0
    %4645 = vmatpush1.msra.mxu0 0.0
    %4646 = vmatprep.subr.mxu0 0.0
    %4647 = vmatpush1.msra.mxu0 0.0
    %4648 = vmatprep.subr.mxu0 0.0
    %4649 = vmatpush1.msra.mxu0 0.0
    %4650 = vmatprep.subr.mxu0 0.0
    %4651 = vmatpush1.msra.mxu0 0.0
    %4652 = vmatprep.subr.mxu0 0.0
    %4653 = vmatpush1.msra.mxu0 0.0
    %4654 = vmatprep.subr.mxu0 0.0
    %4655 = vmatpush1.msra.mxu0 0.0
    %4656 = vmatprep.subr.mxu0 0.0
    %4657 = vmatpush1.msra.mxu0 0.0
    %4658 = vmatprep.subr.mxu0 0.0
    %4659 = vmatpush1.msra.mxu0 0.0
    %4660 = vmatprep.mubr.f32.mxu0 0.0
    %v4661 = vand.u32 %v4180, 4294901760
    %4662 = vmatmul.mubr.f32.gmra.mrb[0].mxu0 %v4661
    %v4663 = vpop.f32.mrb[0].mxu0
    %v4664 = vadd.f32 %v4589, %v4663
    %v4665 = vpop.f32.mrb[0].mxu0
    %4666 = vdwg.mxu0
    %v4667 = vadd.f32 %v1039, %v4664
    %v4668 = vxor.u32 %v4667, 2147483648
    %v4669 = vmul.f32 %v4668, 1.442695
    %v4670 = vpow.pop %v4669
    %v4671 = vadd.f32 %v4670, 1.0
    %v4672 = vrcp.pop %v4671
    %v4673 = vmul.f32 1.0, %v4672
    %v4674 = vadd.f32 %v4664, %v1570
    %4676 = vrot.lane.b32.xlu0 %v4674, 64
    %v4677 = vpop.permute.xlu0 %4676
    %v4679 = vmul.f32 %v4673, %v4677
    %4681 = vrot.lane.b32.xlu0 %v4679, 64
    %v4682 = vpop.permute.xlu0 %4681
    %v4684 = vadd.f32 %v1039, %v4682
    %v4685 = vtanh.pop %v4684
    %v4686 = vsub.f32 1.0, %v4673
    %4688 = vrot.lane.b32.xlu0 %v4685, 96
    %v4689 = vpop.permute.xlu0 %4688
    %v4691 = vmul.f32 %v4686, %v4689
    %v4692 = vmul.f32 %v4673, %v4176
    %v4693 = vadd.f32 %v4691, %v4692
    %v4694 = vld [vmem:[#allocation2 + $0xa8] sm:$0xff]
    %v4695 = vld [vmem:[#allocation2 + $0xb0] sm:$0xff]
    %v4696 = vld [vmem:[#allocation2 + $0xb8] sm:$0xff]
    %v4697 = vld [vmem:[#allocation2 + $0xc0] sm:$0xff]
    %v4698 = vld [vmem:[#allocation2 + $0xc8] sm:$0x1]
    %v4699 = vlaneseq
    %v4700 = vshrl.u32 %v4699, 7
    %v4701 = vsub.s32 0, %v4700
    %v4702 = vrot.slane %v4698, %v4701
    %4704 = vrot.lane.b32.xlu0 %v4693, 96
    %v4705 = vpop.permute.xlu0 %4704
    %v4706 = vsel %vm1073, %v4705, 0
    %4708 = vmatprep.subr.mxu0 0.0
    %v4709 = vand.u32 %v4694, 4294901760
    %4710 = vmatpush1.msra.mxu0 %v4709
    %4711 = vmatprep.subr.mxu0 0.0
    %v4712 = vand.u32 %v4695, 4294901760
    %4713 = vmatpush1.msra.mxu0 %v4712
    %4714 = vmatprep.subr.mxu0 0.0
    %v4715 = vand.u32 %v4696, 4294901760
    %4716 = vmatpush1.msra.mxu0 %v4715
    %4717 = vmatprep.subr.mxu0 0.0
    %v4718 = vand.u32 %v4697, 4294901760
    %4719 = vmatpush1.msra.mxu0 %v4718
    %4720 = vmatprep.subr.mxu0 0.0
    %4721 = vmatpush1.msra.mxu0 0.0
    %4722 = vmatprep.subr.mxu0 0.0
    %4723 = vmatpush1.msra.mxu0 0.0
    %4724 = vmatprep.subr.mxu0 0.0
    %4725 = vmatpush1.msra.mxu0 0.0
    %4726 = vmatprep.subr.mxu0 0.0
    %4727 = vmatpush1.msra.mxu0 0.0
    %4728 = vmatprep.subr.mxu0 0.0
    %4729 = vmatpush1.msra.mxu0 0.0
    %4730 = vmatprep.subr.mxu0 0.0
    %4731 = vmatpush1.msra.mxu0 0.0
    %4732 = vmatprep.subr.mxu0 0.0
    %4733 = vmatpush1.msra.mxu0 0.0
    %4734 = vmatprep.subr.mxu0 0.0
    %4735 = vmatpush1.msra.mxu0 0.0
    %4736 = vmatprep.subr.mxu0 0.0
    %4737 = vmatpush1.msra.mxu0 0.0
    %4738 = vmatprep.subr.mxu0 0.0
    %4739 = vmatpush1.msra.mxu0 0.0
    %4740 = vmatprep.subr.mxu0 0.0
    %4741 = vmatpush1.msra.mxu0 0.0
    %4742 = vmatprep.subr.mxu0 0.0
    %4743 = vmatpush1.msra.mxu0 0.0
    %4744 = vmatprep.subr.mxu0 0.0
    %4745 = vmatpush1.msra.mxu0 0.0
    %4746 = vmatprep.subr.mxu0 0.0
    %4747 = vmatpush1.msra.mxu0 0.0
    %4748 = vmatprep.subr.mxu0 0.0
    %4749 = vmatpush1.msra.mxu0 0.0
    %4750 = vmatprep.subr.mxu0 0.0
    %4751 = vmatpush1.msra.mxu0 0.0
    %4752 = vmatprep.subr.mxu0 0.0
    %4753 = vmatpush1.msra.mxu0 0.0
    %4754 = vmatprep.subr.mxu0 0.0
    %4755 = vmatpush1.msra.mxu0 0.0
    %4756 = vmatprep.subr.mxu0 0.0
    %4757 = vmatpush1.msra.mxu0 0.0
    %4758 = vmatprep.subr.mxu0 0.0
    %4759 = vmatpush1.msra.mxu0 0.0
    %4760 = vmatprep.subr.mxu0 0.0
    %4761 = vmatpush1.msra.mxu0 0.0
    %4762 = vmatprep.subr.mxu0 0.0
    %4763 = vmatpush1.msra.mxu0 0.0
    %4764 = vmatprep.subr.mxu0 0.0
    %4765 = vmatpush1.msra.mxu0 0.0
    %4766 = vmatprep.subr.mxu0 0.0
    %4767 = vmatpush1.msra.mxu0 0.0
    %4768 = vmatprep.subr.mxu0 0.0
    %4769 = vmatpush1.msra.mxu0 0.0
    %4770 = vmatprep.subr.mxu0 0.0
    %4771 = vmatpush1.msra.mxu0 0.0
    %4772 = vmatprep.subr.mxu0 0.0
    %4773 = vmatpush1.msra.mxu0 0.0
    %4774 = vmatprep.subr.mxu0 0.0
    %4775 = vmatpush1.msra.mxu0 0.0
    %4776 = vmatprep.mubr.f32.mxu0 0.0
    %v4777 = vand.u32 %v4706, 4294901760
    %v4778 = vsub.f32 %v4706, %v4777
    %v4779 = vand.u32 %v4778, 4294901760
    %v4780 = vsub.f32 %v4778, %v4779
    %v4781 = vand.u32 %v4780, 4294901760
    %4782 = vmatmul.mubr.f32.gmra.mrb[0].mxu0 %v4781
    %v4783 = vpop.f32.mrb[0].mxu0
    %v4784 = vadd.f32 %v4702, %v4783
    %v4785 = vpop.f32.mrb[0].mxu0
    %4786 = vdwg.mxu0
    %4787 = vmatprep.subr.mxu0 0.0
    %v4788 = vand.u32 %v4694, 4294901760
    %v4789 = vsub.f32 %v4694, %v4788
    %v4790 = vand.u32 %v4789, 4294901760
    %v4791 = vsub.f32 %v4789, %v4790
    %v4792 = vand.u32 %v4791, 4294901760
    %4793 = vmatpush1.msra.mxu0 %v4792
    %4794 = vmatprep.subr.mxu0 0.0
    %v4795 = vand.u32 %v4695, 4294901760
    %v4796 = vsub.f32 %v4695, %v4795
    %v4797 = vand.u32 %v4796, 4294901760
    %v4798 = vsub.f32 %v4796, %v4797
    %v4799 = vand.u32 %v4798, 4294901760
    %4800 = vmatpush1.msra.mxu0 %v4799
    %4801 = vmatprep.subr.mxu0 0.0
    %v4802 = vand.u32 %v4696, 4294901760
    %v4803 = vsub.f32 %v4696, %v4802
    %v4804 = vand.u32 %v4803, 4294901760
    %v4805 = vsub.f32 %v4803, %v4804
    %v4806 = vand.u32 %v4805, 4294901760
    %4807 = vmatpush1.msra.mxu0 %v4806
    %4808 = vmatprep.subr.mxu0 0.0
    %v4809 = vand.u32 %v4697, 4294901760
    %v4810 = vsub.f32 %v4697, %v4809
    %v4811 = vand.u32 %v4810, 4294901760
    %v4812 = vsub.f32 %v4810, %v4811
    %v4813 = vand.u32 %v4812, 4294901760
    %4814 = vmatpush1.msra.mxu0 %v4813
    %4815 = vmatprep.subr.mxu0 0.0
    %4816 = vmatpush1.msra.mxu0 0.0
    %4817 = vmatprep.subr.mxu0 0.0
    %4818 = vmatpush1.msra.mxu0 0.0
    %4819 = vmatprep.subr.mxu0 0.0
    %4820 = vmatpush1.msra.mxu0 0.0
    %4821 = vmatprep.subr.mxu0 0.0
    %4822 = vmatpush1.msra.mxu0 0.0
    %4823 = vmatprep.subr.mxu0 0.0
    %4824 = vmatpush1.msra.mxu0 0.0
    %4825 = vmatprep.subr.mxu0 0.0
    %4826 = vmatpush1.msra.mxu0 0.0
    %4827 = vmatprep.subr.mxu0 0.0
    %4828 = vmatpush1.msra.mxu0 0.0
    %4829 = vmatprep.subr.mxu0 0.0
    %4830 = vmatpush1.msra.mxu0 0.0
    %4831 = vmatprep.subr.mxu0 0.0
    %4832 = vmatpush1.msra.mxu0 0.0
    %4833 = vmatprep.subr.mxu0 0.0
    %4834 = vmatpush1.msra.mxu0 0.0
    %4835 = vmatprep.subr.mxu0 0.0
    %4836 = vmatpush1.msra.mxu0 0.0
    %4837 = vmatprep.subr.mxu0 0.0
    %4838 = vmatpush1.msra.mxu0 0.0
    %4839 = vmatprep.subr.mxu0 0.0
    %4840 = vmatpush1.msra.mxu0 0.0
    %4841 = vmatprep.subr.mxu0 0.0
    %4842 = vmatpush1.msra.mxu0 0.0
    %4843 = vmatprep.subr.mxu0 0.0
    %4844 = vmatpush1.msra.mxu0 0.0
    %4845 = vmatprep.subr.mxu0 0.0
    %4846 = vmatpush1.msra.mxu0 0.0
    %4847 = vmatprep.subr.mxu0 0.0
    %4848 = vmatpush1.msra.mxu0 0.0
    %4849 = vmatprep.subr.mxu0 0.0
    %4850 = vmatpush1.msra.mxu0 0.0
    %4851 = vmatprep.subr.mxu0 0.0
    %4852 = vmatpush1.msra.mxu0 0.0
    %4853 = vmatprep.subr.mxu0 0.0
    %4854 = vmatpush1.msra.mxu0 0.0
    %4855 = vmatprep.subr.mxu0 0.0
    %4856 = vmatpush1.msra.mxu0 0.0
    %4857 = vmatprep.subr.mxu0 0.0
    %4858 = vmatpush1.msra.mxu0 0.0
    %4859 = vmatprep.subr.mxu0 0.0
    %4860 = vmatpush1.msra.mxu0 0.0
    %4861 = vmatprep.subr.mxu0 0.0
    %4862 = vmatpush1.msra.mxu0 0.0
    %4863 = vmatprep.subr.mxu0 0.0
    %4864 = vmatpush1.msra.mxu0 0.0
    %4865 = vmatprep.subr.mxu0 0.0
    %4866 = vmatpush1.msra.mxu0 0.0
    %4867 = vmatprep.subr.mxu0 0.0
    %4868 = vmatpush1.msra.mxu0 0.0
    %4869 = vmatprep.subr.mxu0 0.0
    %4870 = vmatpush1.msra.mxu0 0.0
    %4871 = vmatprep.mubr.f32.mxu0 0.0
    %v4872 = vand.u32 %v4706, 4294901760
    %4873 = vmatmul.mubr.f32.gmra.mrb[0].mxu0 %v4872
    %v4874 = vpop.f32.mrb[0].mxu0
    %v4875 = vadd.f32 %v4784, %v4874
    %v4876 = vpop.f32.mrb[0].mxu0
    %4877 = vdwg.mxu0
    %4878 = vmatprep.subr.mxu0 0.0
    %v4879 = vand.u32 %v4694, 4294901760
    %v4880 = vsub.f32 %v4694, %v4879
    %4881 = vmatpush1.msra.mxu0 %v4880
    %4882 = vmatprep.subr.mxu0 0.0
    %v4883 = vand.u32 %v4695, 4294901760
    %v4884 = vsub.f32 %v4695, %v4883
    %4885 = vmatpush1.msra.mxu0 %v4884
    %4886 = vmatprep.subr.mxu0 0.0
    %v4887 = vand.u32 %v4696, 4294901760
    %v4888 = vsub.f32 %v4696, %v4887
    %4889 = vmatpush1.msra.mxu0 %v4888
    %4890 = vmatprep.subr.mxu0 0.0
    %v4891 = vand.u32 %v4697, 4294901760
    %v4892 = vsub.f32 %v4697, %v4891
    %4893 = vmatpush1.msra.mxu0 %v4892
    %4894 = vmatprep.subr.mxu0 0.0
    %4895 = vmatpush1.msra.mxu0 0.0
    %4896 = vmatprep.subr.mxu0 0.0
    %4897 = vmatpush1.msra.mxu0 0.0
    %4898 = vmatprep.subr.mxu0 0.0
    %4899 = vmatpush1.msra.mxu0 0.0
    %4900 = vmatprep.subr.mxu0 0.0
    %4901 = vmatpush1.msra.mxu0 0.0
    %4902 = vmatprep.subr.mxu0 0.0
    %4903 = vmatpush1.msra.mxu0 0.0
    %4904 = vmatprep.subr.mxu0 0.0
    %4905 = vmatpush1.msra.mxu0 0.0
    %4906 = vmatprep.subr.mxu0 0.0
    %4907 = vmatpush1.msra.mxu0 0.0
    %4908 = vmatprep.subr.mxu0 0.0
    %4909 = vmatpush1.msra.mxu0 0.0
    %4910 = vmatprep.subr.mxu0 0.0
    %4911 = vmatpush1.msra.mxu0 0.0
    %4912 = vmatprep.subr.mxu0 0.0
    %4913 = vmatpush1.msra.mxu0 0.0
    %4914 = vmatprep.subr.mxu0 0.0
    %4915 = vmatpush1.msra.mxu0 0.0
    %4916 = vmatprep.subr.mxu0 0.0
    %4917 = vmatpush1.msra.mxu0 0.0
    %4918 = vmatprep.subr.mxu0 0.0
    %4919 = vmatpush1.msra.mxu0 0.0
    %4920 = vmatprep.subr.mxu0 0.0
    %4921 = vmatpush1.msra.mxu0 0.0
    %4922 = vmatprep.subr.mxu0 0.0
    %4923 = vmatpush1.msra.mxu0 0.0
    %4924 = vmatprep.subr.mxu0 0.0
    %4925 = vmatpush1.msra.mxu0 0.0
    %4926 = vmatprep.subr.mxu0 0.0
    %4927 = vmatpush1.msra.mxu0 0.0
    %4928 = vmatprep.subr.mxu0 0.0
    %4929 = vmatpush1.msra.mxu0 0.0
    %4930 = vmatprep.subr.mxu0 0.0
    %4931 = vmatpush1.msra.mxu0 0.0
    %4932 = vmatprep.subr.mxu0 0.0
    %4933 = vmatpush1.msra.mxu0 0.0
    %4934 = vmatprep.subr.mxu0 0.0
    %4935 = vmatpush1.msra.mxu0 0.0
    %4936 = vmatprep.subr.mxu0 0.0
    %4937 = vmatpush1.msra.mxu0 0.0
    %4938 = vmatprep.subr.mxu0 0.0
    %4939 = vmatpush1.msra.mxu0 0.0
    %4940 = vmatprep.subr.mxu0 0.0
    %4941 = vmatpush1.msra.mxu0 0.0
    %4942 = vmatprep.subr.mxu0 0.0
    %4943 = vmatpush1.msra.mxu0 0.0
    %4944 = vmatprep.subr.mxu0 0.0
    %4945 = vmatpush1.msra.mxu0 0.0
    %4946 = vmatprep.subr.mxu0 0.0
    %4947 = vmatpush1.msra.mxu0 0.0
    %4948 = vmatprep.subr.mxu0 0.0
    %4949 = vmatpush1.msra.mxu0 0.0
    %4950 = vmatprep.mubr.f32.mxu0 0.0
    %v4951 = vand.u32 %v4706, 4294901760
    %v4952 = vsub.f32 %v4706, %v4951
    %4953 = vmatmul.mubr.f32.gmra.mrb[0].mxu0 %v4952
    %v4954 = vpop.f32.mrb[0].mxu0
    %v4955 = vadd.f32 %v4875, %v4954
    %v4956 = vpop.f32.mrb[0].mxu0
    %4957 = vdwg.mxu0
    %4958 = vmatprep.subr.mxu0 0.0
    %v4959 = vand.u32 %v4694, 4294901760
    %4960 = vmatpush1.msra.mxu0 %v4959
    %4961 = vmatprep.subr.mxu0 0.0
    %v4962 = vand.u32 %v4695, 4294901760
    %4963 = vmatpush1.msra.mxu0 %v4962
    %4964 = vmatprep.subr.mxu0 0.0
    %v4965 = vand.u32 %v4696, 4294901760
    %4966 = vmatpush1.msra.mxu0 %v4965
    %4967 = vmatprep.subr.mxu0 0.0
    %v4968 = vand.u32 %v4697, 4294901760
    %4969 = vmatpush1.msra.mxu0 %v4968
    %4970 = vmatprep.subr.mxu0 0.0
    %4971 = vmatpush1.msra.mxu0 0.0
    %4972 = vmatprep.subr.mxu0 0.0
    %4973 = vmatpush1.msra.mxu0 0.0
    %4974 = vmatprep.subr.mxu0 0.0
    %4975 = vmatpush1.msra.mxu0 0.0
    %4976 = vmatprep.subr.mxu0 0.0
    %4977 = vmatpush1.msra.mxu0 0.0
    %4978 = vmatprep.subr.mxu0 0.0
    %4979 = vmatpush1.msra.mxu0 0.0
    %4980 = vmatprep.subr.mxu0 0.0
    %4981 = vmatpush1.msra.mxu0 0.0
    %4982 = vmatprep.subr.mxu0 0.0
    %4983 = vmatpush1.msra.mxu0 0.0
    %4984 = vmatprep.subr.mxu0 0.0
    %4985 = vmatpush1.msra.mxu0 0.0
    %4986 = vmatprep.subr.mxu0 0.0
    %4987 = vmatpush1.msra.mxu0 0.0
    %4988 = vmatprep.subr.mxu0 0.0
    %4989 = vmatpush1.msra.mxu0 0.0
    %4990 = vmatprep.subr.mxu0 0.0
    %4991 = vmatpush1.msra.mxu0 0.0
    %4992 = vmatprep.subr.mxu0 0.0
    %4993 = vmatpush1.msra.mxu0 0.0
    %4994 = vmatprep.subr.mxu0 0.0
    %4995 = vmatpush1.msra.mxu0 0.0
    %4996 = vmatprep.subr.mxu0 0.0
    %4997 = vmatpush1.msra.mxu0 0.0
    %4998 = vmatprep.subr.mxu0 0.0
    %4999 = vmatpush1.msra.mxu0 0.0
    %5000 = vmatprep.subr.mxu0 0.0
    %5001 = vmatpush1.msra.mxu0 0.0
    %5002 = vmatprep.subr.mxu0 0.0
    %5003 = vmatpush1.msra.mxu0 0.0
    %5004 = vmatprep.subr.mxu0 0.0
    %5005 = vmatpush1.msra.mxu0 0.0
    %5006 = vmatprep.subr.mxu0 0.0
    %5007 = vmatpush1.msra.mxu0 0.0
    %5008 = vmatprep.subr.mxu0 0.0
    %5009 = vmatpush1.msra.mxu0 0.0
    %5010 = vmatprep.subr.mxu0 0.0
    %5011 = vmatpush1.msra.mxu0 0.0
    %5012 = vmatprep.subr.mxu0 0.0
    %5013 = vmatpush1.msra.mxu0 0.0
    %5014 = vmatprep.subr.mxu0 0.0
    %5015 = vmatpush1.msra.mxu0 0.0
    %5016 = vmatprep.subr.mxu0 0.0
    %5017 = vmatpush1.msra.mxu0 0.0
    %5018 = vmatprep.subr.mxu0 0.0
    %5019 = vmatpush1.msra.mxu0 0.0
    %5020 = vmatprep.subr.mxu0 0.0
    %5021 = vmatpush1.msra.mxu0 0.0
    %5022 = vmatprep.subr.mxu0 0.0
    %5023 = vmatpush1.msra.mxu0 0.0
    %5024 = vmatprep.subr.mxu0 0.0
    %5025 = vmatpush1.msra.mxu0 0.0
    %5026 = vmatprep.mubr.f32.mxu0 0.0
    %v5027 = vand.u32 %v4706, 4294901760
    %v5028 = vsub.f32 %v4706, %v5027
    %v5029 = vand.u32 %v5028, 4294901760
    %5030 = vmatmul.mubr.f32.gmra.mrb[0].mxu0 %v5029
    %v5031 = vpop.f32.mrb[0].mxu0
    %v5032 = vadd.f32 %v4955, %v5031
    %v5033 = vpop.f32.mrb[0].mxu0
    %5034 = vdwg.mxu0
    %5035 = vmatprep.subr.mxu0 0.0
    %v5036 = vand.u32 %v4694, 4294901760
    %v5037 = vsub.f32 %v4694, %v5036
    %v5038 = vand.u32 %v5037, 4294901760
    %5039 = vmatpush1.msra.mxu0 %v5038
    %5040 = vmatprep.subr.mxu0 0.0
    %v5041 = vand.u32 %v4695, 4294901760
    %v5042 = vsub.f32 %v4695, %v5041
    %v5043 = vand.u32 %v5042, 4294901760
    %5044 = vmatpush1.msra.mxu0 %v5043
    %5045 = vmatprep.subr.mxu0 0.0
    %v5046 = vand.u32 %v4696, 4294901760
    %v5047 = vsub.f32 %v4696, %v5046
    %v5048 = vand.u32 %v5047, 4294901760
    %5049 = vmatpush1.msra.mxu0 %v5048
    %5050 = vmatprep.subr.mxu0 0.0
    %v5051 = vand.u32 %v4697, 4294901760
    %v5052 = vsub.f32 %v4697, %v5051
    %v5053 = vand.u32 %v5052, 4294901760
    %5054 = vmatpush1.msra.mxu0 %v5053
    %5055 = vmatprep.subr.mxu0 0.0
    %5056 = vmatpush1.msra.mxu0 0.0
    %5057 = vmatprep.subr.mxu0 0.0
    %5058 = vmatpush1.msra.mxu0 0.0
    %5059 = vmatprep.subr.mxu0 0.0
    %5060 = vmatpush1.msra.mxu0 0.0
    %5061 = vmatprep.subr.mxu0 0.0
    %5062 = vmatpush1.msra.mxu0 0.0
    %5063 = vmatprep.subr.mxu0 0.0
    %5064 = vmatpush1.msra.mxu0 0.0
    %5065 = vmatprep.subr.mxu0 0.0
    %5066 = vmatpush1.msra.mxu0 0.0
    %5067 = vmatprep.subr.mxu0 0.0
    %5068 = vmatpush1.msra.mxu0 0.0
    %5069 = vmatprep.subr.mxu0 0.0
    %5070 = vmatpush1.msra.mxu0 0.0
    %5071 = vmatprep.subr.mxu0 0.0
    %5072 = vmatpush1.msra.mxu0 0.0
    %5073 = vmatprep.subr.mxu0 0.0
    %5074 = vmatpush1.msra.mxu0 0.0
    %5075 = vmatprep.subr.mxu0 0.0
    %5076 = vmatpush1.msra.mxu0 0.0
    %5077 = vmatprep.subr.mxu0 0.0
    %5078 = vmatpush1.msra.mxu0 0.0
    %5079 = vmatprep.subr.mxu0 0.0
    %5080 = vmatpush1.msra.mxu0 0.0
    %5081 = vmatprep.subr.mxu0 0.0
    %5082 = vmatpush1.msra.mxu0 0.0
    %5083 = vmatprep.subr.mxu0 0.0
    %5084 = vmatpush1.msra.mxu0 0.0
    %5085 = vmatprep.subr.mxu0 0.0
    %5086 = vmatpush1.msra.mxu0 0.0
    %5087 = vmatprep.subr.mxu0 0.0
    %5088 = vmatpush1.msra.mxu0 0.0
    %5089 = vmatprep.subr.mxu0 0.0
    %5090 = vmatpush1.msra.mxu0 0.0
    %5091 = vmatprep.subr.mxu0 0.0
    %5092 = vmatpush1.msra.mxu0 0.0
    %5093 = vmatprep.subr.mxu0 0.0
    %5094 = vmatpush1.msra.mxu0 0.0
    %5095 = vmatprep.subr.mxu0 0.0
    %5096 = vmatpush1.msra.mxu0 0.0
    %5097 = vmatprep.subr.mxu0 0.0
    %5098 = vmatpush1.msra.mxu0 0.0
    %5099 = vmatprep.subr.mxu0 0.0
    %5100 = vmatpush1.msra.mxu0 0.0
    %5101 = vmatprep.subr.mxu0 0.0
    %5102 = vmatpush1.msra.mxu0 0.0
    %5103 = vmatprep.subr.mxu0 0.0
    %5104 = vmatpush1.msra.mxu0 0.0
    %5105 = vmatprep.subr.mxu0 0.0
    %5106 = vmatpush1.msra.mxu0 0.0
    %5107 = vmatprep.subr.mxu0 0.0
    %5108 = vmatpush1.msra.mxu0 0.0
    %5109 = vmatprep.subr.mxu0 0.0
    %5110 = vmatpush1.msra.mxu0 0.0
    %5111 = vmatprep.mubr.f32.mxu0 0.0
    %v5112 = vand.u32 %v4706, 4294901760
    %5113 = vmatmul.mubr.f32.gmra.mrb[0].mxu0 %v5112
    %v5114 = vpop.f32.mrb[0].mxu0
    %v5115 = vadd.f32 %v5032, %v5114
    %v5116 = vpop.f32.mrb[0].mxu0
    %5117 = vdwg.mxu0
    %5118 = vmatprep.subr.mxu0 0.0
    %v5119 = vand.u32 %v4694, 4294901760
    %5120 = vmatpush1.msra.mxu0 %v5119
    %5121 = vmatprep.subr.mxu0 0.0
    %v5122 = vand.u32 %v4695, 4294901760
    %5123 = vmatpush1.msra.mxu0 %v5122
    %5124 = vmatprep.subr.mxu0 0.0
    %v5125 = vand.u32 %v4696, 4294901760
    %5126 = vmatpush1.msra.mxu0 %v5125
    %5127 = vmatprep.subr.mxu0 0.0
    %v5128 = vand.u32 %v4697, 4294901760
    %5129 = vmatpush1.msra.mxu0 %v5128
    %5130 = vmatprep.subr.mxu0 0.0
    %5131 = vmatpush1.msra.mxu0 0.0
    %5132 = vmatprep.subr.mxu0 0.0
    %5133 = vmatpush1.msra.mxu0 0.0
    %5134 = vmatprep.subr.mxu0 0.0
    %5135 = vmatpush1.msra.mxu0 0.0
    %5136 = vmatprep.subr.mxu0 0.0
    %5137 = vmatpush1.msra.mxu0 0.0
    %5138 = vmatprep.subr.mxu0 0.0
    %5139 = vmatpush1.msra.mxu0 0.0
    %5140 = vmatprep.subr.mxu0 0.0
    %5141 = vmatpush1.msra.mxu0 0.0
    %5142 = vmatprep.subr.mxu0 0.0
    %5143 = vmatpush1.msra.mxu0 0.0
    %5144 = vmatprep.subr.mxu0 0.0
    %5145 = vmatpush1.msra.mxu0 0.0
    %5146 = vmatprep.subr.mxu0 0.0
    %5147 = vmatpush1.msra.mxu0 0.0
    %5148 = vmatprep.subr.mxu0 0.0
    %5149 = vmatpush1.msra.mxu0 0.0
    %5150 = vmatprep.subr.mxu0 0.0
    %5151 = vmatpush1.msra.mxu0 0.0
    %5152 = vmatprep.subr.mxu0 0.0
    %5153 = vmatpush1.msra.mxu0 0.0
    %5154 = vmatprep.subr.mxu0 0.0
    %5155 = vmatpush1.msra.mxu0 0.0
    %5156 = vmatprep.subr.mxu0 0.0
    %5157 = vmatpush1.msra.mxu0 0.0
    %5158 = vmatprep.subr.mxu0 0.0
    %5159 = vmatpush1.msra.mxu0 0.0
    %5160 = vmatprep.subr.mxu0 0.0
    %5161 = vmatpush1.msra.mxu0 0.0
    %5162 = vmatprep.subr.mxu0 0.0
    %5163 = vmatpush1.msra.mxu0 0.0
    %5164 = vmatprep.subr.mxu0 0.0
    %5165 = vmatpush1.msra.mxu0 0.0
    %5166 = vmatprep.subr.mxu0 0.0
    %5167 = vmatpush1.msra.mxu0 0.0
    %5168 = vmatprep.subr.mxu0 0.0
    %5169 = vmatpush1.msra.mxu0 0.0
    %5170 = vmatprep.subr.mxu0 0.0
    %5171 = vmatpush1.msra.mxu0 0.0
    %5172 = vmatprep.subr.mxu0 0.0
    %5173 = vmatpush1.msra.mxu0 0.0
    %5174 = vmatprep.subr.mxu0 0.0
    %5175 = vmatpush1.msra.mxu0 0.0
    %5176 = vmatprep.subr.mxu0 0.0
    %5177 = vmatpush1.msra.mxu0 0.0
    %5178 = vmatprep.subr.mxu0 0.0
    %5179 = vmatpush1.msra.mxu0 0.0
    %5180 = vmatprep.subr.mxu0 0.0
    %5181 = vmatpush1.msra.mxu0 0.0
    %5182 = vmatprep.subr.mxu0 0.0
    %5183 = vmatpush1.msra.mxu0 0.0
    %5184 = vmatprep.subr.mxu0 0.0
    %5185 = vmatpush1.msra.mxu0 0.0
    %5186 = vmatprep.mubr.f32.mxu0 0.0
    %v5187 = vand.u32 %v4706, 4294901760
    %5188 = vmatmul.mubr.f32.gmra.mrb[0].mxu0 %v5187
    %v5189 = vpop.f32.mrb[0].mxu0
    %v5190 = vadd.f32 %v5115, %v5189
    %v5191 = vpop.f32.mrb[0].mxu0
    %5192 = vdwg.mxu0
    %vm5193 = vcmask 523264
    %5194 = vst.msk [vmem:[#allocation5] sm:$0xff] %vm5193, %v5190
    // Predicated region
    $region14: #{model_forward.1} parent=1 // pred_check
      _
    $region15: #{model_forward.1} parent=1 // pred_check_branch
      %5196 = sbr.rel (0) target = $region17
    $region16: #{model_forward.1} parent=1 // pred_region
      %s5198 = ssub.s32 128, 128
      %5199 = vsyncadd [#allocation4], %s5198
      %s5201 = sshll.u32 [#allocation5], 4
      %s5202 = int_to_ptr.vmem [resolvable:$true] %s5201
      %5204 = dma.vmem_to_hbm [thread:$0]  %s5202, 128, %s2, [#allocation4]
    $region17: #{model_forward.1} parent=1 // pred_fallthru
      _
    // Predicated region
    $region18: #{model_forward.1} parent=1 // pred_check
      _
    $region19: #{model_forward.1} parent=1 // pred_check_branch
      %5206 = sbr.rel (0) target = $region21
    $region20: #{model_forward.1} parent=1 // pred_region
      %5207 = dma.done [#allocation4], 128
    $region21: #{model_forward.1} parent=1 // pred_fallthru
      _
    %5208 = vsyncpa [#allocation3], 1
    %5209 = vsyncpa [#allocation4], 1

</llo_original>
